<compile_context>
chip_gen: v5e
topology: v5e:2x2
jax: 0.10.0
libtpu: 0.0.40
codegen_flags: <defaults>
</compile_context>

<pallas_src>
import jax
import jax.numpy as jnp
from jax.experimental import pallas as pl
from jax.experimental.pallas import tpu as pltpu


# ----------------------------------------------------------------------------
# Fused forward kernel (one grid step == G graphs of the batch)
# ----------------------------------------------------------------------------
def make_fused_kernel(*, n_conv, n_edge, G, N, D, fc_acts):
    n_fc = len(fc_acts)
    GN = G * N

    def kernel(*refs):
        (adj_ref, h_ref, atom_ref,
         wmsg_ref, bmsg_ref, wih_ref, bih_ref, whh_ref, bhh_ref) = refs[:9]
        fc_refs = refs[9:9 + 2 * n_fc]
        out_ref = refs[9 + 2 * n_fc]

        h = h_ref[...]                                     # (GN, D) f32

        # -------- gated graph convolution layers (static unroll, small n_conv) -----
        for l in range(n_conv):
            h16 = h.astype(jnp.bfloat16)

            # message: M = sum_e A_e @ (H W_e + b_e); A is block-diag over the G graphs
            m = None
            for e in range(n_edge):
                he = jnp.dot(h16, wmsg_ref[l, e],
                             preferred_element_type=jnp.float32) + bmsg_ref[l, e]
                contrib = jnp.dot(adj_ref[e], he.astype(jnp.bfloat16),
                                  preferred_element_type=jnp.float32)  # (GN, D)
                m = contrib if m is None else m + contrib

            m16 = m.astype(jnp.bfloat16)

            # GRUCell, one tiny matmul per gate (PyTorch formulas, f32 gate math)
            gi_r = jnp.dot(m16, wih_ref[l, 0], preferred_element_type=jnp.float32) + bih_ref[l, 0]
            gh_r = jnp.dot(h16, whh_ref[l, 0], preferred_element_type=jnp.float32) + bhh_ref[l, 0]
            r = jax.nn.sigmoid(gi_r + gh_r)

            gi_z = jnp.dot(m16, wih_ref[l, 1], preferred_element_type=jnp.float32) + bih_ref[l, 1]
            gh_z = jnp.dot(h16, whh_ref[l, 1], preferred_element_type=jnp.float32) + bhh_ref[l, 1]
            z = jax.nn.sigmoid(gi_z + gh_z)

            gi_n = jnp.dot(m16, wih_ref[l, 2], preferred_element_type=jnp.float32) + bih_ref[l, 2]
            gh_n = jnp.dot(h16, whh_ref[l, 2], preferred_element_type=jnp.float32) + bhh_ref[l, 2]
            n = jnp.tanh(gi_n + r * gh_n)

            h = (1.0 - z) * n + z * h
            # TODO(synk): dropout is identity in eval mode

        # -------- masked sum pooling over nodes, per graph -> (G, D) ----------------
        # 0/1 segment matrix built with iota compares (no division, no relayout);
        # pooling runs on the idle MXU slot in f32.
        r_idx = jax.lax.broadcasted_iota(jnp.int32, (G, GN), 1)
        g_lo = jax.lax.broadcasted_iota(jnp.int32, (G, GN), 0) * N
        pool_mat = ((r_idx >= g_lo) & (r_idx < g_lo + N)).astype(jnp.float32)
        masked = h * atom_ref[...]                          # (GN, D) f32
        out = jnp.dot(pool_mat, masked, preferred_element_type=jnp.float32)  # (G, D)

        # -------- fully connected chain ---------------------------------------------
        for i in range(n_fc):
            wt = fc_refs[2 * i][...]
            b = fc_refs[2 * i + 1][...]
            out = jnp.dot(out, wt, preferred_element_type=jnp.float32) + b
            if fc_acts[i] == "relu":
                out = jnp.maximum(out, 0.0)
            elif fc_acts[i] == "tanh":
                out = jnp.tanh(out)
            # TODO(synk): dropout is identity in eval mode

        out_ref[...] = out[None].astype(out_ref.dtype)      # (1, G, d_out)

    return kernel


# ----------------------------------------------------------------------------
# Parameter packing: per-layer module params -> fused-kernel layouts
# ----------------------------------------------------------------------------
def pack_conv_params(conv_params):
    wmsg, bmsg, wih, bih, whh, bhh = [], [], [], [], [], []
    for (w_msg, b_msg, wih_t, whh_t, b_ih, b_hh) in conv_params:
        _, D, _ = w_msg.shape
        wmsg.append(w_msg)                                   # (E, D, D)
        bmsg.append(b_msg)                                   # (E, 1, D)
        # split the (D, 3D) GRU weights / (1, 3D) biases into per-gate [r, z, n] blocks
        wih.append(jnp.stack([wih_t[:, g * D:(g + 1) * D] for g in range(3)], axis=0))
        whh.append(jnp.stack([whh_t[:, g * D:(g + 1) * D] for g in range(3)], axis=0))
        bih.append(jnp.stack([b_ih[:, g * D:(g + 1) * D] for g in range(3)], axis=0))
        bhh.append(jnp.stack([b_hh[:, g * D:(g + 1) * D] for g in range(3)], axis=0))
    stack = lambda xs: jnp.stack(xs, axis=0)
    return (stack(wmsg).astype(jnp.bfloat16),   # (L, E, D, D)  bf16
            stack(bmsg),                        # (L, E, 1, D)  f32
            stack(wih).astype(jnp.bfloat16),    # (L, 3, D, D)  bf16
            stack(bih),                         # (L, 3, 1, D)  f32
            stack(whh).astype(jnp.bfloat16),    # (L, 3, D, D)  bf16
            stack(bhh))                         # (L, 3, 1, D)  f32


# ----------------------------------------------------------------------------
# Parameter construction (deterministic, mirrors the module's __init__ shapes)
# ----------------------------------------------------------------------------
def _xavier_uniform(key, fan_in, fan_out, shape):
    bound = (6.0 / (fan_in + fan_out)) ** 0.5
    return jax.random.uniform(key, shape, jnp.float32, -bound, bound)


def build_params(key, *, n_edge, in_dim, n_conv, fc_dims):
    D = in_dim
    conv_params = []
    for _ in range(n_conv):
        keys = jax.random.split(key, 7)
        key = keys[0]
        bnd = 1.0 / (D ** 0.5)
        w_msg = jax.random.uniform(keys[1], (n_edge, D, D), jnp.float32, -bnd, bnd)
        b_msg = jnp.zeros((n_edge, 1, D), jnp.float32)
        # GRUCell weights, stored pre-transposed: (input_dim, 3*hidden)
        wih_t = jax.random.uniform(keys[2], (D, 3 * D), jnp.float32, -bnd, bnd)
        whh_t = jax.random.uniform(keys[3], (D, 3 * D), jnp.float32, -bnd, bnd)
        bih = jax.random.uniform(keys[4], (1, 3 * D), jnp.float32, -bnd, bnd)
        bhh = jax.random.uniform(keys[5], (1, 3 * D), jnp.float32, -bnd, bnd)
        conv_params.append((w_msg, b_msg, wih_t, whh_t, bih, bhh))

    # fc layers: dims = [in_dim] + fc_dims ; activations per _build_layers
    num_fc = len(fc_dims)
    dims = [D] + list(fc_dims)
    fc_params = []
    for i, (di, do) in enumerate(zip(dims[:-1], dims[1:])):
        key, wkey = jax.random.split(key)
        wt = _xavier_uniform(wkey, di, do, (di, do))   # xavier_uniform, stored (in, out)
        b = jnp.zeros((1, do), jnp.float32)            # zeros per reset_parameters
        if i < num_fc - 2:
            act = "relu"
        elif i == num_fc - 2:
            act = "tanh"
        else:
            act = "none"
        fc_params.append((wt, b, act))
    return conv_params, fc_params


# ----------------------------------------------------------------------------
# Batch-tile size selection
# ----------------------------------------------------------------------------
def _choose_group_size(B, N, max_rows=128):
    """Largest G dividing B with G*N <= max_rows; prefer >= 2 grid steps (v7x: 2 TCs).

    max_rows=128 also bounds the block-diagonal adjacency tile to
    n_edge * 128^2 bf16 bytes per buffer -- comfortably inside the scoped VMEM
    limit on v5e/v6e (128 MiB) and v7x (64 MiB physical / 32 MiB default).
    """
    divisors = [g for g in range(1, B + 1) if B % g == 0]
    fitting = [g for g in divisors if g * N <= max_rows] or [1]
    multi = [g for g in fitting if B // g >= 2]
    return max(multi) if multi else max(fitting)


# ----------------------------------------------------------------------------
# Full forward pass: one pallas_call over grid=(B // G,)
# ----------------------------------------------------------------------------
def gated_gnn_forward(adj, node_feat, atom_vec, conv_params, fc_params, *, group_size=None):
    B, n_edge, N, _ = adj.shape
    D = node_feat.shape[-1]
    n_conv = len(conv_params)
    fc_acts = tuple(act for (_, _, act) in fc_params)
    d_out = fc_params[-1][0].shape[1]

    G = group_size if group_size is not None else _choose_group_size(B, N)
    assert B % G == 0, (B, G)
    S = B // G
    GN = G * N

    # Block-diagonal adjacency per grid step, one slab per edge type: (S, E, GN, GN).
    # bf16 is exact for 0/1 adjacency values.
    # TODO(synk): hoist this relayout out of the per-call path when adjacency is reused.
    adj_r = jnp.transpose(adj.reshape(S, G, n_edge, N, N), (0, 2, 1, 3, 4))  # (S,E,G,N,N)
    eye = jnp.eye(G, dtype=adj.dtype)
    adj_blk = jnp.einsum('segij,gh->segihj', adj_r, eye)
    adj_blk = adj_blk.reshape(S, n_edge, GN, GN).astype(jnp.bfloat16)

    feat = node_feat.reshape(S, GN, D)
    mask = atom_vec.reshape(S, GN, 1)

    packed = pack_conv_params(conv_params)

    in_specs = [
        pl.BlockSpec((pl.Squeezed(), n_edge, GN, GN), lambda s: (s, 0, 0, 0)),  # adj_blk
        pl.BlockSpec((pl.Squeezed(), GN, D), lambda s: (s, 0, 0)),              # node feat
        pl.BlockSpec((pl.Squeezed(), GN, 1), lambda s: (s, 0, 0)),              # atom mask
        pl.BlockSpec((n_conv, n_edge, D, D), lambda s: (0, 0, 0, 0)),           # wmsg
        pl.BlockSpec((n_conv, n_edge, 1, D), lambda s: (0, 0, 0, 0)),           # bmsg
        pl.BlockSpec((n_conv, 3, D, D), lambda s: (0, 0, 0, 0)),                # wih
        pl.BlockSpec((n_conv, 3, 1, D), lambda s: (0, 0, 0, 0)),                # bih
        pl.BlockSpec((n_conv, 3, D, D), lambda s: (0, 0, 0, 0)),                # whh
        pl.BlockSpec((n_conv, 3, 1, D), lambda s: (0, 0, 0, 0)),                # bhh
    ]
    fc_args = []
    for (wt, b_, _act) in fc_params:
        din, dout = wt.shape
        in_specs.append(pl.BlockSpec((din, dout), lambda s: (0, 0)))
        in_specs.append(pl.BlockSpec((1, dout), lambda s: (0, 0)))
        fc_args += [wt, b_]

    kernel = make_fused_kernel(n_conv=n_conv, n_edge=n_edge, G=G, N=N, D=D,
                               fc_acts=fc_acts)

    # Advisory cost estimate (flops from the matmuls, transcendentals from the gates).
    flops = (2 * B * n_conv * (n_edge * (N * D * D + N * N * D) + 6 * N * D * D)
             + 2 * B * sum(int(wt.shape[0]) * int(wt.shape[1]) for (wt, _, _) in fc_params)
             + 2 * B * N * D)
    transcendentals = B * n_conv * 3 * N * D
    bytes_accessed = (int(adj_blk.size) * 2 + int(feat.size) * 4 + int(mask.size) * 4
                      + sum(int(p.size) * p.dtype.itemsize for p in packed)
                      + sum(int(w.size) * 4 + int(b.size) * 4 for (w, b, _) in fc_params)
                      + B * d_out * 4)
    cost = pl.CostEstimate(flops=int(flops),
                           transcendentals=int(transcendentals),
                           bytes_accessed=int(bytes_accessed))

    out = pl.pallas_call(
        kernel,
        out_shape=jax.ShapeDtypeStruct((S, G, d_out), jnp.float32),
        grid_spec=pl.GridSpec(
            grid=(S,),
            in_specs=in_specs,
            out_specs=pl.BlockSpec((1, G, d_out), lambda s: (s, 0, 0)),
        ),
        compiler_params=pltpu.CompilerParams(dimension_semantics=("parallel",)),
        cost_estimate=cost,
    )(adj_blk, feat, mask, *packed, *fc_args)

    return out.reshape(B, d_out)


if __name__ == "__main__":
    # Small, module-consistent shapes; B=8 so the batch tiles as G=4 graphs/step,
    # grid=(2,) -> both v7x TensorCores stay busy while M rows per matmul is 64.
    B, n_edge, N, D = 8, 2, 16, 32
    n_conv = 3
    fc_dims = [64, 4]

    key = jax.random.PRNGKey(0)
    k_adj, k_feat, k_mask, k_par = jax.random.split(key, 4)

    adj = (jax.random.uniform(k_adj, (B, n_edge, N, N)) < 0.3).astype(jnp.float32)
    node_feat = jax.random.normal(k_feat, (B, N, D), jnp.float32)
    atom_vec = (jax.random.uniform(k_mask, (B, N, 1)) < 0.8).astype(jnp.float32)

    conv_params, fc_params = build_params(
        k_par, n_edge=n_edge, in_dim=D, n_conv=n_conv, fc_dims=fc_dims)

    out = gated_gnn_forward(adj, node_feat, atom_vec, conv_params, fc_params)
    out = jax.block_until_ready(out)
    assert out.shape == (B, fc_dims[-1]), out.shape
    assert bool(jnp.all(jnp.isfinite(out)))
    print("KERNEL_OK")
</pallas_src>

<mosaic_0001>
module attributes {stable_mosaic.version = 11 : i64} {
  func.func @kernel(%arg0: i32, %arg1: memref<1x2x64x64xbf16, #tpu.memory_space<vmem>>, %arg2: memref<1x64x32xf32, #tpu.memory_space<vmem>>, %arg3: memref<1x64x1xf32, #tpu.memory_space<vmem>>, %arg4: memref<3x2x32x32xbf16, #tpu.memory_space<vmem>>, %arg5: memref<3x2x1x32xf32, #tpu.memory_space<vmem>>, %arg6: memref<3x3x32x32xbf16, #tpu.memory_space<vmem>>, %arg7: memref<3x3x1x32xf32, #tpu.memory_space<vmem>>, %arg8: memref<3x3x32x32xbf16, #tpu.memory_space<vmem>>, %arg9: memref<3x3x1x32xf32, #tpu.memory_space<vmem>>, %arg10: memref<32x64xf32, #tpu.memory_space<vmem>>, %arg11: memref<1x64xf32, #tpu.memory_space<vmem>>, %arg12: memref<64x4xf32, #tpu.memory_space<vmem>>, %arg13: memref<1x4xf32, #tpu.memory_space<vmem>>, %arg14: memref<1x4x4xf32, #tpu.memory_space<vmem>>) attributes {dimension_semantics = [#tpu.dimension_semantics<parallel>], iteration_bounds = array<i64: 2>, scalar_prefetch = 0 : i64, scratch_operands = 0 : i64, tpu.core_type = #tpu.core_type<tc>, window_params = [{transform_indices = @transform_0, window_bounds = array<i64: 1, 2, 64, 64>}, {transform_indices = @transform_1, window_bounds = array<i64: 1, 64, 32>}, {transform_indices = @transform_2, window_bounds = array<i64: 1, 64, 1>}, {pipeline_mode = #tpu.pipeline_mode<synchronous>, transform_indices = @transform_3, window_bounds = array<i64: 3, 2, 32, 32>}, {pipeline_mode = #tpu.pipeline_mode<synchronous>, transform_indices = @transform_4, window_bounds = array<i64: 3, 2, 1, 32>}, {pipeline_mode = #tpu.pipeline_mode<synchronous>, transform_indices = @transform_5, window_bounds = array<i64: 3, 3, 32, 32>}, {pipeline_mode = #tpu.pipeline_mode<synchronous>, transform_indices = @transform_6, window_bounds = array<i64: 3, 3, 1, 32>}, {pipeline_mode = #tpu.pipeline_mode<synchronous>, transform_indices = @transform_7, window_bounds = array<i64: 3, 3, 32, 32>}, {pipeline_mode = #tpu.pipeline_mode<synchronous>, transform_indices = @transform_8, window_bounds = array<i64: 3, 3, 1, 32>}, {pipeline_mode = #tpu.pipeline_mode<synchronous>, transform_indices = @transform_9, window_bounds = array<i64: 32, 64>}, {pipeline_mode = #tpu.pipeline_mode<synchronous>, transform_indices = @transform_10, window_bounds = array<i64: 1, 64>}, {pipeline_mode = #tpu.pipeline_mode<synchronous>, transform_indices = @transform_11, window_bounds = array<i64: 64, 4>}, {pipeline_mode = #tpu.pipeline_mode<synchronous>, transform_indices = @transform_12, window_bounds = array<i64: 1, 4>}, {transform_indices = @transform_13, window_bounds = array<i64: 1, 4, 4>}]} {
    %c0 = arith.constant 0 : index
    %c0_0 = arith.constant 0 : index
    %c0_1 = arith.constant 0 : index
    %0 = vector.load %arg2[%c0, %c0_0, %c0_1] : memref<1x64x32xf32, #tpu.memory_space<vmem>>, vector<1x64x32xf32>
    %1 = vector.shape_cast %0 : vector<1x64x32xf32> to vector<64x32xf32>
    %2 = arith.truncf %1 : vector<64x32xf32> to vector<64x32xbf16>
    %c0_2 = arith.constant 0 : index
    %c0_3 = arith.constant 0 : index
    %c0_4 = arith.constant 0 : index
    %c0_5 = arith.constant 0 : index
    %3 = vector.load %arg4[%c0_2, %c0_3, %c0_4, %c0_5] : memref<3x2x32x32xbf16, #tpu.memory_space<vmem>>, vector<1x1x32x32xbf16>
    %4 = vector.shape_cast %3 : vector<1x1x32x32xbf16> to vector<32x32xbf16>
    %cst = arith.constant dense<0.000000e+00> : vector<64x32xf32>
    %5 = tpu.matmul %2, %4, %cst {dimension_numbers = #tpu.dot_dimension_numbers<[1], [0], [0], [1], [0, 0, 1, 1], [], []>} : vector<64x32xbf16>, vector<32x32xbf16>, vector<64x32xf32> -> vector<64x32xf32>
    %c0_6 = arith.constant 0 : index
    %c0_7 = arith.constant 0 : index
    %c0_8 = arith.constant 0 : index
    %c0_9 = arith.constant 0 : index
    %6 = vector.load %arg5[%c0_6, %c0_7, %c0_8, %c0_9] : memref<3x2x1x32xf32, #tpu.memory_space<vmem>>, vector<1x1x1x32xf32>
    %7 = vector.shape_cast %6 : vector<1x1x1x32xf32> to vector<1x32xf32>
    %8 = vector.broadcast %7 : vector<1x32xf32> to vector<64x32xf32>
    %9 = arith.addf %5, %8 : vector<64x32xf32>
    %c0_10 = arith.constant 0 : index
    %c0_11 = arith.constant 0 : index
    %c0_12 = arith.constant 0 : index
    %c0_13 = arith.constant 0 : index
    %10 = vector.load %arg1[%c0_10, %c0_11, %c0_12, %c0_13] : memref<1x2x64x64xbf16, #tpu.memory_space<vmem>>, vector<1x1x64x64xbf16>
    %11 = vector.shape_cast %10 : vector<1x1x64x64xbf16> to vector<64x64xbf16>
    %12 = arith.truncf %9 : vector<64x32xf32> to vector<64x32xbf16>
    %cst_14 = arith.constant dense<0.000000e+00> : vector<64x32xf32>
    %13 = tpu.matmul %11, %12, %cst_14 {dimension_numbers = #tpu.dot_dimension_numbers<[1], [0], [0], [1], [0, 0, 1, 1], [], []>} : vector<64x64xbf16>, vector<64x32xbf16>, vector<64x32xf32> -> vector<64x32xf32>
    %c0_15 = arith.constant 0 : index
    %c1 = arith.constant 1 : index
    %c0_16 = arith.constant 0 : index
    %c0_17 = arith.constant 0 : index
    %14 = vector.load %arg4[%c0_15, %c1, %c0_16, %c0_17] : memref<3x2x32x32xbf16, #tpu.memory_space<vmem>>, vector<1x1x32x32xbf16>
    %15 = vector.shape_cast %14 : vector<1x1x32x32xbf16> to vector<32x32xbf16>
    %cst_18 = arith.constant dense<0.000000e+00> : vector<64x32xf32>
    %16 = tpu.matmul %2, %15, %cst_18 {dimension_numbers = #tpu.dot_dimension_numbers<[1], [0], [0], [1], [0, 0, 1, 1], [], []>} : vector<64x32xbf16>, vector<32x32xbf16>, vector<64x32xf32> -> vector<64x32xf32>
    %c0_19 = arith.constant 0 : index
    %c1_20 = arith.constant 1 : index
    %c0_21 = arith.constant 0 : index
    %c0_22 = arith.constant 0 : index
    %17 = vector.load %arg5[%c0_19, %c1_20, %c0_21, %c0_22] : memref<3x2x1x32xf32, #tpu.memory_space<vmem>>, vector<1x1x1x32xf32>
    %18 = vector.shape_cast %17 : vector<1x1x1x32xf32> to vector<1x32xf32>
    %19 = vector.broadcast %18 : vector<1x32xf32> to vector<64x32xf32>
    %20 = arith.addf %16, %19 : vector<64x32xf32>
    %c0_23 = arith.constant 0 : index
    %c1_24 = arith.constant 1 : index
    %c0_25 = arith.constant 0 : index
    %c0_26 = arith.constant 0 : index
    %21 = vector.load %arg1[%c0_23, %c1_24, %c0_25, %c0_26] : memref<1x2x64x64xbf16, #tpu.memory_space<vmem>>, vector<1x1x64x64xbf16>
    %22 = vector.shape_cast %21 : vector<1x1x64x64xbf16> to vector<64x64xbf16>
    %23 = arith.truncf %20 : vector<64x32xf32> to vector<64x32xbf16>
    %cst_27 = arith.constant dense<0.000000e+00> : vector<64x32xf32>
    %24 = tpu.matmul %22, %23, %cst_27 {dimension_numbers = #tpu.dot_dimension_numbers<[1], [0], [0], [1], [0, 0, 1, 1], [], []>} : vector<64x64xbf16>, vector<64x32xbf16>, vector<64x32xf32> -> vector<64x32xf32>
    %25 = arith.addf %13, %24 : vector<64x32xf32>
    %26 = arith.truncf %25 : vector<64x32xf32> to vector<64x32xbf16>
    %c0_28 = arith.constant 0 : index
    %c0_29 = arith.constant 0 : index
    %c0_30 = arith.constant 0 : index
    %c0_31 = arith.constant 0 : index
    %27 = vector.load %arg6[%c0_28, %c0_29, %c0_30, %c0_31] : memref<3x3x32x32xbf16, #tpu.memory_space<vmem>>, vector<1x1x32x32xbf16>
    %28 = vector.shape_cast %27 : vector<1x1x32x32xbf16> to vector<32x32xbf16>
    %cst_32 = arith.constant dense<0.000000e+00> : vector<64x32xf32>
    %29 = tpu.matmul %26, %28, %cst_32 {dimension_numbers = #tpu.dot_dimension_numbers<[1], [0], [0], [1], [0, 0, 1, 1], [], []>} : vector<64x32xbf16>, vector<32x32xbf16>, vector<64x32xf32> -> vector<64x32xf32>
    %c0_33 = arith.constant 0 : index
    %c0_34 = arith.constant 0 : index
    %c0_35 = arith.constant 0 : index
    %c0_36 = arith.constant 0 : index
    %30 = vector.load %arg7[%c0_33, %c0_34, %c0_35, %c0_36] : memref<3x3x1x32xf32, #tpu.memory_space<vmem>>, vector<1x1x1x32xf32>
    %31 = vector.shape_cast %30 : vector<1x1x1x32xf32> to vector<1x32xf32>
    %32 = vector.broadcast %31 : vector<1x32xf32> to vector<64x32xf32>
    %33 = arith.addf %29, %32 : vector<64x32xf32>
    %c0_37 = arith.constant 0 : index
    %c0_38 = arith.constant 0 : index
    %c0_39 = arith.constant 0 : index
    %c0_40 = arith.constant 0 : index
    %34 = vector.load %arg8[%c0_37, %c0_38, %c0_39, %c0_40] : memref<3x3x32x32xbf16, #tpu.memory_space<vmem>>, vector<1x1x32x32xbf16>
    %35 = vector.shape_cast %34 : vector<1x1x32x32xbf16> to vector<32x32xbf16>
    %cst_41 = arith.constant dense<0.000000e+00> : vector<64x32xf32>
    %36 = tpu.matmul %2, %35, %cst_41 {dimension_numbers = #tpu.dot_dimension_numbers<[1], [0], [0], [1], [0, 0, 1, 1], [], []>} : vector<64x32xbf16>, vector<32x32xbf16>, vector<64x32xf32> -> vector<64x32xf32>
    %c0_42 = arith.constant 0 : index
    %c0_43 = arith.constant 0 : index
    %c0_44 = arith.constant 0 : index
    %c0_45 = arith.constant 0 : index
    %37 = vector.load %arg9[%c0_42, %c0_43, %c0_44, %c0_45] : memref<3x3x1x32xf32, #tpu.memory_space<vmem>>, vector<1x1x1x32xf32>
    %38 = vector.shape_cast %37 : vector<1x1x1x32xf32> to vector<1x32xf32>
    %39 = vector.broadcast %38 : vector<1x32xf32> to vector<64x32xf32>
    %40 = arith.addf %36, %39 : vector<64x32xf32>
    %41 = arith.addf %33, %40 : vector<64x32xf32>
    %42 = arith.negf %41 : vector<64x32xf32>
    %43 = math.exp %42 : vector<64x32xf32>
    %cst_46 = arith.constant 1.000000e+00 : f32
    %44 = vector.broadcast %cst_46 : f32 to vector<64x32xf32>
    %45 = arith.addf %44, %43 : vector<64x32xf32>
    %46 = arith.divf %44, %45 : vector<64x32xf32>
    %c0_47 = arith.constant 0 : index
    %c1_48 = arith.constant 1 : index
    %c0_49 = arith.constant 0 : index
    %c0_50 = arith.constant 0 : index
    %47 = vector.load %arg6[%c0_47, %c1_48, %c0_49, %c0_50] : memref<3x3x32x32xbf16, #tpu.memory_space<vmem>>, vector<1x1x32x32xbf16>
    %48 = vector.shape_cast %47 : vector<1x1x32x32xbf16> to vector<32x32xbf16>
    %cst_51 = arith.constant dense<0.000000e+00> : vector<64x32xf32>
    %49 = tpu.matmul %26, %48, %cst_51 {dimension_numbers = #tpu.dot_dimension_numbers<[1], [0], [0], [1], [0, 0, 1, 1], [], []>} : vector<64x32xbf16>, vector<32x32xbf16>, vector<64x32xf32> -> vector<64x32xf32>
    %c0_52 = arith.constant 0 : index
    %c1_53 = arith.constant 1 : index
    %c0_54 = arith.constant 0 : index
    %c0_55 = arith.constant 0 : index
    %50 = vector.load %arg7[%c0_52, %c1_53, %c0_54, %c0_55] : memref<3x3x1x32xf32, #tpu.memory_space<vmem>>, vector<1x1x1x32xf32>
    %51 = vector.shape_cast %50 : vector<1x1x1x32xf32> to vector<1x32xf32>
    %52 = vector.broadcast %51 : vector<1x32xf32> to vector<64x32xf32>
    %53 = arith.addf %49, %52 : vector<64x32xf32>
    %c0_56 = arith.constant 0 : index
    %c1_57 = arith.constant 1 : index
    %c0_58 = arith.constant 0 : index
    %c0_59 = arith.constant 0 : index
    %54 = vector.load %arg8[%c0_56, %c1_57, %c0_58, %c0_59] : memref<3x3x32x32xbf16, #tpu.memory_space<vmem>>, vector<1x1x32x32xbf16>
    %55 = vector.shape_cast %54 : vector<1x1x32x32xbf16> to vector<32x32xbf16>
    %cst_60 = arith.constant dense<0.000000e+00> : vector<64x32xf32>
    %56 = tpu.matmul %2, %55, %cst_60 {dimension_numbers = #tpu.dot_dimension_numbers<[1], [0], [0], [1], [0, 0, 1, 1], [], []>} : vector<64x32xbf16>, vector<32x32xbf16>, vector<64x32xf32> -> vector<64x32xf32>
    %c0_61 = arith.constant 0 : index
    %c1_62 = arith.constant 1 : index
    %c0_63 = arith.constant 0 : index
    %c0_64 = arith.constant 0 : index
    %57 = vector.load %arg9[%c0_61, %c1_62, %c0_63, %c0_64] : memref<3x3x1x32xf32, #tpu.memory_space<vmem>>, vector<1x1x1x32xf32>
    %58 = vector.shape_cast %57 : vector<1x1x1x32xf32> to vector<1x32xf32>
    %59 = vector.broadcast %58 : vector<1x32xf32> to vector<64x32xf32>
    %60 = arith.addf %56, %59 : vector<64x32xf32>
    %61 = arith.addf %53, %60 : vector<64x32xf32>
    %62 = arith.negf %61 : vector<64x32xf32>
    %63 = math.exp %62 : vector<64x32xf32>
    %cst_65 = arith.constant 1.000000e+00 : f32
    %64 = vector.broadcast %cst_65 : f32 to vector<64x32xf32>
    %65 = arith.addf %64, %63 : vector<64x32xf32>
    %66 = arith.divf %64, %65 : vector<64x32xf32>
    %c0_66 = arith.constant 0 : index
    %c2 = arith.constant 2 : index
    %c0_67 = arith.constant 0 : index
    %c0_68 = arith.constant 0 : index
    %67 = vector.load %arg6[%c0_66, %c2, %c0_67, %c0_68] : memref<3x3x32x32xbf16, #tpu.memory_space<vmem>>, vector<1x1x32x32xbf16>
    %68 = vector.shape_cast %67 : vector<1x1x32x32xbf16> to vector<32x32xbf16>
    %cst_69 = arith.constant dense<0.000000e+00> : vector<64x32xf32>
    %69 = tpu.matmul %26, %68, %cst_69 {dimension_numbers = #tpu.dot_dimension_numbers<[1], [0], [0], [1], [0, 0, 1, 1], [], []>} : vector<64x32xbf16>, vector<32x32xbf16>, vector<64x32xf32> -> vector<64x32xf32>
    %c0_70 = arith.constant 0 : index
    %c2_71 = arith.constant 2 : index
    %c0_72 = arith.constant 0 : index
    %c0_73 = arith.constant 0 : index
    %70 = vector.load %arg7[%c0_70, %c2_71, %c0_72, %c0_73] : memref<3x3x1x32xf32, #tpu.memory_space<vmem>>, vector<1x1x1x32xf32>
    %71 = vector.shape_cast %70 : vector<1x1x1x32xf32> to vector<1x32xf32>
    %72 = vector.broadcast %71 : vector<1x32xf32> to vector<64x32xf32>
    %73 = arith.addf %69, %72 : vector<64x32xf32>
    %c0_74 = arith.constant 0 : index
    %c2_75 = arith.constant 2 : index
    %c0_76 = arith.constant 0 : index
    %c0_77 = arith.constant 0 : index
    %74 = vector.load %arg8[%c0_74, %c2_75, %c0_76, %c0_77] : memref<3x3x32x32xbf16, #tpu.memory_space<vmem>>, vector<1x1x32x32xbf16>
    %75 = vector.shape_cast %74 : vector<1x1x32x32xbf16> to vector<32x32xbf16>
    %cst_78 = arith.constant dense<0.000000e+00> : vector<64x32xf32>
    %76 = tpu.matmul %2, %75, %cst_78 {dimension_numbers = #tpu.dot_dimension_numbers<[1], [0], [0], [1], [0, 0, 1, 1], [], []>} : vector<64x32xbf16>, vector<32x32xbf16>, vector<64x32xf32> -> vector<64x32xf32>
    %c0_79 = arith.constant 0 : index
    %c2_80 = arith.constant 2 : index
    %c0_81 = arith.constant 0 : index
    %c0_82 = arith.constant 0 : index
    %77 = vector.load %arg9[%c0_79, %c2_80, %c0_81, %c0_82] : memref<3x3x1x32xf32, #tpu.memory_space<vmem>>, vector<1x1x1x32xf32>
    %78 = vector.shape_cast %77 : vector<1x1x1x32xf32> to vector<1x32xf32>
    %79 = vector.broadcast %78 : vector<1x32xf32> to vector<64x32xf32>
    %80 = arith.addf %76, %79 : vector<64x32xf32>
    %81 = arith.mulf %46, %80 : vector<64x32xf32>
    %82 = arith.addf %73, %81 : vector<64x32xf32>
    %83 = math.tanh %82 : vector<64x32xf32>
    %cst_83 = arith.constant 1.000000e+00 : f32
    %84 = vector.broadcast %cst_83 : f32 to vector<64x32xf32>
    %85 = arith.subf %84, %66 : vector<64x32xf32>
    %86 = arith.mulf %85, %83 : vector<64x32xf32>
    %87 = arith.mulf %66, %1 : vector<64x32xf32>
    %88 = arith.addf %86, %87 : vector<64x32xf32>
    %89 = arith.truncf %88 : vector<64x32xf32> to vector<64x32xbf16>
    %c1_84 = arith.constant 1 : index
    %c0_85 = arith.constant 0 : index
    %c0_86 = arith.constant 0 : index
    %c0_87 = arith.constant 0 : index
    %90 = vector.load %arg4[%c1_84, %c0_85, %c0_86, %c0_87] : memref<3x2x32x32xbf16, #tpu.memory_space<vmem>>, vector<1x1x32x32xbf16>
    %91 = vector.shape_cast %90 : vector<1x1x32x32xbf16> to vector<32x32xbf16>
    %cst_88 = arith.constant dense<0.000000e+00> : vector<64x32xf32>
    %92 = tpu.matmul %89, %91, %cst_88 {dimension_numbers = #tpu.dot_dimension_numbers<[1], [0], [0], [1], [0, 0, 1, 1], [], []>} : vector<64x32xbf16>, vector<32x32xbf16>, vector<64x32xf32> -> vector<64x32xf32>
    %c1_89 = arith.constant 1 : index
    %c0_90 = arith.constant 0 : index
    %c0_91 = arith.constant 0 : index
    %c0_92 = arith.constant 0 : index
    %93 = vector.load %arg5[%c1_89, %c0_90, %c0_91, %c0_92] : memref<3x2x1x32xf32, #tpu.memory_space<vmem>>, vector<1x1x1x32xf32>
    %94 = vector.shape_cast %93 : vector<1x1x1x32xf32> to vector<1x32xf32>
    %95 = vector.broadcast %94 : vector<1x32xf32> to vector<64x32xf32>
    %96 = arith.addf %92, %95 : vector<64x32xf32>
    %c0_93 = arith.constant 0 : index
    %c0_94 = arith.constant 0 : index
    %c0_95 = arith.constant 0 : index
    %c0_96 = arith.constant 0 : index
    %97 = vector.load %arg1[%c0_93, %c0_94, %c0_95, %c0_96] : memref<1x2x64x64xbf16, #tpu.memory_space<vmem>>, vector<1x1x64x64xbf16>
    %98 = vector.shape_cast %97 : vector<1x1x64x64xbf16> to vector<64x64xbf16>
    %99 = arith.truncf %96 : vector<64x32xf32> to vector<64x32xbf16>
    %cst_97 = arith.constant dense<0.000000e+00> : vector<64x32xf32>
    %100 = tpu.matmul %98, %99, %cst_97 {dimension_numbers = #tpu.dot_dimension_numbers<[1], [0], [0], [1], [0, 0, 1, 1], [], []>} : vector<64x64xbf16>, vector<64x32xbf16>, vector<64x32xf32> -> vector<64x32xf32>
    %c1_98 = arith.constant 1 : index
    %c1_99 = arith.constant 1 : index
    %c0_100 = arith.constant 0 : index
    %c0_101 = arith.constant 0 : index
    %101 = vector.load %arg4[%c1_98, %c1_99, %c0_100, %c0_101] : memref<3x2x32x32xbf16, #tpu.memory_space<vmem>>, vector<1x1x32x32xbf16>
    %102 = vector.shape_cast %101 : vector<1x1x32x32xbf16> to vector<32x32xbf16>
    %cst_102 = arith.constant dense<0.000000e+00> : vector<64x32xf32>
    %103 = tpu.matmul %89, %102, %cst_102 {dimension_numbers = #tpu.dot_dimension_numbers<[1], [0], [0], [1], [0, 0, 1, 1], [], []>} : vector<64x32xbf16>, vector<32x32xbf16>, vector<64x32xf32> -> vector<64x32xf32>
    %c1_103 = arith.constant 1 : index
    %c1_104 = arith.constant 1 : index
    %c0_105 = arith.constant 0 : index
    %c0_106 = arith.constant 0 : index
    %104 = vector.load %arg5[%c1_103, %c1_104, %c0_105, %c0_106] : memref<3x2x1x32xf32, #tpu.memory_space<vmem>>, vector<1x1x1x32xf32>
    %105 = vector.shape_cast %104 : vector<1x1x1x32xf32> to vector<1x32xf32>
    %106 = vector.broadcast %105 : vector<1x32xf32> to vector<64x32xf32>
    %107 = arith.addf %103, %106 : vector<64x32xf32>
    %c0_107 = arith.constant 0 : index
    %c1_108 = arith.constant 1 : index
    %c0_109 = arith.constant 0 : index
    %c0_110 = arith.constant 0 : index
    %108 = vector.load %arg1[%c0_107, %c1_108, %c0_109, %c0_110] : memref<1x2x64x64xbf16, #tpu.memory_space<vmem>>, vector<1x1x64x64xbf16>
    %109 = vector.shape_cast %108 : vector<1x1x64x64xbf16> to vector<64x64xbf16>
    %110 = arith.truncf %107 : vector<64x32xf32> to vector<64x32xbf16>
    %cst_111 = arith.constant dense<0.000000e+00> : vector<64x32xf32>
    %111 = tpu.matmul %109, %110, %cst_111 {dimension_numbers = #tpu.dot_dimension_numbers<[1], [0], [0], [1], [0, 0, 1, 1], [], []>} : vector<64x64xbf16>, vector<64x32xbf16>, vector<64x32xf32> -> vector<64x32xf32>
    %112 = arith.addf %100, %111 : vector<64x32xf32>
    %113 = arith.truncf %112 : vector<64x32xf32> to vector<64x32xbf16>
    %c1_112 = arith.constant 1 : index
    %c0_113 = arith.constant 0 : index
    %c0_114 = arith.constant 0 : index
    %c0_115 = arith.constant 0 : index
    %114 = vector.load %arg6[%c1_112, %c0_113, %c0_114, %c0_115] : memref<3x3x32x32xbf16, #tpu.memory_space<vmem>>, vector<1x1x32x32xbf16>
    %115 = vector.shape_cast %114 : vector<1x1x32x32xbf16> to vector<32x32xbf16>
    %cst_116 = arith.constant dense<0.000000e+00> : vector<64x32xf32>
    %116 = tpu.matmul %113, %115, %cst_116 {dimension_numbers = #tpu.dot_dimension_numbers<[1], [0], [0], [1], [0, 0, 1, 1], [], []>} : vector<64x32xbf16>, vector<32x32xbf16>, vector<64x32xf32> -> vector<64x32xf32>
    %c1_117 = arith.constant 1 : index
    %c0_118 = arith.constant 0 : index
    %c0_119 = arith.constant 0 : index
    %c0_120 = arith.constant 0 : index
    %117 = vector.load %arg7[%c1_117, %c0_118, %c0_119, %c0_120] : memref<3x3x1x32xf32, #tpu.memory_space<vmem>>, vector<1x1x1x32xf32>
    %118 = vector.shape_cast %117 : vector<1x1x1x32xf32> to vector<1x32xf32>
    %119 = vector.broadcast %118 : vector<1x32xf32> to vector<64x32xf32>
    %120 = arith.addf %116, %119 : vector<64x32xf32>
    %c1_121 = arith.constant 1 : index
    %c0_122 = arith.constant 0 : index
    %c0_123 = arith.constant 0 : index
    %c0_124 = arith.constant 0 : index
    %121 = vector.load %arg8[%c1_121, %c0_122, %c0_123, %c0_124] : memref<3x3x32x32xbf16, #tpu.memory_space<vmem>>, vector<1x1x32x32xbf16>
    %122 = vector.shape_cast %121 : vector<1x1x32x32xbf16> to vector<32x32xbf16>
    %cst_125 = arith.constant dense<0.000000e+00> : vector<64x32xf32>
    %123 = tpu.matmul %89, %122, %cst_125 {dimension_numbers = #tpu.dot_dimension_numbers<[1], [0], [0], [1], [0, 0, 1, 1], [], []>} : vector<64x32xbf16>, vector<32x32xbf16>, vector<64x32xf32> -> vector<64x32xf32>
    %c1_126 = arith.constant 1 : index
    %c0_127 = arith.constant 0 : index
    %c0_128 = arith.constant 0 : index
    %c0_129 = arith.constant 0 : index
    %124 = vector.load %arg9[%c1_126, %c0_127, %c0_128, %c0_129] : memref<3x3x1x32xf32, #tpu.memory_space<vmem>>, vector<1x1x1x32xf32>
    %125 = vector.shape_cast %124 : vector<1x1x1x32xf32> to vector<1x32xf32>
    %126 = vector.broadcast %125 : vector<1x32xf32> to vector<64x32xf32>
    %127 = arith.addf %123, %126 : vector<64x32xf32>
    %128 = arith.addf %120, %127 : vector<64x32xf32>
    %129 = arith.negf %128 : vector<64x32xf32>
    %130 = math.exp %129 : vector<64x32xf32>
    %cst_130 = arith.constant 1.000000e+00 : f32
    %131 = vector.broadcast %cst_130 : f32 to vector<64x32xf32>
    %132 = arith.addf %131, %130 : vector<64x32xf32>
    %133 = arith.divf %131, %132 : vector<64x32xf32>
    %c1_131 = arith.constant 1 : index
    %c1_132 = arith.constant 1 : index
    %c0_133 = arith.constant 0 : index
    %c0_134 = arith.constant 0 : index
    %134 = vector.load %arg6[%c1_131, %c1_132, %c0_133, %c0_134] : memref<3x3x32x32xbf16, #tpu.memory_space<vmem>>, vector<1x1x32x32xbf16>
    %135 = vector.shape_cast %134 : vector<1x1x32x32xbf16> to vector<32x32xbf16>
    %cst_135 = arith.constant dense<0.000000e+00> : vector<64x32xf32>
    %136 = tpu.matmul %113, %135, %cst_135 {dimension_numbers = #tpu.dot_dimension_numbers<[1], [0], [0], [1], [0, 0, 1, 1], [], []>} : vector<64x32xbf16>, vector<32x32xbf16>, vector<64x32xf32> -> vector<64x32xf32>
    %c1_136 = arith.constant 1 : index
    %c1_137 = arith.constant 1 : index
    %c0_138 = arith.constant 0 : index
    %c0_139 = arith.constant 0 : index
    %137 = vector.load %arg7[%c1_136, %c1_137, %c0_138, %c0_139] : memref<3x3x1x32xf32, #tpu.memory_space<vmem>>, vector<1x1x1x32xf32>
    %138 = vector.shape_cast %137 : vector<1x1x1x32xf32> to vector<1x32xf32>
    %139 = vector.broadcast %138 : vector<1x32xf32> to vector<64x32xf32>
    %140 = arith.addf %136, %139 : vector<64x32xf32>
    %c1_140 = arith.constant 1 : index
    %c1_141 = arith.constant 1 : index
    %c0_142 = arith.constant 0 : index
    %c0_143 = arith.constant 0 : index
    %141 = vector.load %arg8[%c1_140, %c1_141, %c0_142, %c0_143] : memref<3x3x32x32xbf16, #tpu.memory_space<vmem>>, vector<1x1x32x32xbf16>
    %142 = vector.shape_cast %141 : vector<1x1x32x32xbf16> to vector<32x32xbf16>
    %cst_144 = arith.constant dense<0.000000e+00> : vector<64x32xf32>
    %143 = tpu.matmul %89, %142, %cst_144 {dimension_numbers = #tpu.dot_dimension_numbers<[1], [0], [0], [1], [0, 0, 1, 1], [], []>} : vector<64x32xbf16>, vector<32x32xbf16>, vector<64x32xf32> -> vector<64x32xf32>
    %c1_145 = arith.constant 1 : index
    %c1_146 = arith.constant 1 : index
    %c0_147 = arith.constant 0 : index
    %c0_148 = arith.constant 0 : index
    %144 = vector.load %arg9[%c1_145, %c1_146, %c0_147, %c0_148] : memref<3x3x1x32xf32, #tpu.memory_space<vmem>>, vector<1x1x1x32xf32>
    %145 = vector.shape_cast %144 : vector<1x1x1x32xf32> to vector<1x32xf32>
    %146 = vector.broadcast %145 : vector<1x32xf32> to vector<64x32xf32>
    %147 = arith.addf %143, %146 : vector<64x32xf32>
    %148 = arith.addf %140, %147 : vector<64x32xf32>
    %149 = arith.negf %148 : vector<64x32xf32>
    %150 = math.exp %149 : vector<64x32xf32>
    %cst_149 = arith.constant 1.000000e+00 : f32
    %151 = vector.broadcast %cst_149 : f32 to vector<64x32xf32>
    %152 = arith.addf %151, %150 : vector<64x32xf32>
    %153 = arith.divf %151, %152 : vector<64x32xf32>
    %c1_150 = arith.constant 1 : index
    %c2_151 = arith.constant 2 : index
    %c0_152 = arith.constant 0 : index
    %c0_153 = arith.constant 0 : index
    %154 = vector.load %arg6[%c1_150, %c2_151, %c0_152, %c0_153] : memref<3x3x32x32xbf16, #tpu.memory_space<vmem>>, vector<1x1x32x32xbf16>
    %155 = vector.shape_cast %154 : vector<1x1x32x32xbf16> to vector<32x32xbf16>
    %cst_154 = arith.constant dense<0.000000e+00> : vector<64x32xf32>
    %156 = tpu.matmul %113, %155, %cst_154 {dimension_numbers = #tpu.dot_dimension_numbers<[1], [0], [0], [1], [0, 0, 1, 1], [], []>} : vector<64x32xbf16>, vector<32x32xbf16>, vector<64x32xf32> -> vector<64x32xf32>
    %c1_155 = arith.constant 1 : index
    %c2_156 = arith.constant 2 : index
    %c0_157 = arith.constant 0 : index
    %c0_158 = arith.constant 0 : index
    %157 = vector.load %arg7[%c1_155, %c2_156, %c0_157, %c0_158] : memref<3x3x1x32xf32, #tpu.memory_space<vmem>>, vector<1x1x1x32xf32>
    %158 = vector.shape_cast %157 : vector<1x1x1x32xf32> to vector<1x32xf32>
    %159 = vector.broadcast %158 : vector<1x32xf32> to vector<64x32xf32>
    %160 = arith.addf %156, %159 : vector<64x32xf32>
    %c1_159 = arith.constant 1 : index
    %c2_160 = arith.constant 2 : index
    %c0_161 = arith.constant 0 : index
    %c0_162 = arith.constant 0 : index
    %161 = vector.load %arg8[%c1_159, %c2_160, %c0_161, %c0_162] : memref<3x3x32x32xbf16, #tpu.memory_space<vmem>>, vector<1x1x32x32xbf16>
    %162 = vector.shape_cast %161 : vector<1x1x32x32xbf16> to vector<32x32xbf16>
    %cst_163 = arith.constant dense<0.000000e+00> : vector<64x32xf32>
    %163 = tpu.matmul %89, %162, %cst_163 {dimension_numbers = #tpu.dot_dimension_numbers<[1], [0], [0], [1], [0, 0, 1, 1], [], []>} : vector<64x32xbf16>, vector<32x32xbf16>, vector<64x32xf32> -> vector<64x32xf32>
    %c1_164 = arith.constant 1 : index
    %c2_165 = arith.constant 2 : index
    %c0_166 = arith.constant 0 : index
    %c0_167 = arith.constant 0 : index
    %164 = vector.load %arg9[%c1_164, %c2_165, %c0_166, %c0_167] : memref<3x3x1x32xf32, #tpu.memory_space<vmem>>, vector<1x1x1x32xf32>
    %165 = vector.shape_cast %164 : vector<1x1x1x32xf32> to vector<1x32xf32>
    %166 = vector.broadcast %165 : vector<1x32xf32> to vector<64x32xf32>
    %167 = arith.addf %163, %166 : vector<64x32xf32>
    %168 = arith.mulf %133, %167 : vector<64x32xf32>
    %169 = arith.addf %160, %168 : vector<64x32xf32>
    %170 = math.tanh %169 : vector<64x32xf32>
    %cst_168 = arith.constant 1.000000e+00 : f32
    %171 = vector.broadcast %cst_168 : f32 to vector<64x32xf32>
    %172 = arith.subf %171, %153 : vector<64x32xf32>
    %173 = arith.mulf %172, %170 : vector<64x32xf32>
    %174 = arith.mulf %153, %88 : vector<64x32xf32>
    %175 = arith.addf %173, %174 : vector<64x32xf32>
    %176 = arith.truncf %175 : vector<64x32xf32> to vector<64x32xbf16>
    %c2_169 = arith.constant 2 : index
    %c0_170 = arith.constant 0 : index
    %c0_171 = arith.constant 0 : index
    %c0_172 = arith.constant 0 : index
    %177 = vector.load %arg4[%c2_169, %c0_170, %c0_171, %c0_172] : memref<3x2x32x32xbf16, #tpu.memory_space<vmem>>, vector<1x1x32x32xbf16>
    %178 = vector.shape_cast %177 : vector<1x1x32x32xbf16> to vector<32x32xbf16>
    %cst_173 = arith.constant dense<0.000000e+00> : vector<64x32xf32>
    %179 = tpu.matmul %176, %178, %cst_173 {dimension_numbers = #tpu.dot_dimension_numbers<[1], [0], [0], [1], [0, 0, 1, 1], [], []>} : vector<64x32xbf16>, vector<32x32xbf16>, vector<64x32xf32> -> vector<64x32xf32>
    %c2_174 = arith.constant 2 : index
    %c0_175 = arith.constant 0 : index
    %c0_176 = arith.constant 0 : index
    %c0_177 = arith.constant 0 : index
    %180 = vector.load %arg5[%c2_174, %c0_175, %c0_176, %c0_177] : memref<3x2x1x32xf32, #tpu.memory_space<vmem>>, vector<1x1x1x32xf32>
    %181 = vector.shape_cast %180 : vector<1x1x1x32xf32> to vector<1x32xf32>
    %182 = vector.broadcast %181 : vector<1x32xf32> to vector<64x32xf32>
    %183 = arith.addf %179, %182 : vector<64x32xf32>
    %c0_178 = arith.constant 0 : index
    %c0_179 = arith.constant 0 : index
    %c0_180 = arith.constant 0 : index
    %c0_181 = arith.constant 0 : index
    %184 = vector.load %arg1[%c0_178, %c0_179, %c0_180, %c0_181] : memref<1x2x64x64xbf16, #tpu.memory_space<vmem>>, vector<1x1x64x64xbf16>
    %185 = vector.shape_cast %184 : vector<1x1x64x64xbf16> to vector<64x64xbf16>
    %186 = arith.truncf %183 : vector<64x32xf32> to vector<64x32xbf16>
    %cst_182 = arith.constant dense<0.000000e+00> : vector<64x32xf32>
    %187 = tpu.matmul %185, %186, %cst_182 {dimension_numbers = #tpu.dot_dimension_numbers<[1], [0], [0], [1], [0, 0, 1, 1], [], []>} : vector<64x64xbf16>, vector<64x32xbf16>, vector<64x32xf32> -> vector<64x32xf32>
    %c2_183 = arith.constant 2 : index
    %c1_184 = arith.constant 1 : index
    %c0_185 = arith.constant 0 : index
    %c0_186 = arith.constant 0 : index
    %188 = vector.load %arg4[%c2_183, %c1_184, %c0_185, %c0_186] : memref<3x2x32x32xbf16, #tpu.memory_space<vmem>>, vector<1x1x32x32xbf16>
    %189 = vector.shape_cast %188 : vector<1x1x32x32xbf16> to vector<32x32xbf16>
    %cst_187 = arith.constant dense<0.000000e+00> : vector<64x32xf32>
    %190 = tpu.matmul %176, %189, %cst_187 {dimension_numbers = #tpu.dot_dimension_numbers<[1], [0], [0], [1], [0, 0, 1, 1], [], []>} : vector<64x32xbf16>, vector<32x32xbf16>, vector<64x32xf32> -> vector<64x32xf32>
    %c2_188 = arith.constant 2 : index
    %c1_189 = arith.constant 1 : index
    %c0_190 = arith.constant 0 : index
    %c0_191 = arith.constant 0 : index
    %191 = vector.load %arg5[%c2_188, %c1_189, %c0_190, %c0_191] : memref<3x2x1x32xf32, #tpu.memory_space<vmem>>, vector<1x1x1x32xf32>
    %192 = vector.shape_cast %191 : vector<1x1x1x32xf32> to vector<1x32xf32>
    %193 = vector.broadcast %192 : vector<1x32xf32> to vector<64x32xf32>
    %194 = arith.addf %190, %193 : vector<64x32xf32>
    %c0_192 = arith.constant 0 : index
    %c1_193 = arith.constant 1 : index
    %c0_194 = arith.constant 0 : index
    %c0_195 = arith.constant 0 : index
    %195 = vector.load %arg1[%c0_192, %c1_193, %c0_194, %c0_195] : memref<1x2x64x64xbf16, #tpu.memory_space<vmem>>, vector<1x1x64x64xbf16>
    %196 = vector.shape_cast %195 : vector<1x1x64x64xbf16> to vector<64x64xbf16>
    %197 = arith.truncf %194 : vector<64x32xf32> to vector<64x32xbf16>
    %cst_196 = arith.constant dense<0.000000e+00> : vector<64x32xf32>
    %198 = tpu.matmul %196, %197, %cst_196 {dimension_numbers = #tpu.dot_dimension_numbers<[1], [0], [0], [1], [0, 0, 1, 1], [], []>} : vector<64x64xbf16>, vector<64x32xbf16>, vector<64x32xf32> -> vector<64x32xf32>
    %199 = arith.addf %187, %198 : vector<64x32xf32>
    %200 = arith.truncf %199 : vector<64x32xf32> to vector<64x32xbf16>
    %c2_197 = arith.constant 2 : index
    %c0_198 = arith.constant 0 : index
    %c0_199 = arith.constant 0 : index
    %c0_200 = arith.constant 0 : index
    %201 = vector.load %arg6[%c2_197, %c0_198, %c0_199, %c0_200] : memref<3x3x32x32xbf16, #tpu.memory_space<vmem>>, vector<1x1x32x32xbf16>
    %202 = vector.shape_cast %201 : vector<1x1x32x32xbf16> to vector<32x32xbf16>
    %cst_201 = arith.constant dense<0.000000e+00> : vector<64x32xf32>
    %203 = tpu.matmul %200, %202, %cst_201 {dimension_numbers = #tpu.dot_dimension_numbers<[1], [0], [0], [1], [0, 0, 1, 1], [], []>} : vector<64x32xbf16>, vector<32x32xbf16>, vector<64x32xf32> -> vector<64x32xf32>
    %c2_202 = arith.constant 2 : index
    %c0_203 = arith.constant 0 : index
    %c0_204 = arith.constant 0 : index
    %c0_205 = arith.constant 0 : index
    %204 = vector.load %arg7[%c2_202, %c0_203, %c0_204, %c0_205] : memref<3x3x1x32xf32, #tpu.memory_space<vmem>>, vector<1x1x1x32xf32>
    %205 = vector.shape_cast %204 : vector<1x1x1x32xf32> to vector<1x32xf32>
    %206 = vector.broadcast %205 : vector<1x32xf32> to vector<64x32xf32>
    %207 = arith.addf %203, %206 : vector<64x32xf32>
    %c2_206 = arith.constant 2 : index
    %c0_207 = arith.constant 0 : index
    %c0_208 = arith.constant 0 : index
    %c0_209 = arith.constant 0 : index
    %208 = vector.load %arg8[%c2_206, %c0_207, %c0_208, %c0_209] : memref<3x3x32x32xbf16, #tpu.memory_space<vmem>>, vector<1x1x32x32xbf16>
    %209 = vector.shape_cast %208 : vector<1x1x32x32xbf16> to vector<32x32xbf16>
    %cst_210 = arith.constant dense<0.000000e+00> : vector<64x32xf32>
    %210 = tpu.matmul %176, %209, %cst_210 {dimension_numbers = #tpu.dot_dimension_numbers<[1], [0], [0], [1], [0, 0, 1, 1], [], []>} : vector<64x32xbf16>, vector<32x32xbf16>, vector<64x32xf32> -> vector<64x32xf32>
    %c2_211 = arith.constant 2 : index
    %c0_212 = arith.constant 0 : index
    %c0_213 = arith.constant 0 : index
    %c0_214 = arith.constant 0 : index
    %211 = vector.load %arg9[%c2_211, %c0_212, %c0_213, %c0_214] : memref<3x3x1x32xf32, #tpu.memory_space<vmem>>, vector<1x1x1x32xf32>
    %212 = vector.shape_cast %211 : vector<1x1x1x32xf32> to vector<1x32xf32>
    %213 = vector.broadcast %212 : vector<1x32xf32> to vector<64x32xf32>
    %214 = arith.addf %210, %213 : vector<64x32xf32>
    %215 = arith.addf %207, %214 : vector<64x32xf32>
    %216 = arith.negf %215 : vector<64x32xf32>
    %217 = math.exp %216 : vector<64x32xf32>
    %cst_215 = arith.constant 1.000000e+00 : f32
    %218 = vector.broadcast %cst_215 : f32 to vector<64x32xf32>
    %219 = arith.addf %218, %217 : vector<64x32xf32>
    %220 = arith.divf %218, %219 : vector<64x32xf32>
    %c2_216 = arith.constant 2 : index
    %c1_217 = arith.constant 1 : index
    %c0_218 = arith.constant 0 : index
    %c0_219 = arith.constant 0 : index
    %221 = vector.load %arg6[%c2_216, %c1_217, %c0_218, %c0_219] : memref<3x3x32x32xbf16, #tpu.memory_space<vmem>>, vector<1x1x32x32xbf16>
    %222 = vector.shape_cast %221 : vector<1x1x32x32xbf16> to vector<32x32xbf16>
    %cst_220 = arith.constant dense<0.000000e+00> : vector<64x32xf32>
    %223 = tpu.matmul %200, %222, %cst_220 {dimension_numbers = #tpu.dot_dimension_numbers<[1], [0], [0], [1], [0, 0, 1, 1], [], []>} : vector<64x32xbf16>, vector<32x32xbf16>, vector<64x32xf32> -> vector<64x32xf32>
    %c2_221 = arith.constant 2 : index
    %c1_222 = arith.constant 1 : index
    %c0_223 = arith.constant 0 : index
    %c0_224 = arith.constant 0 : index
    %224 = vector.load %arg7[%c2_221, %c1_222, %c0_223, %c0_224] : memref<3x3x1x32xf32, #tpu.memory_space<vmem>>, vector<1x1x1x32xf32>
    %225 = vector.shape_cast %224 : vector<1x1x1x32xf32> to vector<1x32xf32>
    %226 = vector.broadcast %225 : vector<1x32xf32> to vector<64x32xf32>
    %227 = arith.addf %223, %226 : vector<64x32xf32>
    %c2_225 = arith.constant 2 : index
    %c1_226 = arith.constant 1 : index
    %c0_227 = arith.constant 0 : index
    %c0_228 = arith.constant 0 : index
    %228 = vector.load %arg8[%c2_225, %c1_226, %c0_227, %c0_228] : memref<3x3x32x32xbf16, #tpu.memory_space<vmem>>, vector<1x1x32x32xbf16>
    %229 = vector.shape_cast %228 : vector<1x1x32x32xbf16> to vector<32x32xbf16>
    %cst_229 = arith.constant dense<0.000000e+00> : vector<64x32xf32>
    %230 = tpu.matmul %176, %229, %cst_229 {dimension_numbers = #tpu.dot_dimension_numbers<[1], [0], [0], [1], [0, 0, 1, 1], [], []>} : vector<64x32xbf16>, vector<32x32xbf16>, vector<64x32xf32> -> vector<64x32xf32>
    %c2_230 = arith.constant 2 : index
    %c1_231 = arith.constant 1 : index
    %c0_232 = arith.constant 0 : index
    %c0_233 = arith.constant 0 : index
    %231 = vector.load %arg9[%c2_230, %c1_231, %c0_232, %c0_233] : memref<3x3x1x32xf32, #tpu.memory_space<vmem>>, vector<1x1x1x32xf32>
    %232 = vector.shape_cast %231 : vector<1x1x1x32xf32> to vector<1x32xf32>
    %233 = vector.broadcast %232 : vector<1x32xf32> to vector<64x32xf32>
    %234 = arith.addf %230, %233 : vector<64x32xf32>
    %235 = arith.addf %227, %234 : vector<64x32xf32>
    %236 = arith.negf %235 : vector<64x32xf32>
    %237 = math.exp %236 : vector<64x32xf32>
    %cst_234 = arith.constant 1.000000e+00 : f32
    %238 = vector.broadcast %cst_234 : f32 to vector<64x32xf32>
    %239 = arith.addf %238, %237 : vector<64x32xf32>
    %240 = arith.divf %238, %239 : vector<64x32xf32>
    %c2_235 = arith.constant 2 : index
    %c2_236 = arith.constant 2 : index
    %c0_237 = arith.constant 0 : index
    %c0_238 = arith.constant 0 : index
    %241 = vector.load %arg6[%c2_235, %c2_236, %c0_237, %c0_238] : memref<3x3x32x32xbf16, #tpu.memory_space<vmem>>, vector<1x1x32x32xbf16>
    %242 = vector.shape_cast %241 : vector<1x1x32x32xbf16> to vector<32x32xbf16>
    %cst_239 = arith.constant dense<0.000000e+00> : vector<64x32xf32>
    %243 = tpu.matmul %200, %242, %cst_239 {dimension_numbers = #tpu.dot_dimension_numbers<[1], [0], [0], [1], [0, 0, 1, 1], [], []>} : vector<64x32xbf16>, vector<32x32xbf16>, vector<64x32xf32> -> vector<64x32xf32>
    %c2_240 = arith.constant 2 : index
    %c2_241 = arith.constant 2 : index
    %c0_242 = arith.constant 0 : index
    %c0_243 = arith.constant 0 : index
    %244 = vector.load %arg7[%c2_240, %c2_241, %c0_242, %c0_243] : memref<3x3x1x32xf32, #tpu.memory_space<vmem>>, vector<1x1x1x32xf32>
    %245 = vector.shape_cast %244 : vector<1x1x1x32xf32> to vector<1x32xf32>
    %246 = vector.broadcast %245 : vector<1x32xf32> to vector<64x32xf32>
    %247 = arith.addf %243, %246 : vector<64x32xf32>
    %c2_244 = arith.constant 2 : index
    %c2_245 = arith.constant 2 : index
    %c0_246 = arith.constant 0 : index
    %c0_247 = arith.constant 0 : index
    %248 = vector.load %arg8[%c2_244, %c2_245, %c0_246, %c0_247] : memref<3x3x32x32xbf16, #tpu.memory_space<vmem>>, vector<1x1x32x32xbf16>
    %249 = vector.shape_cast %248 : vector<1x1x32x32xbf16> to vector<32x32xbf16>
    %cst_248 = arith.constant dense<0.000000e+00> : vector<64x32xf32>
    %250 = tpu.matmul %176, %249, %cst_248 {dimension_numbers = #tpu.dot_dimension_numbers<[1], [0], [0], [1], [0, 0, 1, 1], [], []>} : vector<64x32xbf16>, vector<32x32xbf16>, vector<64x32xf32> -> vector<64x32xf32>
    %c2_249 = arith.constant 2 : index
    %c2_250 = arith.constant 2 : index
    %c0_251 = arith.constant 0 : index
    %c0_252 = arith.constant 0 : index
    %251 = vector.load %arg9[%c2_249, %c2_250, %c0_251, %c0_252] : memref<3x3x1x32xf32, #tpu.memory_space<vmem>>, vector<1x1x1x32xf32>
    %252 = vector.shape_cast %251 : vector<1x1x1x32xf32> to vector<1x32xf32>
    %253 = vector.broadcast %252 : vector<1x32xf32> to vector<64x32xf32>
    %254 = arith.addf %250, %253 : vector<64x32xf32>
    %255 = arith.mulf %220, %254 : vector<64x32xf32>
    %256 = arith.addf %247, %255 : vector<64x32xf32>
    %257 = math.tanh %256 : vector<64x32xf32>
    %cst_253 = arith.constant 1.000000e+00 : f32
    %258 = vector.broadcast %cst_253 : f32 to vector<64x32xf32>
    %259 = arith.subf %258, %240 : vector<64x32xf32>
    %260 = arith.mulf %259, %257 : vector<64x32xf32>
    %261 = arith.mulf %240, %175 : vector<64x32xf32>
    %262 = arith.addf %260, %261 : vector<64x32xf32>
    %263 = tpu.iota {dimensions = array<i32: 1>} : vector<4x64xi32>
    %264 = tpu.iota {dimensions = array<i32: 0>} : vector<4x64xi32>
    %c16_i32 = arith.constant 16 : i32
    %265 = vector.broadcast %c16_i32 : i32 to vector<4x64xi32>
    %266 = arith.muli %264, %265 : vector<4x64xi32>
    %267 = arith.cmpi sge, %263, %266 : vector<4x64xi32>
    %c16_i32_254 = arith.constant 16 : i32
    %268 = vector.broadcast %c16_i32_254 : i32 to vector<4x64xi32>
    %269 = arith.addi %266, %268 : vector<4x64xi32>
    %270 = arith.cmpi slt, %263, %269 : vector<4x64xi32>
    %271 = arith.andi %267, %270 : vector<4x64xi1>
    %272 = arith.extui %271 : vector<4x64xi1> to vector<4x64xi32>
    %273 = arith.sitofp %272 : vector<4x64xi32> to vector<4x64xf32>
    %c0_255 = arith.constant 0 : index
    %c0_256 = arith.constant 0 : index
    %c0_257 = arith.constant 0 : index
    %274 = vector.load %arg3[%c0_255, %c0_256, %c0_257] : memref<1x64x1xf32, #tpu.memory_space<vmem>>, vector<1x64x1xf32>
    %275 = vector.shape_cast %274 : vector<1x64x1xf32> to vector<64x1xf32>
    %276 = vector.broadcast %275 : vector<64x1xf32> to vector<64x32xf32>
    %277 = arith.mulf %262, %276 : vector<64x32xf32>
    %cst_258 = arith.constant dense<0.000000e+00> : vector<4x32xf32>
    %278 = tpu.matmul %273, %277, %cst_258 {dimension_numbers = #tpu.dot_dimension_numbers<[1], [0], [0], [1], [0, 0, 1, 1], [], []>} : vector<4x64xf32>, vector<64x32xf32>, vector<4x32xf32> -> vector<4x32xf32>
    %c0_259 = arith.constant 0 : index
    %c0_260 = arith.constant 0 : index
    %279 = vector.load %arg10[%c0_259, %c0_260] : memref<32x64xf32, #tpu.memory_space<vmem>>, vector<32x64xf32>
    %c0_261 = arith.constant 0 : index
    %c0_262 = arith.constant 0 : index
    %280 = vector.load %arg11[%c0_261, %c0_262] : memref<1x64xf32, #tpu.memory_space<vmem>>, vector<1x64xf32>
    %cst_263 = arith.constant dense<0.000000e+00> : vector<4x64xf32>
    %281 = tpu.matmul %278, %279, %cst_263 {dimension_numbers = #tpu.dot_dimension_numbers<[1], [0], [0], [1], [0, 0, 1, 1], [], []>} : vector<4x32xf32>, vector<32x64xf32>, vector<4x64xf32> -> vector<4x64xf32>
    %282 = vector.broadcast %280 : vector<1x64xf32> to vector<4x64xf32>
    %283 = arith.addf %281, %282 : vector<4x64xf32>
    %284 = math.tanh %283 : vector<4x64xf32>
    %c0_264 = arith.constant 0 : index
    %c0_265 = arith.constant 0 : index
    %285 = vector.load %arg12[%c0_264, %c0_265] : memref<64x4xf32, #tpu.memory_space<vmem>>, vector<64x4xf32>
    %c0_266 = arith.constant 0 : index
    %c0_267 = arith.constant 0 : index
    %286 = vector.load %arg13[%c0_266, %c0_267] : memref<1x4xf32, #tpu.memory_space<vmem>>, vector<1x4xf32>
    %cst_268 = arith.constant dense<0.000000e+00> : vector<4x4xf32>
    %287 = tpu.matmul %284, %285, %cst_268 {dimension_numbers = #tpu.dot_dimension_numbers<[1], [0], [0], [1], [0, 0, 1, 1], [], []>} : vector<4x64xf32>, vector<64x4xf32>, vector<4x4xf32> -> vector<4x4xf32>
    %288 = vector.broadcast %286 : vector<1x4xf32> to vector<4x4xf32>
    %289 = arith.addf %287, %288 : vector<4x4xf32>
    %290 = vector.shape_cast %289 : vector<4x4xf32> to vector<1x4x4xf32>
    %c0_269 = arith.constant 0 : index
    %c0_270 = arith.constant 0 : index
    %c0_271 = arith.constant 0 : index
    %291 = vector.load %arg14[%c0_269, %c0_270, %c0_271] : memref<1x4x4xf32, #tpu.memory_space<vmem>>, vector<1x4x4xf32>
    tpu.vector_store %arg14[%c0_269, %c0_270, %c0_271], %290 {strides = array<i32>} : memref<1x4x4xf32, #tpu.memory_space<vmem>>, vector<1x4x4xf32>,
    return
  }
  func.func @transform_0(%arg0: i32) -> (i32, i32, i32, i32) {
    %c0_i32 = arith.constant 0 : i32
    %c0_i32_0 = arith.constant 0 : i32
    %c0_i32_1 = arith.constant 0 : i32
    %c0_i32_2 = arith.constant 0 : i32
    return %arg0, %c0_i32, %c0_i32_0, %c0_i32_1 : i32, i32, i32, i32
  }
  func.func @transform_1(%arg0: i32) -> (i32, i32, i32) {
    %c0_i32 = arith.constant 0 : i32
    %c0_i32_0 = arith.constant 0 : i32
    %c0_i32_1 = arith.constant 0 : i32
    return %arg0, %c0_i32, %c0_i32_0 : i32, i32, i32
  }
  func.func @transform_2(%arg0: i32) -> (i32, i32, i32) {
    %c0_i32 = arith.constant 0 : i32
    %c0_i32_0 = arith.constant 0 : i32
    %c0_i32_1 = arith.constant 0 : i32
    return %arg0, %c0_i32, %c0_i32_0 : i32, i32, i32
  }
  func.func @transform_3(%arg0: i32) -> (i32, i32, i32, i32) {
    %c0_i32 = arith.constant 0 : i32
    %c0_i32_0 = arith.constant 0 : i32
    %c0_i32_1 = arith.constant 0 : i32
    %c0_i32_2 = arith.constant 0 : i32
    %c0_i32_3 = arith.constant 0 : i32
    return %c0_i32, %c0_i32_0, %c0_i32_1, %c0_i32_2 : i32, i32, i32, i32
  }
  func.func @transform_4(%arg0: i32) -> (i32, i32, i32, i32) {
    %c0_i32 = arith.constant 0 : i32
    %c0_i32_0 = arith.constant 0 : i32
    %c0_i32_1 = arith.constant 0 : i32
    %c0_i32_2 = arith.constant 0 : i32
    %c0_i32_3 = arith.constant 0 : i32
    return %c0_i32, %c0_i32_0, %c0_i32_1, %c0_i32_2 : i32, i32, i32, i32
  }
  func.func @transform_5(%arg0: i32) -> (i32, i32, i32, i32) {
    %c0_i32 = arith.constant 0 : i32
    %c0_i32_0 = arith.constant 0 : i32
    %c0_i32_1 = arith.constant 0 : i32
    %c0_i32_2 = arith.constant 0 : i32
    %c0_i32_3 = arith.constant 0 : i32
    return %c0_i32, %c0_i32_0, %c0_i32_1, %c0_i32_2 : i32, i32, i32, i32
  }
  func.func @transform_6(%arg0: i32) -> (i32, i32, i32, i32) {
    %c0_i32 = arith.constant 0 : i32
    %c0_i32_0 = arith.constant 0 : i32
    %c0_i32_1 = arith.constant 0 : i32
    %c0_i32_2 = arith.constant 0 : i32
    %c0_i32_3 = arith.constant 0 : i32
    return %c0_i32, %c0_i32_0, %c0_i32_1, %c0_i32_2 : i32, i32, i32, i32
  }
  func.func @transform_7(%arg0: i32) -> (i32, i32, i32, i32) {
    %c0_i32 = arith.constant 0 : i32
    %c0_i32_0 = arith.constant 0 : i32
    %c0_i32_1 = arith.constant 0 : i32
    %c0_i32_2 = arith.constant 0 : i32
    %c0_i32_3 = arith.constant 0 : i32
    return %c0_i32, %c0_i32_0, %c0_i32_1, %c0_i32_2 : i32, i32, i32, i32
  }
  func.func @transform_8(%arg0: i32) -> (i32, i32, i32, i32) {
    %c0_i32 = arith.constant 0 : i32
    %c0_i32_0 = arith.constant 0 : i32
    %c0_i32_1 = arith.constant 0 : i32
    %c0_i32_2 = arith.constant 0 : i32
    %c0_i32_3 = arith.constant 0 : i32
    return %c0_i32, %c0_i32_0, %c0_i32_1, %c0_i32_2 : i32, i32, i32, i32
  }
  func.func @transform_9(%arg0: i32) -> (i32, i32) {
    %c0_i32 = arith.constant 0 : i32
    %c0_i32_0 = arith.constant 0 : i32
    %c0_i32_1 = arith.constant 0 : i32
    return %c0_i32, %c0_i32_0 : i32, i32
  }
  func.func @transform_10(%arg0: i32) -> (i32, i32) {
    %c0_i32 = arith.constant 0 : i32
    %c0_i32_0 = arith.constant 0 : i32
    %c0_i32_1 = arith.constant 0 : i32
    return %c0_i32, %c0_i32_0 : i32, i32
  }
  func.func @transform_11(%arg0: i32) -> (i32, i32) {
    %c0_i32 = arith.constant 0 : i32
    %c0_i32_0 = arith.constant 0 : i32
    %c0_i32_1 = arith.constant 0 : i32
    return %c0_i32, %c0_i32_0 : i32, i32
  }
  func.func @transform_12(%arg0: i32) -> (i32, i32) {
    %c0_i32 = arith.constant 0 : i32
    %c0_i32_0 = arith.constant 0 : i32
    %c0_i32_1 = arith.constant 0 : i32
    return %c0_i32, %c0_i32_0 : i32, i32
  }
  func.func @transform_13(%arg0: i32) -> (i32, i32, i32) {
    %c0_i32 = arith.constant 0 : i32
    %c0_i32_0 = arith.constant 0 : i32
    %c0_i32_1 = arith.constant 0 : i32
    return %arg0, %c0_i32, %c0_i32_0 : i32, i32, i32
  }
}

</mosaic_0001>

<llo_original>
// kernel: tpu_custom_call.1
$region0: #{tpu_custom_call.1}
  #allocation0 [shape = 'u32[]', space=smem, size = 0x4, offset = 0x4, fixed_abs, tag = 'smem constant byte address 0x4 - core index']
  #allocation1 [shape = 'u32[72,128]{1,0:T(1,128)}', space=vmem, size = 0x9000, scoped, tag = 'internal scratch']
  %s0 = inlined_call_operand.hbm [shape: bf16[2,2,64,64], index: 0, kind: input, shape index: {}]
  %s1 = inlined_call_operand.vmem [shape: f32[2,64,32], index: 1, kind: input, shape index: {}]
  %s2 = inlined_call_operand.vmem [shape: f32[2,64,1], index: 2, kind: input, shape index: {}]
  %s3 = inlined_call_operand.vmem [shape: bf16[3,2,32,32], index: 3, kind: input, shape index: {}]
  %s4 = inlined_call_operand.hbm [shape: f32[3,2,1,32], index: 4, kind: input, shape index: {}]
  %s5 = inlined_call_operand.vmem [shape: bf16[3,3,32,32], index: 5, kind: input, shape index: {}]
  %s6 = inlined_call_operand.vmem [shape: f32[3,3,1,32], index: 6, kind: input, shape index: {}]
  %s7 = inlined_call_operand.vmem [shape: bf16[3,3,32,32], index: 7, kind: input, shape index: {}]
  %s8 = inlined_call_operand.hbm [shape: f32[3,3,1,32], index: 8, kind: input, shape index: {}]
  %s9 = inlined_call_operand.hbm [shape: f32[32,64], index: 9, kind: input, shape index: {}]
  %s10 = inlined_call_operand.vmem [shape: f32[1,64], index: 10, kind: input, shape index: {}]
  %s11 = inlined_call_operand.vmem [shape: f32[64,4], index: 11, kind: input, shape index: {}]
  %s12 = inlined_call_operand.vmem [shape: f32[1,4], index: 12, kind: input, shape index: {}]
  %s13 = inlined_call_operand.hbm [shape: f32[2,4,4], index: 13, kind: output, shape index: {}]
  %s14 = sld [smem:[#allocation0]]
  $region101: #{tpu_custom_call.1} parent=0
    _
  %s16 = ssub.s32 1, %s14
  %s17 = scalar_select 0, %s16, %s14
  $region1: #{tpu_custom_call.1} parent=0
    #allocation2 [shape = 'u8[65536]{0}', space=vmem, size = 0x10000, scoped, tag = 'input window, operand 0']
    #allocation3 [shape = 's32[2]{0}', space=sflag, size = 0x8, scoped, tag = 'scoped memory for tpu_custom_call.1']
    #allocation4 [shape = 's32[2]{0}', space=sflag, size = 0x8, scoped, tag = 'scoped memory for tpu_custom_call.1']
    #allocation5 [shape = 'u8[3072]{0}', space=vmem, size = 0xc00, scoped, tag = 'input window, operand 4, single buffered']
    #allocation6 [shape = 's32[1]{0}', space=sflag, size = 0x4, scoped, tag = 'scoped memory for tpu_custom_call.1']
    #allocation7 [shape = 'u8[4608]{0}', space=vmem, size = 0x1400, scoped, tag = 'input window, operand 8, single buffered']
    #allocation8 [shape = 'u8[16384]{0}', space=vmem, size = 0x4000, scoped, tag = 'input window, operand 9, single buffered']
    #allocation9 [shape = 's32[1]{0}', space=sflag, size = 0x4, scoped, tag = 'scoped memory for tpu_custom_call.1']
    #allocation10 [shape = 'u8[4096]{0}', space=vmem, size = 0x1000, scoped, tag = 'output window, operand 0']
    %18 = vsyncpa [#allocation3], 0
    %s19 = scalar_lea.sflag [#allocation3], 1
    %20 = vsyncpa %s19, 0
    %21 = vsyncpa [#allocation6], 0
    %22 = vsyncpa [#allocation9], 0
    %23 = vsyncpa [#allocation4], 0
    %s24 = scalar_lea.sflag [#allocation4], 1
    %25 = vsyncpa %s24, 0
    loop: start=0, step=1, limit=4
    $region2: #{tpu_custom_call.1} parent=1 // loop_pre_header
      _
    $region3: #{tpu_custom_call.1} parent=1 // loop_header
      %s27 = sphi 0, %s31
      %p28 = scmp.ge.s32.totalorder %s27, 4
      %s37 = sphi 0, %s39
      %s40 = sphi 0, %s37
      %s41 = sphi 0, %s40
      %s57 = sphi 0, %s41
      %s63 = sphi 0, %s65
      %s66 = sphi 0, %s63
      %s67 = sphi 0, %s66
      %s83 = sphi 0, %s67
      %s89 = sphi 0, %s91
      %s92 = sphi 0, %s89
      %s93 = sphi 0, %s92
      %s109 = sphi 0, %s93
      %s113 = sphi 0, %s113
      %s115 = sphi 0, %s113
      %s116 = sphi 0, %s115
      %s130 = sphi 0, %s116
      %s134 = sphi 0, %s134
      %s136 = sphi 0, %s134
      %s137 = sphi 0, %s136
      %s151 = sphi 0, %s137
      %s155 = sphi 0, %s155
      %s157 = sphi 0, %s155
      %s158 = sphi 0, %s157
      %s172 = sphi 0, %s158
      %s176 = sphi 0, %s176
      %s178 = sphi 0, %s176
      %s179 = sphi 0, %s178
      %s193 = sphi 0, %s179
      %s197 = sphi 0, %s197
      %s199 = sphi 0, %s197
      %s200 = sphi 0, %s199
      %s214 = sphi 0, %s200
      %s218 = sphi 0, %s218
      %s220 = sphi 0, %s218
      %s221 = sphi 0, %s220
      %s235 = sphi 0, %s221
      %s239 = sphi 0, %s239
      %s241 = sphi 0, %s239
      %s242 = sphi 0, %s241
      %s256 = sphi 0, %s242
      %s260 = sphi 0, %s260
      %s262 = sphi 0, %s260
      %s263 = sphi 0, %s262
      %s277 = sphi 0, %s263
      %s281 = sphi 0, %s281
      %s283 = sphi 0, %s281
      %s284 = sphi 0, %s283
      %s298 = sphi 0, %s284
      %s302 = sphi 0, %s302
      %s304 = sphi 0, %s302
      %s305 = sphi 0, %s304
      %s319 = sphi 0, %s305
      %s325 = sphi 0, %s327
      %s328 = sphi 0, %s325
      %s329 = sphi 0, %s328
      %s345 = sphi 0, %s329
    $region4: #{tpu_custom_call.1} parent=1 // loop_header_branch
      %30 = sbr.rel (%p28) target = $region8
    $region5: #{tpu_custom_call.1} parent=1 // loop_body
      %s32 = ssub.s32 %s27, 1
      %s33 = ssub.s32 %s27, 2
      %s34 = sadd.s32 %s27, 1
      %s35 = ssub.s32 %s27, %s34
      %p36 = scmp.eq.s32.totalorder %s35, 0
      %s38 = sadd.s32 %s37, 1
      %s39 = scalar_select %p36, %s37, %s38
      %p42 = pneg %p36
      %p43 = scmp.eq.s32.totalorder %s27, 1
      %p44 = por %p42, %p43
      %p45 = scmp.ne.s32.totalorder %s37, %s40
      %p46 = scmp.eq.s32.totalorder %s27, 0
      %p47 = por %p45, %p46
      %p48 = scmp.ne.s32.totalorder %s37, %s40
      %p49 = scmp.eq.s32.totalorder %s32, 1
      %p50 = por %p48, %p49
      %p51 = scmp.ne.s32.totalorder %s40, %s41
      %p52 = scmp.eq.s32.totalorder %s32, 0
      %p53 = por %p51, %p52
      %p54 = scmp.ne.s32.totalorder %s40, %s41
      %p55 = scmp.eq.s32.totalorder %s33, 1
      %p56 = por %p54, %p55
      %p58 = scmp.ne.s32.totalorder %s41, %s57
      %p59 = scmp.eq.s32.totalorder %s33, 0
      %p60 = por %p58, %p59
      %s61 = ssub.s32 %s27, %s34
      %p62 = scmp.eq.s32.totalorder %s61, 0
      %s64 = sadd.s32 %s63, 1
      %s65 = scalar_select %p62, %s63, %s64
      %p68 = pneg %p62
      %p69 = scmp.eq.s32.totalorder %s27, 1
      %p70 = por %p68, %p69
      %p71 = scmp.ne.s32.totalorder %s63, %s66
      %p72 = scmp.eq.s32.totalorder %s27, 0
      %p73 = por %p71, %p72
      %p74 = scmp.ne.s32.totalorder %s63, %s66
      %p75 = scmp.eq.s32.totalorder %s32, 1
      %p76 = por %p74, %p75
      %p77 = scmp.ne.s32.totalorder %s66, %s67
      %p78 = scmp.eq.s32.totalorder %s32, 0
      %p79 = por %p77, %p78
      %p80 = scmp.ne.s32.totalorder %s66, %s67
      %p81 = scmp.eq.s32.totalorder %s33, 1
      %p82 = por %p80, %p81
      %p84 = scmp.ne.s32.totalorder %s67, %s83
      %p85 = scmp.eq.s32.totalorder %s33, 0
      %p86 = por %p84, %p85
      %s87 = ssub.s32 %s27, %s34
      %p88 = scmp.eq.s32.totalorder %s87, 0
      %s90 = sadd.s32 %s89, 1
      %s91 = scalar_select %p88, %s89, %s90
      %p94 = pneg %p88
      %p95 = scmp.eq.s32.totalorder %s27, 1
      %p96 = por %p94, %p95
      %p97 = scmp.ne.s32.totalorder %s89, %s92
      %p98 = scmp.eq.s32.totalorder %s27, 0
      %p99 = por %p97, %p98
      %p100 = scmp.ne.s32.totalorder %s89, %s92
      %p101 = scmp.eq.s32.totalorder %s32, 1
      %p102 = por %p100, %p101
      %p103 = scmp.ne.s32.totalorder %s92, %s93
      %p104 = scmp.eq.s32.totalorder %s32, 0
      %p105 = por %p103, %p104
      %p106 = scmp.ne.s32.totalorder %s92, %s93
      %p107 = scmp.eq.s32.totalorder %s33, 1
      %p108 = por %p106, %p107
      %p110 = scmp.ne.s32.totalorder %s93, %s109
      %p111 = scmp.eq.s32.totalorder %s33, 0
      %p112 = por %p110, %p111
      %s114 = sadd.s32 %s113, 1
      %p117 = scmp.eq.s32.totalorder %s27, 1
      %p118 = scmp.ne.s32.totalorder %s113, %s115
      %p119 = scmp.eq.s32.totalorder %s27, 0
      %p120 = por %p118, %p119
      %p121 = scmp.ne.s32.totalorder %s113, %s115
      %p122 = scmp.eq.s32.totalorder %s32, 1
      %p123 = por %p121, %p122
      %p124 = scmp.ne.s32.totalorder %s115, %s116
      %p125 = scmp.eq.s32.totalorder %s32, 0
      %p126 = por %p124, %p125
      %p127 = scmp.ne.s32.totalorder %s115, %s116
      %p128 = scmp.eq.s32.totalorder %s33, 1
      %p129 = por %p127, %p128
      %p131 = scmp.ne.s32.totalorder %s116, %s130
      %p132 = scmp.eq.s32.totalorder %s33, 0
      %p133 = por %p131, %p132
      %s135 = sadd.s32 %s134, 1
      %p138 = scmp.eq.s32.totalorder %s27, 1
      %p139 = scmp.ne.s32.totalorder %s134, %s136
      %p140 = scmp.eq.s32.totalorder %s27, 0
      %p141 = por %p139, %p140
      %p142 = scmp.ne.s32.totalorder %s134, %s136
      %p143 = scmp.eq.s32.totalorder %s32, 1
      %p144 = por %p142, %p143
      %p145 = scmp.ne.s32.totalorder %s136, %s137
      %p146 = scmp.eq.s32.totalorder %s32, 0
      %p147 = por %p145, %p146
      %p148 = scmp.ne.s32.totalorder %s136, %s137
      %p149 = scmp.eq.s32.totalorder %s33, 1
      %p150 = por %p148, %p149
      %p152 = scmp.ne.s32.totalorder %s137, %s151
      %p153 = scmp.eq.s32.totalorder %s33, 0
      %p154 = por %p152, %p153
      %s156 = sadd.s32 %s155, 1
      %p159 = scmp.eq.s32.totalorder %s27, 1
      %p160 = scmp.ne.s32.totalorder %s155, %s157
      %p161 = scmp.eq.s32.totalorder %s27, 0
      %p162 = por %p160, %p161
      %p163 = scmp.ne.s32.totalorder %s155, %s157
      %p164 = scmp.eq.s32.totalorder %s32, 1
      %p165 = por %p163, %p164
      %p166 = scmp.ne.s32.totalorder %s157, %s158
      %p167 = scmp.eq.s32.totalorder %s32, 0
      %p168 = por %p166, %p167
      %p169 = scmp.ne.s32.totalorder %s157, %s158
      %p170 = scmp.eq.s32.totalorder %s33, 1
      %p171 = por %p169, %p170
      %p173 = scmp.ne.s32.totalorder %s158, %s172
      %p174 = scmp.eq.s32.totalorder %s33, 0
      %p175 = por %p173, %p174
      %s177 = sadd.s32 %s176, 1
      %p180 = scmp.eq.s32.totalorder %s27, 1
      %p181 = scmp.ne.s32.totalorder %s176, %s178
      %p182 = scmp.eq.s32.totalorder %s27, 0
      %p183 = por %p181, %p182
      %p184 = scmp.ne.s32.totalorder %s176, %s178
      %p185 = scmp.eq.s32.totalorder %s32, 1
      %p186 = por %p184, %p185
      %p187 = scmp.ne.s32.totalorder %s178, %s179
      %p188 = scmp.eq.s32.totalorder %s32, 0
      %p189 = por %p187, %p188
      %p190 = scmp.ne.s32.totalorder %s178, %s179
      %p191 = scmp.eq.s32.totalorder %s33, 1
      %p192 = por %p190, %p191
      %p194 = scmp.ne.s32.totalorder %s179, %s193
      %p195 = scmp.eq.s32.totalorder %s33, 0
      %p196 = por %p194, %p195
      %s198 = sadd.s32 %s197, 1
      %p201 = scmp.eq.s32.totalorder %s27, 1
      %p202 = scmp.ne.s32.totalorder %s197, %s199
      %p203 = scmp.eq.s32.totalorder %s27, 0
      %p204 = por %p202, %p203
      %p205 = scmp.ne.s32.totalorder %s197, %s199
      %p206 = scmp.eq.s32.totalorder %s32, 1
      %p207 = por %p205, %p206
      %p208 = scmp.ne.s32.totalorder %s199, %s200
      %p209 = scmp.eq.s32.totalorder %s32, 0
      %p210 = por %p208, %p209
      %p211 = scmp.ne.s32.totalorder %s199, %s200
      %p212 = scmp.eq.s32.totalorder %s33, 1
      %p213 = por %p211, %p212
      %p215 = scmp.ne.s32.totalorder %s200, %s214
      %p216 = scmp.eq.s32.totalorder %s33, 0
      %p217 = por %p215, %p216
      %s219 = sadd.s32 %s218, 1
      %p222 = scmp.eq.s32.totalorder %s27, 1
      %p223 = scmp.ne.s32.totalorder %s218, %s220
      %p224 = scmp.eq.s32.totalorder %s27, 0
      %p225 = por %p223, %p224
      %p226 = scmp.ne.s32.totalorder %s218, %s220
      %p227 = scmp.eq.s32.totalorder %s32, 1
      %p228 = por %p226, %p227
      %p229 = scmp.ne.s32.totalorder %s220, %s221
      %p230 = scmp.eq.s32.totalorder %s32, 0
      %p231 = por %p229, %p230
      %p232 = scmp.ne.s32.totalorder %s220, %s221
      %p233 = scmp.eq.s32.totalorder %s33, 1
      %p234 = por %p232, %p233
      %p236 = scmp.ne.s32.totalorder %s221, %s235
      %p237 = scmp.eq.s32.totalorder %s33, 0
      %p238 = por %p236, %p237
      %s240 = sadd.s32 %s239, 1
      %p243 = scmp.eq.s32.totalorder %s27, 1
      %p244 = scmp.ne.s32.totalorder %s239, %s241
      %p245 = scmp.eq.s32.totalorder %s27, 0
      %p246 = por %p244, %p245
      %p247 = scmp.ne.s32.totalorder %s239, %s241
      %p248 = scmp.eq.s32.totalorder %s32, 1
      %p249 = por %p247, %p248
      %p250 = scmp.ne.s32.totalorder %s241, %s242
      %p251 = scmp.eq.s32.totalorder %s32, 0
      %p252 = por %p250, %p251
      %p253 = scmp.ne.s32.totalorder %s241, %s242
      %p254 = scmp.eq.s32.totalorder %s33, 1
      %p255 = por %p253, %p254
      %p257 = scmp.ne.s32.totalorder %s242, %s256
      %p258 = scmp.eq.s32.totalorder %s33, 0
      %p259 = por %p257, %p258
      %s261 = sadd.s32 %s260, 1
      %p264 = scmp.eq.s32.totalorder %s27, 1
      %p265 = scmp.ne.s32.totalorder %s260, %s262
      %p266 = scmp.eq.s32.totalorder %s27, 0
      %p267 = por %p265, %p266
      %p268 = scmp.ne.s32.totalorder %s260, %s262
      %p269 = scmp.eq.s32.totalorder %s32, 1
      %p270 = por %p268, %p269
      %p271 = scmp.ne.s32.totalorder %s262, %s263
      %p272 = scmp.eq.s32.totalorder %s32, 0
      %p273 = por %p271, %p272
      %p274 = scmp.ne.s32.totalorder %s262, %s263
      %p275 = scmp.eq.s32.totalorder %s33, 1
      %p276 = por %p274, %p275
      %p278 = scmp.ne.s32.totalorder %s263, %s277
      %p279 = scmp.eq.s32.totalorder %s33, 0
      %p280 = por %p278, %p279
      %s282 = sadd.s32 %s281, 1
      %p285 = scmp.eq.s32.totalorder %s27, 1
      %p286 = scmp.ne.s32.totalorder %s281, %s283
      %p287 = scmp.eq.s32.totalorder %s27, 0
      %p288 = por %p286, %p287
      %p289 = scmp.ne.s32.totalorder %s281, %s283
      %p290 = scmp.eq.s32.totalorder %s32, 1
      %p291 = por %p289, %p290
      %p292 = scmp.ne.s32.totalorder %s283, %s284
      %p293 = scmp.eq.s32.totalorder %s32, 0
      %p294 = por %p292, %p293
      %p295 = scmp.ne.s32.totalorder %s283, %s284
      %p296 = scmp.eq.s32.totalorder %s33, 1
      %p297 = por %p295, %p296
      %p299 = scmp.ne.s32.totalorder %s284, %s298
      %p300 = scmp.eq.s32.totalorder %s33, 0
      %p301 = por %p299, %p300
      %s303 = sadd.s32 %s302, 1
      %p306 = scmp.eq.s32.totalorder %s27, 1
      %p307 = scmp.ne.s32.totalorder %s302, %s304
      %p308 = scmp.eq.s32.totalorder %s27, 0
      %p309 = por %p307, %p308
      %p310 = scmp.ne.s32.totalorder %s302, %s304
      %p311 = scmp.eq.s32.totalorder %s32, 1
      %p312 = por %p310, %p311
      %p313 = scmp.ne.s32.totalorder %s304, %s305
      %p314 = scmp.eq.s32.totalorder %s32, 0
      %p315 = por %p313, %p314
      %p316 = scmp.ne.s32.totalorder %s304, %s305
      %p317 = scmp.eq.s32.totalorder %s33, 1
      %p318 = por %p316, %p317
      %p320 = scmp.ne.s32.totalorder %s305, %s319
      %p321 = scmp.eq.s32.totalorder %s33, 0
      %p322 = por %p320, %p321
      %s323 = ssub.s32 %s27, %s34
      %p324 = scmp.eq.s32.totalorder %s323, 0
      %s326 = sadd.s32 %s325, 1
      %s327 = scalar_select %p324, %s325, %s326
      %p330 = pneg %p324
      %p331 = scmp.eq.s32.totalorder %s27, 1
      %p332 = por %p330, %p331
      %p333 = scmp.ne.s32.totalorder %s325, %s328
      %p334 = scmp.eq.s32.totalorder %s27, 0
      %p335 = por %p333, %p334
      %p336 = scmp.ne.s32.totalorder %s325, %s328
      %p337 = scmp.eq.s32.totalorder %s32, 1
      %p338 = por %p336, %p337
      %p339 = scmp.ne.s32.totalorder %s328, %s329
      %p340 = scmp.eq.s32.totalorder %s32, 0
      %p341 = por %p339, %p340
      %p342 = scmp.ne.s32.totalorder %s328, %s329
      %p343 = scmp.eq.s32.totalorder %s33, 1
      %p344 = por %p342, %p343
      %p346 = scmp.ne.s32.totalorder %s329, %s345
      %p347 = scmp.eq.s32.totalorder %s33, 0
      %p348 = por %p346, %p347
      %p349 = scmp.le.s32.totalorder 1, %s27
      %p350 = scmp.lt.s32.totalorder %s27, 3
      %p351 = pnand %p349, %p350
      %p352 = pneg %p351
      // Predicated region
      $region9: #{tpu_custom_call.1} parent=5 // pred_check
        _
      $region10: #{tpu_custom_call.1} parent=5 // pred_check_branch
        %354 = sbr.rel (%p351) target = $region12
      $region11: #{tpu_custom_call.1} parent=5 // pred_region
        %s355 = ssub.s32 %s27, 1
        // Predicated region
        $region13: #{tpu_custom_call.1} parent=11 // pred_check
          %p356 = pneg %p126
        $region14: #{tpu_custom_call.1} parent=11 // pred_check_branch
          %358 = sbr.rel (%p356) target = $region16
        $region15: #{tpu_custom_call.1} parent=11 // pred_region
          _
        $region16: #{tpu_custom_call.1} parent=11 // pred_fallthru
          _
        // Predicated region
        $region17: #{tpu_custom_call.1} parent=11 // pred_check
          %p359 = pneg %p147
        $region18: #{tpu_custom_call.1} parent=11 // pred_check_branch
          %361 = sbr.rel (%p359) target = $region20
        $region19: #{tpu_custom_call.1} parent=11 // pred_region
          %363 = vsyncadd [#allocation6], 0
          %s364 = sshll.u32 %s4, 4
          %s365 = int_to_ptr.hbm [resolvable:$true] %s364
          %s366 = sshll.u32 [#allocation5], 4
          %s367 = int_to_ptr.vmem [resolvable:$true] %s366
          %372 = dma.hbm_to_vmem [thread:$0]  %s365, 96, %s367, [#allocation6], 16, 16, 1
        $region20: #{tpu_custom_call.1} parent=11 // pred_fallthru
          _
        // Predicated region
        $region21: #{tpu_custom_call.1} parent=11 // pred_check
          %p373 = pneg %p168
        $region22: #{tpu_custom_call.1} parent=11 // pred_check_branch
          %375 = sbr.rel (%p373) target = $region24
        $region23: #{tpu_custom_call.1} parent=11 // pred_region
          _
        $region24: #{tpu_custom_call.1} parent=11 // pred_fallthru
          _
        // Predicated region
        $region25: #{tpu_custom_call.1} parent=11 // pred_check
          %p376 = pneg %p189
        $region26: #{tpu_custom_call.1} parent=11 // pred_check_branch
          %378 = sbr.rel (%p376) target = $region28
        $region27: #{tpu_custom_call.1} parent=11 // pred_region
          _
        $region28: #{tpu_custom_call.1} parent=11 // pred_fallthru
          _
        // Predicated region
        $region29: #{tpu_custom_call.1} parent=11 // pred_check
          %p379 = pneg %p210
        $region30: #{tpu_custom_call.1} parent=11 // pred_check_branch
          %381 = sbr.rel (%p379) target = $region32
        $region31: #{tpu_custom_call.1} parent=11 // pred_region
          _
        $region32: #{tpu_custom_call.1} parent=11 // pred_fallthru
          _
        // Predicated region
        $region33: #{tpu_custom_call.1} parent=11 // pred_check
          %p382 = pneg %p231
        $region34: #{tpu_custom_call.1} parent=11 // pred_check_branch
          %384 = sbr.rel (%p382) target = $region36
        $region35: #{tpu_custom_call.1} parent=11 // pred_region
          %386 = vsyncadd [#allocation6], 0
          %s387 = sshll.u32 %s8, 4
          %s388 = int_to_ptr.hbm [resolvable:$true] %s387
          %s389 = sshll.u32 [#allocation7], 4
          %s390 = int_to_ptr.vmem [resolvable:$true] %s389
          %395 = dma.hbm_to_vmem [thread:$0]  %s388, 144, %s390, [#allocation6], 16, 16, 1
        $region36: #{tpu_custom_call.1} parent=11 // pred_fallthru
          _
        // Predicated region
        $region37: #{tpu_custom_call.1} parent=11 // pred_check
          %p396 = pneg %p252
        $region38: #{tpu_custom_call.1} parent=11 // pred_check_branch
          %398 = sbr.rel (%p396) target = $region40
        $region39: #{tpu_custom_call.1} parent=11 // pred_region
          %400 = vsyncadd [#allocation9], 0
          %s401 = sshll.u32 %s9, 4
          %s402 = int_to_ptr.hbm [resolvable:$true] %s401
          %s403 = sshll.u32 [#allocation8], 4
          %s404 = int_to_ptr.vmem [resolvable:$true] %s403
          %409 = dma.hbm_to_vmem [thread:$0]  %s402, 512, %s404, [#allocation9], 128, 128, 8
        $region40: #{tpu_custom_call.1} parent=11 // pred_fallthru
          _
        // Predicated region
        $region41: #{tpu_custom_call.1} parent=11 // pred_check
          %p410 = pneg %p273
        $region42: #{tpu_custom_call.1} parent=11 // pred_check_branch
          %412 = sbr.rel (%p410) target = $region44
        $region43: #{tpu_custom_call.1} parent=11 // pred_region
          _
        $region44: #{tpu_custom_call.1} parent=11 // pred_fallthru
          _
        // Predicated region
        $region45: #{tpu_custom_call.1} parent=11 // pred_check
          %p413 = pneg %p294
        $region46: #{tpu_custom_call.1} parent=11 // pred_check_branch
          %415 = sbr.rel (%p413) target = $region48
        $region47: #{tpu_custom_call.1} parent=11 // pred_region
          _
        $region48: #{tpu_custom_call.1} parent=11 // pred_fallthru
          _
        // Predicated region
        $region49: #{tpu_custom_call.1} parent=11 // pred_check
          %p416 = pneg %p315
        $region50: #{tpu_custom_call.1} parent=11 // pred_check_branch
          %418 = sbr.rel (%p416) target = $region52
        $region51: #{tpu_custom_call.1} parent=11 // pred_region
          _
        $region52: #{tpu_custom_call.1} parent=11 // pred_fallthru
          _
      $region12: #{tpu_custom_call.1} parent=5 // pred_fallthru
        _
      %p419 = scmp.lt.s32.totalorder %s27, 2
      // Predicated region
      $region53: #{tpu_custom_call.1} parent=5 // pred_check
        %p420 = pneg %p419
      $region54: #{tpu_custom_call.1} parent=5 // pred_check_branch
        %422 = sbr.rel (%p420) target = $region56
      $region55: #{tpu_custom_call.1} parent=5 // pred_region
        // Predicated region
        $region57: #{tpu_custom_call.1} parent=55 // pred_check
          %p423 = pneg %p47
        $region58: #{tpu_custom_call.1} parent=55 // pred_check_branch
          %425 = sbr.rel (%p423) target = $region60
        $region59: #{tpu_custom_call.1} parent=55 // pred_region
          %s426 = sand.u32 %s37, 1
          %s427 = scalar_lea.sflag [#allocation3], %s426
          %s428 = sand.u32 %s37, 1
          %s429 = smul.addr %s428, 64
          %s430 = scalar_lea.vmem [#allocation2], %s429
          %432 = vsyncadd %s427, 0
          %s433 = smul.addr %s27, 16
          %s434 = smul.addr %s433, 4
          %s435 = scalar_lea.hbm %s0, %s434
          %s436 = sshll.u32 %s435, 4
          %s437 = int_to_ptr.hbm [resolvable:$true] %s436
          %s438 = sshll.u32 %s430, 4
          %s439 = int_to_ptr.vmem [resolvable:$true] %s438
          %444 = dma.hbm_to_vmem [thread:$0]  %s437, 1024, %s439, %s427, 64, 64, 4
        $region60: #{tpu_custom_call.1} parent=55 // pred_fallthru
          _
        // Predicated region
        $region61: #{tpu_custom_call.1} parent=55 // pred_check
          %p445 = pneg %p73
        $region62: #{tpu_custom_call.1} parent=55 // pred_check_branch
          %447 = sbr.rel (%p445) target = $region64
        $region63: #{tpu_custom_call.1} parent=55 // pred_region
          %p448 = scmp.lt.s32.totalorder %s27, 1
          %s449 = scalar_select %p448, %s27, 1
          %s450 = smul.addr %s449, 8
          %s451 = smul.addr %s450, 8
          %s452 = scalar_lea.vmem %s1, %s451
        $region64: #{tpu_custom_call.1} parent=55 // pred_fallthru
          _
        // Predicated region
        $region65: #{tpu_custom_call.1} parent=55 // pred_check
          %p453 = pneg %p99
        $region66: #{tpu_custom_call.1} parent=55 // pred_check_branch
          %455 = sbr.rel (%p453) target = $region68
        $region67: #{tpu_custom_call.1} parent=55 // pred_region
          %p456 = scmp.lt.s32.totalorder %s27, 1
          %s457 = scalar_select %p456, %s27, 1
          %s458 = smul.addr %s457, 8
          %s459 = smul.addr %s458, 8
          %s460 = scalar_lea.vmem %s2, %s459
        $region68: #{tpu_custom_call.1} parent=55 // pred_fallthru
          _
      $region56: #{tpu_custom_call.1} parent=5 // pred_fallthru
        _
      %p461 = scmp.le.s32.totalorder 1, %s27
      %p462 = scmp.lt.s32.totalorder %s27, 3
      %p463 = pnand %p461, %p462
      %p464 = pneg %p463
      // Predicated region
      $region69: #{tpu_custom_call.1} parent=5 // pred_check
        _
      $region70: #{tpu_custom_call.1} parent=5 // pred_check_branch
        %466 = sbr.rel (%p463) target = $region72
      $region71: #{tpu_custom_call.1} parent=5 // pred_region
        %s467 = ssub.s32 %s27, 1
        %s468 = sand.u32 %s40, 1
        %s469 = scalar_lea.sflag [#allocation3], %s468
        %s470 = sand.u32 %s40, 1
        %s471 = smul.addr %s470, 64
        %s472 = scalar_lea.vmem [#allocation2], %s471
        // Predicated region
        $region73: #{tpu_custom_call.1} parent=71 // pred_check
          %p473 = pneg %p53
        $region74: #{tpu_custom_call.1} parent=71 // pred_check_branch
          %475 = sbr.rel (%p473) target = $region76
        $region75: #{tpu_custom_call.1} parent=71 // pred_region
          %477 = dma.done %s469, 1024
        $region76: #{tpu_custom_call.1} parent=71 // pred_fallthru
          _
        // Predicated region
        $region77: #{tpu_custom_call.1} parent=71 // pred_check
          %p478 = pneg %p147
        $region78: #{tpu_custom_call.1} parent=71 // pred_check_branch
          %480 = sbr.rel (%p478) target = $region80
        $region79: #{tpu_custom_call.1} parent=71 // pred_region
          %482 = dma.done [#allocation6], 96
        $region80: #{tpu_custom_call.1} parent=71 // pred_fallthru
          _
        // Predicated region
        $region81: #{tpu_custom_call.1} parent=71 // pred_check
          %p483 = pneg %p231
        $region82: #{tpu_custom_call.1} parent=71 // pred_check_branch
          %485 = sbr.rel (%p483) target = $region84
        $region83: #{tpu_custom_call.1} parent=71 // pred_region
          %487 = dma.done [#allocation6], 144
        $region84: #{tpu_custom_call.1} parent=71 // pred_fallthru
          _
        // Predicated region
        $region85: #{tpu_custom_call.1} parent=71 // pred_check
          %p488 = pneg %p252
        $region86: #{tpu_custom_call.1} parent=71 // pred_check_branch
          %490 = sbr.rel (%p488) target = $region88
        $region87: #{tpu_custom_call.1} parent=71 // pred_region
          %492 = dma.done [#allocation9], 512
        $region88: #{tpu_custom_call.1} parent=71 // pred_fallthru
          _
        %s493 = sand.u32 %s40, 1
        %s494 = scalar_lea.sflag [#allocation3], %s493
        %s495 = sand.u32 %s40, 1
        %s496 = smul.addr %s495, 64
        %s497 = scalar_lea.vmem [#allocation2], %s496
        %p498 = pneg %p53
        %p499 = pneg %p50
        %p500 = scmp.lt.s32.totalorder %s32, 1
        %s501 = scalar_select %p500, %s32, 1
        %s502 = smul.addr %s501, 8
        %s503 = smul.addr %s502, 8
        %s504 = scalar_lea.vmem %s1, %s503
        %p505 = pneg %p79
        %p506 = pneg %p76
        %p507 = scmp.lt.s32.totalorder %s32, 1
        %s508 = scalar_select %p507, %s32, 1
        %s509 = smul.addr %s508, 8
        %s510 = smul.addr %s509, 8
        %s511 = scalar_lea.vmem %s2, %s510
        %p512 = pneg %p105
        %p513 = pneg %p102
        %p514 = pneg %p126
        %p515 = pneg %p123
        %p516 = pneg %p147
        %p517 = pneg %p144
        %p518 = pneg %p168
        %p519 = pneg %p165
        %p520 = pneg %p189
        %p521 = pneg %p186
        %p522 = pneg %p210
        %p523 = pneg %p207
        %p524 = pneg %p231
        %p525 = pneg %p228
        %p526 = pneg %p252
        %p527 = pneg %p249
        %p528 = pneg %p273
        %p529 = pneg %p270
        %p530 = pneg %p294
        %p531 = pneg %p291
        %p532 = pneg %p315
        %p533 = pneg %p312
        %p534 = pneg %p341
        %p535 = pneg %p338
        %s536 = sand.u32 %s328, 1
        %s537 = scalar_lea.sflag [#allocation4], %s536
        %s538 = sand.u32 %s328, 1
        %s539 = smul.addr %s538, 4
        %s540 = scalar_lea.vmem [#allocation10], %s539
        %p541 = scmp.lt.s32.totalorder %s32, 1
        %s542 = scalar_select %p541, %s32, 1
        %s543 = smul.addr %s542, 8
        %s544 = smul.addr %s543, 8
        %s545 = scalar_lea.vmem %s1, %s544
        %p546 = scmp.lt.s32.totalorder %s32, 1
        %s547 = scalar_select %p546, %s32, 1
        %s548 = smul.addr %s547, 8
        %s549 = smul.addr %s548, 8
        %s550 = scalar_lea.vmem %s2, %s549
        %v552 = vld [vmem:[%s545] sm:$0xff]
        %v553 = vld [vmem:[%s545 + $0x8] sm:$0xff]
        %v554 = vld [vmem:[%s545 + $0x10] sm:$0xff]
        %v555 = vld [vmem:[%s545 + $0x18] sm:$0xff]
        %v556 = vld [vmem:[%s545 + $0x20] sm:$0xff]
        %v557 = vld [vmem:[%s545 + $0x28] sm:$0xff]
        %v558 = vld [vmem:[%s545 + $0x30] sm:$0xff]
        %v559 = vld [vmem:[%s545 + $0x38] sm:$0xff]
        %v560 = vpack.c.bf16 %v553, %v552
        %v561 = vpack.c.bf16 %v555, %v554
        %v562 = vpack.c.bf16 %v557, %v556
        %v563 = vpack.c.bf16 %v559, %v558
        %v564 = vld [vmem:[%s3] sm:$0xf]
        %v565 = vld [vmem:[%s3 + $0x4] sm:$0xf]
        %v566 = vld [vmem:[%s3 + $0x8] sm:$0xf]
        %v567 = vld [vmem:[%s3 + $0xc] sm:$0xf]
        %v568 = vld [vmem:[#allocation5] sm:$0x1]
        %v570 = vperm.slane %v568, 0
        %v576 = vunpack.c.l.b16 %v564
        %v577 = vunpack.c.l.b16 %v565
        %v578 = vunpack.c.l.b16 %v566
        %v579 = vunpack.c.l.b16 %v567
        %v580 = vpack.c.b16 %v577, %v576
        %v581 = vpack.c.b16 %v579, %v578
        %vm584 = vcmask 261120
        %v586 = vsel %vm584, %v560, 0
        %v589 = vsel %vm584, %v561, 0
        %v592 = vsel %vm584, %v562, 0
        %v595 = vsel %vm584, %v563, 0
        %597 = vmatpush.bf16.msra.mxu0 0
        %598 = vmatpush.bf16.msra.mxu0 0
        %599 = vmatpush.bf16.msra.mxu0 0
        %600 = vmatpush.bf16.msra.mxu0 0
        %601 = vmatpush.bf16.msra.mxu0 0
        %602 = vmatpush.bf16.msra.mxu0 0
        %603 = vmatpush.bf16.msra.mxu0 %v581
        %604 = vmatpush.bf16.msra.mxu0 %v580
        %605 = vmatmul.bf16.gmra.mxu0 %v586
        %v606 = vpop.f32.mrf.mxu0
        %v607 = vadd.f32 %v570, %v606
        %v608 = vpop.f32.mrf.mxu0
        %v609 = vadd.f32 %v570, %v608
        %610 = vmatmul.bf16.gmra.mxu0 %v589
        %v611 = vpop.f32.mrf.mxu0
        %v612 = vadd.f32 %v570, %v611
        %v613 = vpop.f32.mrf.mxu0
        %v614 = vadd.f32 %v570, %v613
        %615 = vmatmul.bf16.gmra.mxu0 %v592
        %v616 = vpop.f32.mrf.mxu0
        %v617 = vadd.f32 %v570, %v616
        %v618 = vpop.f32.mrf.mxu0
        %v619 = vadd.f32 %v570, %v618
        %620 = vmatmul.bf16.gmra.mxu0 %v595
        %v621 = vpop.f32.mrf.mxu0
        %v622 = vadd.f32 %v570, %v621
        %v623 = vpop.f32.mrf.mxu0
        %v624 = vadd.f32 %v570, %v623
        %625 = vdwg.mxu0
        %v626 = vld [vmem:[%s472] sm:$0xf]
        %v627 = vld [vmem:[%s472 + $0x4] sm:$0xf]
        %v628 = vld [vmem:[%s472 + $0x8] sm:$0xf]
        %v629 = vld [vmem:[%s472 + $0xc] sm:$0xf]
        %v630 = vld [vmem:[%s472 + $0x10] sm:$0xf]
        %v631 = vld [vmem:[%s472 + $0x14] sm:$0xf]
        %v632 = vld [vmem:[%s472 + $0x18] sm:$0xf]
        %v633 = vld [vmem:[%s472 + $0x1c] sm:$0xf]
        %v634 = vpack.c.bf16 %v609, %v607
        %v635 = vpack.c.bf16 %v614, %v612
        %v636 = vpack.c.bf16 %v619, %v617
        %v637 = vpack.c.bf16 %v624, %v622
        %s638 = scalar_lea.vmem %s3, 16
        %v639 = vld [vmem:[%s638] sm:$0xf]
        %v640 = vld [vmem:[%s638 + $0x4] sm:$0xf]
        %v641 = vld [vmem:[%s638 + $0x8] sm:$0xf]
        %v642 = vld [vmem:[%s638 + $0xc] sm:$0xf]
        %s643 = scalar_lea.vmem [#allocation5], 1
        %v644 = vld [vmem:[%s643] sm:$0x1]
        %v646 = vperm.slane %v644, 0
        %v652 = vunpack.c.l.b16 %v639
        %v653 = vunpack.c.l.b16 %v640
        %v654 = vunpack.c.l.b16 %v641
        %v655 = vunpack.c.l.b16 %v642
        %v656 = vpack.c.b16 %v653, %v652
        %v657 = vpack.c.b16 %v655, %v654
        %660 = vmatpush.bf16.msra.mxu0 0
        %661 = vmatpush.bf16.msra.mxu0 0
        %662 = vmatpush.bf16.msra.mxu0 0
        %663 = vmatpush.bf16.msra.mxu0 0
        %664 = vmatpush.bf16.msra.mxu0 0
        %665 = vmatpush.bf16.msra.mxu0 0
        %666 = vmatpush.bf16.msra.mxu0 %v657
        %667 = vmatpush.bf16.msra.mxu0 %v656
        %668 = vmatmul.bf16.gmra.mxu0 %v586
        %v669 = vpop.f32.mrf.mxu0
        %v670 = vadd.f32 %v646, %v669
        %v671 = vpop.f32.mrf.mxu0
        %v672 = vadd.f32 %v646, %v671
        %673 = vmatmul.bf16.gmra.mxu0 %v589
        %v674 = vpop.f32.mrf.mxu0
        %v675 = vadd.f32 %v646, %v674
        %v676 = vpop.f32.mrf.mxu0
        %v677 = vadd.f32 %v646, %v676
        %678 = vmatmul.bf16.gmra.mxu0 %v592
        %v679 = vpop.f32.mrf.mxu0
        %v680 = vadd.f32 %v646, %v679
        %v681 = vpop.f32.mrf.mxu0
        %v682 = vadd.f32 %v646, %v681
        %683 = vmatmul.bf16.gmra.mxu0 %v595
        %v684 = vpop.f32.mrf.mxu0
        %v685 = vadd.f32 %v646, %v684
        %v686 = vpop.f32.mrf.mxu0
        %v687 = vadd.f32 %v646, %v686
        %688 = vdwg.mxu0
        %s689 = scalar_lea.vmem %s472, 32 [#allocation2]
        %v690 = vld [vmem:[%s689] sm:$0xf]
        %v691 = vld [vmem:[%s689 + $0x4] sm:$0xf]
        %v692 = vld [vmem:[%s689 + $0x8] sm:$0xf]
        %v693 = vld [vmem:[%s689 + $0xc] sm:$0xf]
        %v694 = vld [vmem:[%s689 + $0x10] sm:$0xf]
        %v695 = vld [vmem:[%s689 + $0x14] sm:$0xf]
        %v696 = vld [vmem:[%s689 + $0x18] sm:$0xf]
        %v697 = vld [vmem:[%s689 + $0x1c] sm:$0xf]
        %v698 = vpack.c.bf16 %v672, %v670
        %v699 = vpack.c.bf16 %v677, %v675
        %v700 = vpack.c.bf16 %v682, %v680
        %v701 = vpack.c.bf16 %v687, %v685
        %v710 = vunpack.c.l.b16 %v690
        %v711 = vunpack.c.l.b16 %v691
        %v712 = vunpack.c.l.b16 %v692
        %v713 = vunpack.c.l.b16 %v693
        %v714 = vunpack.c.l.b16 %v694
        %v715 = vunpack.c.l.b16 %v695
        %v716 = vunpack.c.l.b16 %v696
        %v717 = vunpack.c.l.b16 %v697
        %v718 = vpack.c.b16 %v711, %v710
        %v719 = vpack.c.b16 %v713, %v712
        %v720 = vpack.c.b16 %v715, %v714
        %v721 = vpack.c.b16 %v717, %v716
        %vm722 = vcmask 523264
        %v724 = vsel %vm722, %v718, 0
        %v727 = vsel %vm722, %v719, 0
        %v730 = vsel %vm722, %v720, 0
        %v733 = vsel %vm722, %v721, 0
        %735 = vmatpush.bf16.msra.mxu0 0
        %736 = vmatpush.bf16.msra.mxu0 0
        %737 = vmatpush.bf16.msra.mxu0 0
        %738 = vmatpush.bf16.msra.mxu0 0
        %739 = vmatpush.bf16.msra.mxu0 %v701
        %740 = vmatpush.bf16.msra.mxu0 %v700
        %741 = vmatpush.bf16.msra.mxu0 %v699
        %742 = vmatpush.bf16.msra.mxu0 %v698
        %743 = vmatmul.bf16.gmra.mxu0 %v724
        %v744 = vpop.f32.mrf.mxu0
        %v745 = vadd.f32 0.0, %v744
        %v746 = vpop.f32.mrf.mxu0
        %v747 = vadd.f32 0.0, %v746
        %748 = vmatmul.bf16.gmra.mxu0 %v727
        %v749 = vpop.f32.mrf.mxu0
        %v750 = vadd.f32 0.0, %v749
        %v751 = vpop.f32.mrf.mxu0
        %v752 = vadd.f32 0.0, %v751
        %753 = vmatmul.bf16.gmra.mxu0 %v730
        %v754 = vpop.f32.mrf.mxu0
        %v755 = vadd.f32 0.0, %v754
        %v756 = vpop.f32.mrf.mxu0
        %v757 = vadd.f32 0.0, %v756
        %758 = vmatmul.bf16.gmra.mxu0 %v733
        %v759 = vpop.f32.mrf.mxu0
        %v760 = vadd.f32 0.0, %v759
        %v761 = vpop.f32.mrf.mxu0
        %v762 = vadd.f32 0.0, %v761
        %763 = vdwg.mxu0
        %v772 = vunpack.c.l.b16 %v626
        %v773 = vunpack.c.l.b16 %v627
        %v774 = vunpack.c.l.b16 %v628
        %v775 = vunpack.c.l.b16 %v629
        %v776 = vunpack.c.l.b16 %v630
        %v777 = vunpack.c.l.b16 %v631
        %v778 = vunpack.c.l.b16 %v632
        %v779 = vunpack.c.l.b16 %v633
        %v780 = vpack.c.b16 %v773, %v772
        %v781 = vpack.c.b16 %v775, %v774
        %v782 = vpack.c.b16 %v777, %v776
        %v783 = vpack.c.b16 %v779, %v778
        %v785 = vsel %vm722, %v780, 0
        %v788 = vsel %vm722, %v781, 0
        %v791 = vsel %vm722, %v782, 0
        %v794 = vsel %vm722, %v783, 0
        %796 = vmatpush.bf16.msra.mxu0 0
        %797 = vmatpush.bf16.msra.mxu0 0
        %798 = vmatpush.bf16.msra.mxu0 0
        %799 = vmatpush.bf16.msra.mxu0 0
        %800 = vmatpush.bf16.msra.mxu0 %v637
        %801 = vmatpush.bf16.msra.mxu0 %v636
        %802 = vmatpush.bf16.msra.mxu0 %v635
        %803 = vmatpush.bf16.msra.mxu0 %v634
        %804 = vmatmul.bf16.gmra.mxu0 %v785
        %v805 = vpop.f32.mrf.mxu0
        %v806 = vadd.f32 %v745, %v805
        %v807 = vpop.f32.mrf.mxu0
        %v808 = vadd.f32 %v747, %v807
        %809 = vmatmul.bf16.gmra.mxu0 %v788
        %v810 = vpop.f32.mrf.mxu0
        %v811 = vadd.f32 %v750, %v810
        %v812 = vpop.f32.mrf.mxu0
        %v813 = vadd.f32 %v752, %v812
        %814 = vmatmul.bf16.gmra.mxu0 %v791
        %v815 = vpop.f32.mrf.mxu0
        %v816 = vadd.f32 %v755, %v815
        %v817 = vpop.f32.mrf.mxu0
        %v818 = vadd.f32 %v757, %v817
        %819 = vmatmul.bf16.gmra.mxu0 %v794
        %v820 = vpop.f32.mrf.mxu0
        %v821 = vadd.f32 %v760, %v820
        %v822 = vpop.f32.mrf.mxu0
        %v823 = vadd.f32 %v762, %v822
        %824 = vdwg.mxu0
        %v825 = vpack.c.bf16 %v808, %v806
        %v826 = vpack.c.bf16 %v813, %v811
        %v827 = vpack.c.bf16 %v818, %v816
        %v828 = vpack.c.bf16 %v823, %v821
        %v829 = vld [vmem:[%s5] sm:$0xf]
        %v830 = vld [vmem:[%s5 + $0x4] sm:$0xf]
        %v831 = vld [vmem:[%s5 + $0x8] sm:$0xf]
        %v832 = vld [vmem:[%s5 + $0xc] sm:$0xf]
        %v833 = vld [vmem:[%s6] sm:$0x1]
        %v835 = vperm.slane %v833, 0
        %v841 = vunpack.c.l.b16 %v829
        %v842 = vunpack.c.l.b16 %v830
        %v843 = vunpack.c.l.b16 %v831
        %v844 = vunpack.c.l.b16 %v832
        %v845 = vpack.c.b16 %v842, %v841
        %v846 = vpack.c.b16 %v844, %v843
        %v850 = vsel %vm584, %v825, 0
        %v853 = vsel %vm584, %v826, 0
        %v856 = vsel %vm584, %v827, 0
        %v859 = vsel %vm584, %v828, 0
        %861 = vmatpush.bf16.msra.mxu0 0
        %862 = vmatpush.bf16.msra.mxu0 0
        %863 = vmatpush.bf16.msra.mxu0 0
        %864 = vmatpush.bf16.msra.mxu0 0
        %865 = vmatpush.bf16.msra.mxu0 0
        %866 = vmatpush.bf16.msra.mxu0 0
        %867 = vmatpush.bf16.msra.mxu0 %v846
        %868 = vmatpush.bf16.msra.mxu0 %v845
        %869 = vmatmul.bf16.gmra.mxu0 %v850
        %v870 = vpop.f32.mrf.mxu0
        %v871 = vadd.f32 %v835, %v870
        %v872 = vpop.f32.mrf.mxu0
        %v873 = vadd.f32 %v835, %v872
        %874 = vmatmul.bf16.gmra.mxu0 %v853
        %v875 = vpop.f32.mrf.mxu0
        %v876 = vadd.f32 %v835, %v875
        %v877 = vpop.f32.mrf.mxu0
        %v878 = vadd.f32 %v835, %v877
        %879 = vmatmul.bf16.gmra.mxu0 %v856
        %v880 = vpop.f32.mrf.mxu0
        %v881 = vadd.f32 %v835, %v880
        %v882 = vpop.f32.mrf.mxu0
        %v883 = vadd.f32 %v835, %v882
        %884 = vmatmul.bf16.gmra.mxu0 %v859
        %v885 = vpop.f32.mrf.mxu0
        %v886 = vadd.f32 %v835, %v885
        %v887 = vpop.f32.mrf.mxu0
        %v888 = vadd.f32 %v835, %v887
        %889 = vdwg.mxu0
        %v890 = vld [vmem:[%s7] sm:$0xf]
        %v891 = vld [vmem:[%s7 + $0x4] sm:$0xf]
        %v892 = vld [vmem:[%s7 + $0x8] sm:$0xf]
        %v893 = vld [vmem:[%s7 + $0xc] sm:$0xf]
        %v894 = vld [vmem:[#allocation7] sm:$0x1]
        %v896 = vperm.slane %v894, 0
        %v902 = vunpack.c.l.b16 %v890
        %v903 = vunpack.c.l.b16 %v891
        %v904 = vunpack.c.l.b16 %v892
        %v905 = vunpack.c.l.b16 %v893
        %v906 = vpack.c.b16 %v903, %v902
        %v907 = vpack.c.b16 %v905, %v904
        %910 = vmatpush.bf16.msra.mxu0 0
        %911 = vmatpush.bf16.msra.mxu0 0
        %912 = vmatpush.bf16.msra.mxu0 0
        %913 = vmatpush.bf16.msra.mxu0 0
        %914 = vmatpush.bf16.msra.mxu0 0
        %915 = vmatpush.bf16.msra.mxu0 0
        %916 = vmatpush.bf16.msra.mxu0 %v907
        %917 = vmatpush.bf16.msra.mxu0 %v906
        %918 = vmatmul.bf16.gmra.mxu0 %v586
        %v919 = vpop.f32.mrf.mxu0
        %v920 = vadd.f32 %v896, %v919
        %v921 = vpop.f32.mrf.mxu0
        %v922 = vadd.f32 %v896, %v921
        %923 = vmatmul.bf16.gmra.mxu0 %v589
        %v924 = vpop.f32.mrf.mxu0
        %v925 = vadd.f32 %v896, %v924
        %v926 = vpop.f32.mrf.mxu0
        %v927 = vadd.f32 %v896, %v926
        %928 = vmatmul.bf16.gmra.mxu0 %v592
        %v929 = vpop.f32.mrf.mxu0
        %v930 = vadd.f32 %v896, %v929
        %v931 = vpop.f32.mrf.mxu0
        %v932 = vadd.f32 %v896, %v931
        %933 = vmatmul.bf16.gmra.mxu0 %v595
        %v934 = vpop.f32.mrf.mxu0
        %v935 = vadd.f32 %v896, %v934
        %v936 = vpop.f32.mrf.mxu0
        %v937 = vadd.f32 %v896, %v936
        %938 = vdwg.mxu0
        %v939 = vadd.f32 %v871, %v920
        %v940 = vadd.f32 %v873, %v922
        %v941 = vadd.f32 %v876, %v925
        %v942 = vadd.f32 %v878, %v927
        %v943 = vadd.f32 %v881, %v930
        %v944 = vadd.f32 %v883, %v932
        %v945 = vadd.f32 %v886, %v935
        %v946 = vadd.f32 %v888, %v937
        %v947 = vxor.u32 %v939, 2147483648
        %v948 = vxor.u32 %v940, 2147483648
        %v949 = vxor.u32 %v941, 2147483648
        %v950 = vxor.u32 %v942, 2147483648
        %v951 = vxor.u32 %v943, 2147483648
        %v952 = vxor.u32 %v944, 2147483648
        %v953 = vxor.u32 %v945, 2147483648
        %v954 = vxor.u32 %v946, 2147483648
        %v955 = vmul.f32 %v947, 1.442695
        %v956 = vpow.pop %v955
        %v957 = vmul.f32 %v948, 1.442695
        %v958 = vpow.pop %v957
        %v959 = vmul.f32 %v949, 1.442695
        %v960 = vpow.pop %v959
        %v961 = vmul.f32 %v950, 1.442695
        %v962 = vpow.pop %v961
        %v963 = vmul.f32 %v951, 1.442695
        %v964 = vpow.pop %v963
        %v965 = vmul.f32 %v952, 1.442695
        %v966 = vpow.pop %v965
        %v967 = vmul.f32 %v953, 1.442695
        %v968 = vpow.pop %v967
        %v969 = vmul.f32 %v954, 1.442695
        %v970 = vpow.pop %v969
        %v971 = vadd.f32 %v956, 1.0
        %v972 = vadd.f32 %v958, 1.0
        %v973 = vadd.f32 %v960, 1.0
        %v974 = vadd.f32 %v962, 1.0
        %v975 = vadd.f32 %v964, 1.0
        %v976 = vadd.f32 %v966, 1.0
        %v977 = vadd.f32 %v968, 1.0
        %v978 = vadd.f32 %v970, 1.0
        %v979 = vrcp.pop %v971
        %v980 = vmul.f32 %v971, %v979
        %v981 = vsub.f32 1.0, %v980
        %v982 = vmul.f32 %v979, %v981
        %v983 = vadd.f32 %v979, %v982
        %vm984 = vweird.f32 %v971
        %vm985 = vweird.f32 %v979
        %vm986 = vmor %vm984, %vm985
        %v987 = vsel %vm986, %v979, %v983
        %v988 = vand.u32 2147483647, %v971
        %vm989 = vcmp.eq.f32.partialorder %v988, 8.507059e+37
        %v990 = vand.u32 %v971, 2147483648
        %v991 = vor.u32 1.1754944e-38, %v990
        %v992 = vsel %vm989, %v991, %v987
        %v993 = vmul.f32 1.0, %v992
        %v994 = vrcp.pop %v972
        %v995 = vmul.f32 %v972, %v994
        %v996 = vsub.f32 1.0, %v995
        %v997 = vmul.f32 %v994, %v996
        %v998 = vadd.f32 %v994, %v997
        %vm999 = vweird.f32 %v972
        %vm1000 = vweird.f32 %v994
        %vm1001 = vmor %vm999, %vm1000
        %v1002 = vsel %vm1001, %v994, %v998
        %v1003 = vand.u32 2147483647, %v972
        %vm1004 = vcmp.eq.f32.partialorder %v1003, 8.507059e+37
        %v1005 = vand.u32 %v972, 2147483648
        %v1006 = vor.u32 1.1754944e-38, %v1005
        %v1007 = vsel %vm1004, %v1006, %v1002
        %v1008 = vmul.f32 1.0, %v1007
        %v1009 = vrcp.pop %v973
        %v1010 = vmul.f32 %v973, %v1009
        %v1011 = vsub.f32 1.0, %v1010
        %v1012 = vmul.f32 %v1009, %v1011
        %v1013 = vadd.f32 %v1009, %v1012
        %vm1014 = vweird.f32 %v973
        %vm1015 = vweird.f32 %v1009
        %vm1016 = vmor %vm1014, %vm1015
        %v1017 = vsel %vm1016, %v1009, %v1013
        %v1018 = vand.u32 2147483647, %v973
        %vm1019 = vcmp.eq.f32.partialorder %v1018, 8.507059e+37
        %v1020 = vand.u32 %v973, 2147483648
        %v1021 = vor.u32 1.1754944e-38, %v1020
        %v1022 = vsel %vm1019, %v1021, %v1017
        %v1023 = vmul.f32 1.0, %v1022
        %v1024 = vrcp.pop %v974
        %v1025 = vmul.f32 %v974, %v1024
        %v1026 = vsub.f32 1.0, %v1025
        %v1027 = vmul.f32 %v1024, %v1026
        %v1028 = vadd.f32 %v1024, %v1027
        %vm1029 = vweird.f32 %v974
        %vm1030 = vweird.f32 %v1024
        %vm1031 = vmor %vm1029, %vm1030
        %v1032 = vsel %vm1031, %v1024, %v1028
        %v1033 = vand.u32 2147483647, %v974
        %vm1034 = vcmp.eq.f32.partialorder %v1033, 8.507059e+37
        %v1035 = vand.u32 %v974, 2147483648
        %v1036 = vor.u32 1.1754944e-38, %v1035
        %v1037 = vsel %vm1034, %v1036, %v1032
        %v1038 = vmul.f32 1.0, %v1037
        %v1039 = vrcp.pop %v975
        %v1040 = vmul.f32 %v975, %v1039
        %v1041 = vsub.f32 1.0, %v1040
        %v1042 = vmul.f32 %v1039, %v1041
        %v1043 = vadd.f32 %v1039, %v1042
        %vm1044 = vweird.f32 %v975
        %vm1045 = vweird.f32 %v1039
        %vm1046 = vmor %vm1044, %vm1045
        %v1047 = vsel %vm1046, %v1039, %v1043
        %v1048 = vand.u32 2147483647, %v975
        %vm1049 = vcmp.eq.f32.partialorder %v1048, 8.507059e+37
        %v1050 = vand.u32 %v975, 2147483648
        %v1051 = vor.u32 1.1754944e-38, %v1050
        %v1052 = vsel %vm1049, %v1051, %v1047
        %v1053 = vmul.f32 1.0, %v1052
        %v1054 = vrcp.pop %v976
        %v1055 = vmul.f32 %v976, %v1054
        %v1056 = vsub.f32 1.0, %v1055
        %v1057 = vmul.f32 %v1054, %v1056
        %v1058 = vadd.f32 %v1054, %v1057
        %vm1059 = vweird.f32 %v976
        %vm1060 = vweird.f32 %v1054
        %vm1061 = vmor %vm1059, %vm1060
        %v1062 = vsel %vm1061, %v1054, %v1058
        %v1063 = vand.u32 2147483647, %v976
        %vm1064 = vcmp.eq.f32.partialorder %v1063, 8.507059e+37
        %v1065 = vand.u32 %v976, 2147483648
        %v1066 = vor.u32 1.1754944e-38, %v1065
        %v1067 = vsel %vm1064, %v1066, %v1062
        %v1068 = vmul.f32 1.0, %v1067
        %v1069 = vrcp.pop %v977
        %v1070 = vmul.f32 %v977, %v1069
        %v1071 = vsub.f32 1.0, %v1070
        %v1072 = vmul.f32 %v1069, %v1071
        %v1073 = vadd.f32 %v1069, %v1072
        %vm1074 = vweird.f32 %v977
        %vm1075 = vweird.f32 %v1069
        %vm1076 = vmor %vm1074, %vm1075
        %v1077 = vsel %vm1076, %v1069, %v1073
        %v1078 = vand.u32 2147483647, %v977
        %vm1079 = vcmp.eq.f32.partialorder %v1078, 8.507059e+37
        %v1080 = vand.u32 %v977, 2147483648
        %v1081 = vor.u32 1.1754944e-38, %v1080
        %v1082 = vsel %vm1079, %v1081, %v1077
        %v1083 = vmul.f32 1.0, %v1082
        %v1084 = vrcp.pop %v978
        %v1085 = vmul.f32 %v978, %v1084
        %v1086 = vsub.f32 1.0, %v1085
        %v1087 = vmul.f32 %v1084, %v1086
        %v1088 = vadd.f32 %v1084, %v1087
        %vm1089 = vweird.f32 %v978
        %vm1090 = vweird.f32 %v1084
        %vm1091 = vmor %vm1089, %vm1090
        %v1092 = vsel %vm1091, %v1084, %v1088
        %v1093 = vand.u32 2147483647, %v978
        %vm1094 = vcmp.eq.f32.partialorder %v1093, 8.507059e+37
        %v1095 = vand.u32 %v978, 2147483648
        %v1096 = vor.u32 1.1754944e-38, %v1095
        %v1097 = vsel %vm1094, %v1096, %v1092
        %v1098 = vmul.f32 1.0, %v1097
        %s1099 = scalar_lea.vmem %s5, 16
        %v1100 = vld [vmem:[%s1099] sm:$0xf]
        %v1101 = vld [vmem:[%s1099 + $0x4] sm:$0xf]
        %v1102 = vld [vmem:[%s1099 + $0x8] sm:$0xf]
        %v1103 = vld [vmem:[%s1099 + $0xc] sm:$0xf]
        %s1104 = scalar_lea.vmem %s6, 1
        %v1105 = vld [vmem:[%s1104] sm:$0x1]
        %v1107 = vperm.slane %v1105, 0
        %v1113 = vunpack.c.l.b16 %v1100
        %v1114 = vunpack.c.l.b16 %v1101
        %v1115 = vunpack.c.l.b16 %v1102
        %v1116 = vunpack.c.l.b16 %v1103
        %v1117 = vpack.c.b16 %v1114, %v1113
        %v1118 = vpack.c.b16 %v1116, %v1115
        %1121 = vmatpush.bf16.msra.mxu0 0
        %1122 = vmatpush.bf16.msra.mxu0 0
        %1123 = vmatpush.bf16.msra.mxu0 0
        %1124 = vmatpush.bf16.msra.mxu0 0
        %1125 = vmatpush.bf16.msra.mxu0 0
        %1126 = vmatpush.bf16.msra.mxu0 0
        %1127 = vmatpush.bf16.msra.mxu0 %v1118
        %1128 = vmatpush.bf16.msra.mxu0 %v1117
        %1129 = vmatmul.bf16.gmra.mxu0 %v850
        %v1130 = vpop.f32.mrf.mxu0
        %v1131 = vadd.f32 %v1107, %v1130
        %v1132 = vpop.f32.mrf.mxu0
        %v1133 = vadd.f32 %v1107, %v1132
        %1134 = vmatmul.bf16.gmra.mxu0 %v853
        %v1135 = vpop.f32.mrf.mxu0
        %v1136 = vadd.f32 %v1107, %v1135
        %v1137 = vpop.f32.mrf.mxu0
        %v1138 = vadd.f32 %v1107, %v1137
        %1139 = vmatmul.bf16.gmra.mxu0 %v856
        %v1140 = vpop.f32.mrf.mxu0
        %v1141 = vadd.f32 %v1107, %v1140
        %v1142 = vpop.f32.mrf.mxu0
        %v1143 = vadd.f32 %v1107, %v1142
        %1144 = vmatmul.bf16.gmra.mxu0 %v859
        %v1145 = vpop.f32.mrf.mxu0
        %v1146 = vadd.f32 %v1107, %v1145
        %v1147 = vpop.f32.mrf.mxu0
        %v1148 = vadd.f32 %v1107, %v1147
        %1149 = vdwg.mxu0
        %s1150 = scalar_lea.vmem %s7, 16
        %v1151 = vld [vmem:[%s1150] sm:$0xf]
        %v1152 = vld [vmem:[%s1150 + $0x4] sm:$0xf]
        %v1153 = vld [vmem:[%s1150 + $0x8] sm:$0xf]
        %v1154 = vld [vmem:[%s1150 + $0xc] sm:$0xf]
        %s1155 = scalar_lea.vmem [#allocation7], 1
        %v1156 = vld [vmem:[%s1155] sm:$0x1]
        %v1158 = vperm.slane %v1156, 0
        %v1164 = vunpack.c.l.b16 %v1151
        %v1165 = vunpack.c.l.b16 %v1152
        %v1166 = vunpack.c.l.b16 %v1153
        %v1167 = vunpack.c.l.b16 %v1154
        %v1168 = vpack.c.b16 %v1165, %v1164
        %v1169 = vpack.c.b16 %v1167, %v1166
        %1172 = vmatpush.bf16.msra.mxu0 0
        %1173 = vmatpush.bf16.msra.mxu0 0
        %1174 = vmatpush.bf16.msra.mxu0 0
        %1175 = vmatpush.bf16.msra.mxu0 0
        %1176 = vmatpush.bf16.msra.mxu0 0
        %1177 = vmatpush.bf16.msra.mxu0 0
        %1178 = vmatpush.bf16.msra.mxu0 %v1169
        %1179 = vmatpush.bf16.msra.mxu0 %v1168
        %1180 = vmatmul.bf16.gmra.mxu0 %v586
        %v1181 = vpop.f32.mrf.mxu0
        %v1182 = vadd.f32 %v1158, %v1181
        %v1183 = vpop.f32.mrf.mxu0
        %v1184 = vadd.f32 %v1158, %v1183
        %1185 = vmatmul.bf16.gmra.mxu0 %v589
        %v1186 = vpop.f32.mrf.mxu0
        %v1187 = vadd.f32 %v1158, %v1186
        %v1188 = vpop.f32.mrf.mxu0
        %v1189 = vadd.f32 %v1158, %v1188
        %1190 = vmatmul.bf16.gmra.mxu0 %v592
        %v1191 = vpop.f32.mrf.mxu0
        %v1192 = vadd.f32 %v1158, %v1191
        %v1193 = vpop.f32.mrf.mxu0
        %v1194 = vadd.f32 %v1158, %v1193
        %1195 = vmatmul.bf16.gmra.mxu0 %v595
        %v1196 = vpop.f32.mrf.mxu0
        %v1197 = vadd.f32 %v1158, %v1196
        %v1198 = vpop.f32.mrf.mxu0
        %v1199 = vadd.f32 %v1158, %v1198
        %1200 = vdwg.mxu0
        %v1201 = vadd.f32 %v1131, %v1182
        %v1202 = vadd.f32 %v1133, %v1184
        %v1203 = vadd.f32 %v1136, %v1187
        %v1204 = vadd.f32 %v1138, %v1189
        %v1205 = vadd.f32 %v1141, %v1192
        %v1206 = vadd.f32 %v1143, %v1194
        %v1207 = vadd.f32 %v1146, %v1197
        %v1208 = vadd.f32 %v1148, %v1199
        %v1209 = vxor.u32 %v1201, 2147483648
        %v1210 = vxor.u32 %v1202, 2147483648
        %v1211 = vxor.u32 %v1203, 2147483648
        %v1212 = vxor.u32 %v1204, 2147483648
        %v1213 = vxor.u32 %v1205, 2147483648
        %v1214 = vxor.u32 %v1206, 2147483648
        %v1215 = vxor.u32 %v1207, 2147483648
        %v1216 = vxor.u32 %v1208, 2147483648
        %v1217 = vmul.f32 %v1209, 1.442695
        %v1218 = vpow.pop %v1217
        %v1219 = vmul.f32 %v1210, 1.442695
        %v1220 = vpow.pop %v1219
        %v1221 = vmul.f32 %v1211, 1.442695
        %v1222 = vpow.pop %v1221
        %v1223 = vmul.f32 %v1212, 1.442695
        %v1224 = vpow.pop %v1223
        %v1225 = vmul.f32 %v1213, 1.442695
        %v1226 = vpow.pop %v1225
        %v1227 = vmul.f32 %v1214, 1.442695
        %v1228 = vpow.pop %v1227
        %v1229 = vmul.f32 %v1215, 1.442695
        %v1230 = vpow.pop %v1229
        %v1231 = vmul.f32 %v1216, 1.442695
        %v1232 = vpow.pop %v1231
        %v1233 = vadd.f32 %v1218, 1.0
        %v1234 = vadd.f32 %v1220, 1.0
        %v1235 = vadd.f32 %v1222, 1.0
        %v1236 = vadd.f32 %v1224, 1.0
        %v1237 = vadd.f32 %v1226, 1.0
        %v1238 = vadd.f32 %v1228, 1.0
        %v1239 = vadd.f32 %v1230, 1.0
        %v1240 = vadd.f32 %v1232, 1.0
        %v1241 = vrcp.pop %v1233
        %v1242 = vmul.f32 %v1233, %v1241
        %v1243 = vsub.f32 1.0, %v1242
        %v1244 = vmul.f32 %v1241, %v1243
        %v1245 = vadd.f32 %v1241, %v1244
        %vm1246 = vweird.f32 %v1233
        %vm1247 = vweird.f32 %v1241
        %vm1248 = vmor %vm1246, %vm1247
        %v1249 = vsel %vm1248, %v1241, %v1245
        %v1250 = vand.u32 2147483647, %v1233
        %vm1251 = vcmp.eq.f32.partialorder %v1250, 8.507059e+37
        %v1252 = vand.u32 %v1233, 2147483648
        %v1253 = vor.u32 1.1754944e-38, %v1252
        %v1254 = vsel %vm1251, %v1253, %v1249
        %v1255 = vmul.f32 1.0, %v1254
        %v1256 = vrcp.pop %v1234
        %v1257 = vmul.f32 %v1234, %v1256
        %v1258 = vsub.f32 1.0, %v1257
        %v1259 = vmul.f32 %v1256, %v1258
        %v1260 = vadd.f32 %v1256, %v1259
        %vm1261 = vweird.f32 %v1234
        %vm1262 = vweird.f32 %v1256
        %vm1263 = vmor %vm1261, %vm1262
        %v1264 = vsel %vm1263, %v1256, %v1260
        %v1265 = vand.u32 2147483647, %v1234
        %vm1266 = vcmp.eq.f32.partialorder %v1265, 8.507059e+37
        %v1267 = vand.u32 %v1234, 2147483648
        %v1268 = vor.u32 1.1754944e-38, %v1267
        %v1269 = vsel %vm1266, %v1268, %v1264
        %v1270 = vmul.f32 1.0, %v1269
        %v1271 = vrcp.pop %v1235
        %v1272 = vmul.f32 %v1235, %v1271
        %v1273 = vsub.f32 1.0, %v1272
        %v1274 = vmul.f32 %v1271, %v1273
        %v1275 = vadd.f32 %v1271, %v1274
        %vm1276 = vweird.f32 %v1235
        %vm1277 = vweird.f32 %v1271
        %vm1278 = vmor %vm1276, %vm1277
        %v1279 = vsel %vm1278, %v1271, %v1275
        %v1280 = vand.u32 2147483647, %v1235
        %vm1281 = vcmp.eq.f32.partialorder %v1280, 8.507059e+37
        %v1282 = vand.u32 %v1235, 2147483648
        %v1283 = vor.u32 1.1754944e-38, %v1282
        %v1284 = vsel %vm1281, %v1283, %v1279
        %v1285 = vmul.f32 1.0, %v1284
        %v1286 = vrcp.pop %v1236
        %v1287 = vmul.f32 %v1236, %v1286
        %v1288 = vsub.f32 1.0, %v1287
        %v1289 = vmul.f32 %v1286, %v1288
        %v1290 = vadd.f32 %v1286, %v1289
        %vm1291 = vweird.f32 %v1236
        %vm1292 = vweird.f32 %v1286
        %vm1293 = vmor %vm1291, %vm1292
        %v1294 = vsel %vm1293, %v1286, %v1290
        %v1295 = vand.u32 2147483647, %v1236
        %vm1296 = vcmp.eq.f32.partialorder %v1295, 8.507059e+37
        %v1297 = vand.u32 %v1236, 2147483648
        %v1298 = vor.u32 1.1754944e-38, %v1297
        %v1299 = vsel %vm1296, %v1298, %v1294
        %v1300 = vmul.f32 1.0, %v1299
        %v1301 = vrcp.pop %v1237
        %v1302 = vmul.f32 %v1237, %v1301
        %v1303 = vsub.f32 1.0, %v1302
        %v1304 = vmul.f32 %v1301, %v1303
        %v1305 = vadd.f32 %v1301, %v1304
        %vm1306 = vweird.f32 %v1237
        %vm1307 = vweird.f32 %v1301
        %vm1308 = vmor %vm1306, %vm1307
        %v1309 = vsel %vm1308, %v1301, %v1305
        %v1310 = vand.u32 2147483647, %v1237
        %vm1311 = vcmp.eq.f32.partialorder %v1310, 8.507059e+37
        %v1312 = vand.u32 %v1237, 2147483648
        %v1313 = vor.u32 1.1754944e-38, %v1312
        %v1314 = vsel %vm1311, %v1313, %v1309
        %v1315 = vmul.f32 1.0, %v1314
        %v1316 = vrcp.pop %v1238
        %v1317 = vmul.f32 %v1238, %v1316
        %v1318 = vsub.f32 1.0, %v1317
        %v1319 = vmul.f32 %v1316, %v1318
        %v1320 = vadd.f32 %v1316, %v1319
        %vm1321 = vweird.f32 %v1238
        %vm1322 = vweird.f32 %v1316
        %vm1323 = vmor %vm1321, %vm1322
        %v1324 = vsel %vm1323, %v1316, %v1320
        %v1325 = vand.u32 2147483647, %v1238
        %vm1326 = vcmp.eq.f32.partialorder %v1325, 8.507059e+37
        %v1327 = vand.u32 %v1238, 2147483648
        %v1328 = vor.u32 1.1754944e-38, %v1327
        %v1329 = vsel %vm1326, %v1328, %v1324
        %v1330 = vmul.f32 1.0, %v1329
        %v1331 = vrcp.pop %v1239
        %v1332 = vmul.f32 %v1239, %v1331
        %v1333 = vsub.f32 1.0, %v1332
        %v1334 = vmul.f32 %v1331, %v1333
        %v1335 = vadd.f32 %v1331, %v1334
        %vm1336 = vweird.f32 %v1239
        %vm1337 = vweird.f32 %v1331
        %vm1338 = vmor %vm1336, %vm1337
        %v1339 = vsel %vm1338, %v1331, %v1335
        %v1340 = vand.u32 2147483647, %v1239
        %vm1341 = vcmp.eq.f32.partialorder %v1340, 8.507059e+37
        %v1342 = vand.u32 %v1239, 2147483648
        %v1343 = vor.u32 1.1754944e-38, %v1342
        %v1344 = vsel %vm1341, %v1343, %v1339
        %v1345 = vmul.f32 1.0, %v1344
        %v1346 = vrcp.pop %v1240
        %v1347 = vmul.f32 %v1240, %v1346
        %v1348 = vsub.f32 1.0, %v1347
        %v1349 = vmul.f32 %v1346, %v1348
        %v1350 = vadd.f32 %v1346, %v1349
        %vm1351 = vweird.f32 %v1240
        %vm1352 = vweird.f32 %v1346
        %vm1353 = vmor %vm1351, %vm1352
        %v1354 = vsel %vm1353, %v1346, %v1350
        %v1355 = vand.u32 2147483647, %v1240
        %vm1356 = vcmp.eq.f32.partialorder %v1355, 8.507059e+37
        %v1357 = vand.u32 %v1240, 2147483648
        %v1358 = vor.u32 1.1754944e-38, %v1357
        %v1359 = vsel %vm1356, %v1358, %v1354
        %v1360 = vmul.f32 1.0, %v1359
        %s1361 = scalar_lea.vmem %s5, 32
        %v1362 = vld [vmem:[%s1361] sm:$0xf]
        %v1363 = vld [vmem:[%s1361 + $0x4] sm:$0xf]
        %v1364 = vld [vmem:[%s1361 + $0x8] sm:$0xf]
        %v1365 = vld [vmem:[%s1361 + $0xc] sm:$0xf]
        %s1366 = scalar_lea.vmem %s6, 2
        %v1367 = vld [vmem:[%s1366] sm:$0x1]
        %v1369 = vperm.slane %v1367, 0
        %v1375 = vunpack.c.l.b16 %v1362
        %v1376 = vunpack.c.l.b16 %v1363
        %v1377 = vunpack.c.l.b16 %v1364
        %v1378 = vunpack.c.l.b16 %v1365
        %v1379 = vpack.c.b16 %v1376, %v1375
        %v1380 = vpack.c.b16 %v1378, %v1377
        %1383 = vmatpush.bf16.msra.mxu0 0
        %1384 = vmatpush.bf16.msra.mxu0 0
        %1385 = vmatpush.bf16.msra.mxu0 0
        %1386 = vmatpush.bf16.msra.mxu0 0
        %1387 = vmatpush.bf16.msra.mxu0 0
        %1388 = vmatpush.bf16.msra.mxu0 0
        %1389 = vmatpush.bf16.msra.mxu0 %v1380
        %1390 = vmatpush.bf16.msra.mxu0 %v1379
        %1391 = vmatmul.bf16.gmra.mxu0 %v850
        %v1392 = vpop.f32.mrf.mxu0
        %v1393 = vadd.f32 %v1369, %v1392
        %v1394 = vpop.f32.mrf.mxu0
        %v1395 = vadd.f32 %v1369, %v1394
        %1396 = vmatmul.bf16.gmra.mxu0 %v853
        %v1397 = vpop.f32.mrf.mxu0
        %v1398 = vadd.f32 %v1369, %v1397
        %v1399 = vpop.f32.mrf.mxu0
        %v1400 = vadd.f32 %v1369, %v1399
        %1401 = vmatmul.bf16.gmra.mxu0 %v856
        %v1402 = vpop.f32.mrf.mxu0
        %v1403 = vadd.f32 %v1369, %v1402
        %v1404 = vpop.f32.mrf.mxu0
        %v1405 = vadd.f32 %v1369, %v1404
        %1406 = vmatmul.bf16.gmra.mxu0 %v859
        %v1407 = vpop.f32.mrf.mxu0
        %v1408 = vadd.f32 %v1369, %v1407
        %v1409 = vpop.f32.mrf.mxu0
        %v1410 = vadd.f32 %v1369, %v1409
        %1411 = vdwg.mxu0
        %s1412 = scalar_lea.vmem %s7, 32
        %v1413 = vld [vmem:[%s1412] sm:$0xf]
        %v1414 = vld [vmem:[%s1412 + $0x4] sm:$0xf]
        %v1415 = vld [vmem:[%s1412 + $0x8] sm:$0xf]
        %v1416 = vld [vmem:[%s1412 + $0xc] sm:$0xf]
        %s1417 = scalar_lea.vmem [#allocation7], 2
        %v1418 = vld [vmem:[%s1417] sm:$0x1]
        %v1420 = vperm.slane %v1418, 0
        %v1426 = vunpack.c.l.b16 %v1413
        %v1427 = vunpack.c.l.b16 %v1414
        %v1428 = vunpack.c.l.b16 %v1415
        %v1429 = vunpack.c.l.b16 %v1416
        %v1430 = vpack.c.b16 %v1427, %v1426
        %v1431 = vpack.c.b16 %v1429, %v1428
        %1434 = vmatpush.bf16.msra.mxu0 0
        %1435 = vmatpush.bf16.msra.mxu0 0
        %1436 = vmatpush.bf16.msra.mxu0 0
        %1437 = vmatpush.bf16.msra.mxu0 0
        %1438 = vmatpush.bf16.msra.mxu0 0
        %1439 = vmatpush.bf16.msra.mxu0 0
        %1440 = vmatpush.bf16.msra.mxu0 %v1431
        %1441 = vmatpush.bf16.msra.mxu0 %v1430
        %1442 = vmatmul.bf16.gmra.mxu0 %v586
        %v1443 = vpop.f32.mrf.mxu0
        %v1444 = vadd.f32 %v1420, %v1443
        %v1445 = vpop.f32.mrf.mxu0
        %v1446 = vadd.f32 %v1420, %v1445
        %1447 = vmatmul.bf16.gmra.mxu0 %v589
        %v1448 = vpop.f32.mrf.mxu0
        %v1449 = vadd.f32 %v1420, %v1448
        %v1450 = vpop.f32.mrf.mxu0
        %v1451 = vadd.f32 %v1420, %v1450
        %1452 = vmatmul.bf16.gmra.mxu0 %v592
        %v1453 = vpop.f32.mrf.mxu0
        %v1454 = vadd.f32 %v1420, %v1453
        %v1455 = vpop.f32.mrf.mxu0
        %v1456 = vadd.f32 %v1420, %v1455
        %1457 = vmatmul.bf16.gmra.mxu0 %v595
        %v1458 = vpop.f32.mrf.mxu0
        %v1459 = vadd.f32 %v1420, %v1458
        %v1460 = vpop.f32.mrf.mxu0
        %v1461 = vadd.f32 %v1420, %v1460
        %1462 = vdwg.mxu0
        %v1463 = vmul.f32 %v993, %v1444
        %v1464 = vmul.f32 %v1008, %v1446
        %v1465 = vmul.f32 %v1023, %v1449
        %v1466 = vmul.f32 %v1038, %v1451
        %v1467 = vmul.f32 %v1053, %v1454
        %v1468 = vmul.f32 %v1068, %v1456
        %v1469 = vmul.f32 %v1083, %v1459
        %v1470 = vmul.f32 %v1098, %v1461
        %v1471 = vadd.f32 %v1393, %v1463
        %v1472 = vadd.f32 %v1395, %v1464
        %v1473 = vadd.f32 %v1398, %v1465
        %v1474 = vadd.f32 %v1400, %v1466
        %v1475 = vadd.f32 %v1403, %v1467
        %v1476 = vadd.f32 %v1405, %v1468
        %v1477 = vadd.f32 %v1408, %v1469
        %v1478 = vadd.f32 %v1410, %v1470
        %v1479 = vtanh.pop %v1471
        %v1480 = vtanh.pop %v1472
        %v1481 = vtanh.pop %v1473
        %v1482 = vtanh.pop %v1474
        %v1483 = vtanh.pop %v1475
        %v1484 = vtanh.pop %v1476
        %v1485 = vtanh.pop %v1477
        %v1486 = vtanh.pop %v1478
        %v1487 = vsub.f32 1.0, %v1255
        %v1488 = vsub.f32 1.0, %v1270
        %v1489 = vsub.f32 1.0, %v1285
        %v1490 = vsub.f32 1.0, %v1300
        %v1491 = vsub.f32 1.0, %v1315
        %v1492 = vsub.f32 1.0, %v1330
        %v1493 = vsub.f32 1.0, %v1345
        %v1494 = vsub.f32 1.0, %v1360
        %v1495 = vmul.f32 %v1487, %v1479
        %v1496 = vmul.f32 %v1488, %v1480
        %v1497 = vmul.f32 %v1489, %v1481
        %v1498 = vmul.f32 %v1490, %v1482
        %v1499 = vmul.f32 %v1491, %v1483
        %v1500 = vmul.f32 %v1492, %v1484
        %v1501 = vmul.f32 %v1493, %v1485
        %v1502 = vmul.f32 %v1494, %v1486
        %v1503 = vmul.f32 %v1255, %v552
        %v1504 = vmul.f32 %v1270, %v553
        %v1505 = vmul.f32 %v1285, %v554
        %v1506 = vmul.f32 %v1300, %v555
        %v1507 = vmul.f32 %v1315, %v556
        %v1508 = vmul.f32 %v1330, %v557
        %v1509 = vmul.f32 %v1345, %v558
        %v1510 = vmul.f32 %v1360, %v559
        %v1511 = vadd.f32 %v1495, %v1503
        %v1512 = vadd.f32 %v1496, %v1504
        %v1513 = vadd.f32 %v1497, %v1505
        %v1514 = vadd.f32 %v1498, %v1506
        %v1515 = vadd.f32 %v1499, %v1507
        %v1516 = vadd.f32 %v1500, %v1508
        %v1517 = vadd.f32 %v1501, %v1509
        %v1518 = vadd.f32 %v1502, %v1510
        %v1519 = vpack.c.bf16 %v1512, %v1511
        %v1520 = vpack.c.bf16 %v1514, %v1513
        %v1521 = vpack.c.bf16 %v1516, %v1515
        %v1522 = vpack.c.bf16 %v1518, %v1517
        %s1523 = scalar_lea.vmem %s3, 32
        %v1524 = vld [vmem:[%s1523] sm:$0xf]
        %v1525 = vld [vmem:[%s1523 + $0x4] sm:$0xf]
        %v1526 = vld [vmem:[%s1523 + $0x8] sm:$0xf]
        %v1527 = vld [vmem:[%s1523 + $0xc] sm:$0xf]
        %s1528 = scalar_lea.vmem [#allocation5], 2
        %v1529 = vld [vmem:[%s1528] sm:$0x1]
        %v1531 = vperm.slane %v1529, 0
        %v1537 = vunpack.c.l.b16 %v1524
        %v1538 = vunpack.c.l.b16 %v1525
        %v1539 = vunpack.c.l.b16 %v1526
        %v1540 = vunpack.c.l.b16 %v1527
        %v1541 = vpack.c.b16 %v1538, %v1537
        %v1542 = vpack.c.b16 %v1540, %v1539
        %v1546 = vsel %vm584, %v1519, 0
        %v1549 = vsel %vm584, %v1520, 0
        %v1552 = vsel %vm584, %v1521, 0
        %v1555 = vsel %vm584, %v1522, 0
        %1557 = vmatpush.bf16.msra.mxu0 0
        %1558 = vmatpush.bf16.msra.mxu0 0
        %1559 = vmatpush.bf16.msra.mxu0 0
        %1560 = vmatpush.bf16.msra.mxu0 0
        %1561 = vmatpush.bf16.msra.mxu0 0
        %1562 = vmatpush.bf16.msra.mxu0 0
        %1563 = vmatpush.bf16.msra.mxu0 %v1542
        %1564 = vmatpush.bf16.msra.mxu0 %v1541
        %1565 = vmatmul.bf16.gmra.mxu0 %v1546
        %v1566 = vpop.f32.mrf.mxu0
        %v1567 = vadd.f32 %v1531, %v1566
        %v1568 = vpop.f32.mrf.mxu0
        %v1569 = vadd.f32 %v1531, %v1568
        %1570 = vmatmul.bf16.gmra.mxu0 %v1549
        %v1571 = vpop.f32.mrf.mxu0
        %v1572 = vadd.f32 %v1531, %v1571
        %v1573 = vpop.f32.mrf.mxu0
        %v1574 = vadd.f32 %v1531, %v1573
        %1575 = vmatmul.bf16.gmra.mxu0 %v1552
        %v1576 = vpop.f32.mrf.mxu0
        %v1577 = vadd.f32 %v1531, %v1576
        %v1578 = vpop.f32.mrf.mxu0
        %v1579 = vadd.f32 %v1531, %v1578
        %1580 = vmatmul.bf16.gmra.mxu0 %v1555
        %v1581 = vpop.f32.mrf.mxu0
        %v1582 = vadd.f32 %v1531, %v1581
        %v1583 = vpop.f32.mrf.mxu0
        %v1584 = vadd.f32 %v1531, %v1583
        %1585 = vdwg.mxu0
        %v1586 = vpack.c.bf16 %v1569, %v1567
        %v1587 = vpack.c.bf16 %v1574, %v1572
        %v1588 = vpack.c.bf16 %v1579, %v1577
        %v1589 = vpack.c.bf16 %v1584, %v1582
        %s1590 = scalar_lea.vmem %s3, 48
        %v1591 = vld [vmem:[%s1590] sm:$0xf]
        %v1592 = vld [vmem:[%s1590 + $0x4] sm:$0xf]
        %v1593 = vld [vmem:[%s1590 + $0x8] sm:$0xf]
        %v1594 = vld [vmem:[%s1590 + $0xc] sm:$0xf]
        %s1595 = scalar_lea.vmem [#allocation5], 3
        %v1596 = vld [vmem:[%s1595] sm:$0x1]
        %v1598 = vperm.slane %v1596, 0
        %v1604 = vunpack.c.l.b16 %v1591
        %v1605 = vunpack.c.l.b16 %v1592
        %v1606 = vunpack.c.l.b16 %v1593
        %v1607 = vunpack.c.l.b16 %v1594
        %v1608 = vpack.c.b16 %v1605, %v1604
        %v1609 = vpack.c.b16 %v1607, %v1606
        %1612 = vmatpush.bf16.msra.mxu0 0
        %1613 = vmatpush.bf16.msra.mxu0 0
        %1614 = vmatpush.bf16.msra.mxu0 0
        %1615 = vmatpush.bf16.msra.mxu0 0
        %1616 = vmatpush.bf16.msra.mxu0 0
        %1617 = vmatpush.bf16.msra.mxu0 0
        %1618 = vmatpush.bf16.msra.mxu0 %v1609
        %1619 = vmatpush.bf16.msra.mxu0 %v1608
        %1620 = vmatmul.bf16.gmra.mxu0 %v1546
        %v1621 = vpop.f32.mrf.mxu0
        %v1622 = vadd.f32 %v1598, %v1621
        %v1623 = vpop.f32.mrf.mxu0
        %v1624 = vadd.f32 %v1598, %v1623
        %1625 = vmatmul.bf16.gmra.mxu0 %v1549
        %v1626 = vpop.f32.mrf.mxu0
        %v1627 = vadd.f32 %v1598, %v1626
        %v1628 = vpop.f32.mrf.mxu0
        %v1629 = vadd.f32 %v1598, %v1628
        %1630 = vmatmul.bf16.gmra.mxu0 %v1552
        %v1631 = vpop.f32.mrf.mxu0
        %v1632 = vadd.f32 %v1598, %v1631
        %v1633 = vpop.f32.mrf.mxu0
        %v1634 = vadd.f32 %v1598, %v1633
        %1635 = vmatmul.bf16.gmra.mxu0 %v1555
        %v1636 = vpop.f32.mrf.mxu0
        %v1637 = vadd.f32 %v1598, %v1636
        %v1638 = vpop.f32.mrf.mxu0
        %v1639 = vadd.f32 %v1598, %v1638
        %1640 = vdwg.mxu0
        %v1641 = vpack.c.bf16 %v1624, %v1622
        %v1642 = vpack.c.bf16 %v1629, %v1627
        %v1643 = vpack.c.bf16 %v1634, %v1632
        %v1644 = vpack.c.bf16 %v1639, %v1637
        %1645 = vmatpush.bf16.msra.mxu0 0
        %1646 = vmatpush.bf16.msra.mxu0 0
        %1647 = vmatpush.bf16.msra.mxu0 0
        %1648 = vmatpush.bf16.msra.mxu0 0
        %1649 = vmatpush.bf16.msra.mxu0 %v1644
        %1650 = vmatpush.bf16.msra.mxu0 %v1643
        %1651 = vmatpush.bf16.msra.mxu0 %v1642
        %1652 = vmatpush.bf16.msra.mxu0 %v1641
        %1653 = vmatmul.bf16.gmra.mxu0 %v724
        %v1654 = vpop.f32.mrf.mxu0
        %v1655 = vadd.f32 0.0, %v1654
        %v1656 = vpop.f32.mrf.mxu0
        %v1657 = vadd.f32 0.0, %v1656
        %1658 = vmatmul.bf16.gmra.mxu0 %v727
        %v1659 = vpop.f32.mrf.mxu0
        %v1660 = vadd.f32 0.0, %v1659
        %v1661 = vpop.f32.mrf.mxu0
        %v1662 = vadd.f32 0.0, %v1661
        %1663 = vmatmul.bf16.gmra.mxu0 %v730
        %v1664 = vpop.f32.mrf.mxu0
        %v1665 = vadd.f32 0.0, %v1664
        %v1666 = vpop.f32.mrf.mxu0
        %v1667 = vadd.f32 0.0, %v1666
        %1668 = vmatmul.bf16.gmra.mxu0 %v733
        %v1669 = vpop.f32.mrf.mxu0
        %v1670 = vadd.f32 0.0, %v1669
        %v1671 = vpop.f32.mrf.mxu0
        %v1672 = vadd.f32 0.0, %v1671
        %1673 = vdwg.mxu0
        %1674 = vmatpush.bf16.msra.mxu0 0
        %1675 = vmatpush.bf16.msra.mxu0 0
        %1676 = vmatpush.bf16.msra.mxu0 0
        %1677 = vmatpush.bf16.msra.mxu0 0
        %1678 = vmatpush.bf16.msra.mxu0 %v1589
        %1679 = vmatpush.bf16.msra.mxu0 %v1588
        %1680 = vmatpush.bf16.msra.mxu0 %v1587
        %1681 = vmatpush.bf16.msra.mxu0 %v1586
        %1682 = vmatmul.bf16.gmra.mxu0 %v785
        %v1683 = vpop.f32.mrf.mxu0
        %v1684 = vadd.f32 %v1655, %v1683
        %v1685 = vpop.f32.mrf.mxu0
        %v1686 = vadd.f32 %v1657, %v1685
        %1687 = vmatmul.bf16.gmra.mxu0 %v788
        %v1688 = vpop.f32.mrf.mxu0
        %v1689 = vadd.f32 %v1660, %v1688
        %v1690 = vpop.f32.mrf.mxu0
        %v1691 = vadd.f32 %v1662, %v1690
        %1692 = vmatmul.bf16.gmra.mxu0 %v791
        %v1693 = vpop.f32.mrf.mxu0
        %v1694 = vadd.f32 %v1665, %v1693
        %v1695 = vpop.f32.mrf.mxu0
        %v1696 = vadd.f32 %v1667, %v1695
        %1697 = vmatmul.bf16.gmra.mxu0 %v794
        %v1698 = vpop.f32.mrf.mxu0
        %v1699 = vadd.f32 %v1670, %v1698
        %v1700 = vpop.f32.mrf.mxu0
        %v1701 = vadd.f32 %v1672, %v1700
        %1702 = vdwg.mxu0
        %v1703 = vpack.c.bf16 %v1686, %v1684
        %v1704 = vpack.c.bf16 %v1691, %v1689
        %v1705 = vpack.c.bf16 %v1696, %v1694
        %v1706 = vpack.c.bf16 %v1701, %v1699
        %s1707 = scalar_lea.vmem %s5, 48
        %v1708 = vld [vmem:[%s1707] sm:$0xf]
        %v1709 = vld [vmem:[%s1707 + $0x4] sm:$0xf]
        %v1710 = vld [vmem:[%s1707 + $0x8] sm:$0xf]
        %v1711 = vld [vmem:[%s1707 + $0xc] sm:$0xf]
        %s1712 = scalar_lea.vmem %s6, 3
        %v1713 = vld [vmem:[%s1712] sm:$0x1]
        %v1715 = vperm.slane %v1713, 0
        %v1721 = vunpack.c.l.b16 %v1708
        %v1722 = vunpack.c.l.b16 %v1709
        %v1723 = vunpack.c.l.b16 %v1710
        %v1724 = vunpack.c.l.b16 %v1711
        %v1725 = vpack.c.b16 %v1722, %v1721
        %v1726 = vpack.c.b16 %v1724, %v1723
        %v1730 = vsel %vm584, %v1703, 0
        %v1733 = vsel %vm584, %v1704, 0
        %v1736 = vsel %vm584, %v1705, 0
        %v1739 = vsel %vm584, %v1706, 0
        %1741 = vmatpush.bf16.msra.mxu0 0
        %1742 = vmatpush.bf16.msra.mxu0 0
        %1743 = vmatpush.bf16.msra.mxu0 0
        %1744 = vmatpush.bf16.msra.mxu0 0
        %1745 = vmatpush.bf16.msra.mxu0 0
        %1746 = vmatpush.bf16.msra.mxu0 0
        %1747 = vmatpush.bf16.msra.mxu0 %v1726
        %1748 = vmatpush.bf16.msra.mxu0 %v1725
        %1749 = vmatmul.bf16.gmra.mxu0 %v1730
        %v1750 = vpop.f32.mrf.mxu0
        %v1751 = vadd.f32 %v1715, %v1750
        %v1752 = vpop.f32.mrf.mxu0
        %v1753 = vadd.f32 %v1715, %v1752
        %1754 = vmatmul.bf16.gmra.mxu0 %v1733
        %v1755 = vpop.f32.mrf.mxu0
        %v1756 = vadd.f32 %v1715, %v1755
        %v1757 = vpop.f32.mrf.mxu0
        %v1758 = vadd.f32 %v1715, %v1757
        %1759 = vmatmul.bf16.gmra.mxu0 %v1736
        %v1760 = vpop.f32.mrf.mxu0
        %v1761 = vadd.f32 %v1715, %v1760
        %v1762 = vpop.f32.mrf.mxu0
        %v1763 = vadd.f32 %v1715, %v1762
        %1764 = vmatmul.bf16.gmra.mxu0 %v1739
        %v1765 = vpop.f32.mrf.mxu0
        %v1766 = vadd.f32 %v1715, %v1765
        %v1767 = vpop.f32.mrf.mxu0
        %v1768 = vadd.f32 %v1715, %v1767
        %1769 = vdwg.mxu0
        %s1770 = scalar_lea.vmem %s7, 48
        %v1771 = vld [vmem:[%s1770] sm:$0xf]
        %v1772 = vld [vmem:[%s1770 + $0x4] sm:$0xf]
        %v1773 = vld [vmem:[%s1770 + $0x8] sm:$0xf]
        %v1774 = vld [vmem:[%s1770 + $0xc] sm:$0xf]
        %s1775 = scalar_lea.vmem [#allocation7], 3
        %v1776 = vld [vmem:[%s1775] sm:$0x1]
        %v1778 = vperm.slane %v1776, 0
        %v1784 = vunpack.c.l.b16 %v1771
        %v1785 = vunpack.c.l.b16 %v1772
        %v1786 = vunpack.c.l.b16 %v1773
        %v1787 = vunpack.c.l.b16 %v1774
        %v1788 = vpack.c.b16 %v1785, %v1784
        %v1789 = vpack.c.b16 %v1787, %v1786
        %1792 = vmatpush.bf16.msra.mxu0 0
        %1793 = vmatpush.bf16.msra.mxu0 0
        %1794 = vmatpush.bf16.msra.mxu0 0
        %1795 = vmatpush.bf16.msra.mxu0 0
        %1796 = vmatpush.bf16.msra.mxu0 0
        %1797 = vmatpush.bf16.msra.mxu0 0
        %1798 = vmatpush.bf16.msra.mxu0 %v1789
        %1799 = vmatpush.bf16.msra.mxu0 %v1788
        %1800 = vmatmul.bf16.gmra.mxu0 %v1546
        %v1801 = vpop.f32.mrf.mxu0
        %v1802 = vadd.f32 %v1778, %v1801
        %v1803 = vpop.f32.mrf.mxu0
        %v1804 = vadd.f32 %v1778, %v1803
        %1805 = vmatmul.bf16.gmra.mxu0 %v1549
        %v1806 = vpop.f32.mrf.mxu0
        %v1807 = vadd.f32 %v1778, %v1806
        %v1808 = vpop.f32.mrf.mxu0
        %v1809 = vadd.f32 %v1778, %v1808
        %1810 = vmatmul.bf16.gmra.mxu0 %v1552
        %v1811 = vpop.f32.mrf.mxu0
        %v1812 = vadd.f32 %v1778, %v1811
        %v1813 = vpop.f32.mrf.mxu0
        %v1814 = vadd.f32 %v1778, %v1813
        %1815 = vmatmul.bf16.gmra.mxu0 %v1555
        %v1816 = vpop.f32.mrf.mxu0
        %v1817 = vadd.f32 %v1778, %v1816
        %v1818 = vpop.f32.mrf.mxu0
        %v1819 = vadd.f32 %v1778, %v1818
        %1820 = vdwg.mxu0
        %v1821 = vadd.f32 %v1751, %v1802
        %v1822 = vadd.f32 %v1753, %v1804
        %v1823 = vadd.f32 %v1756, %v1807
        %v1824 = vadd.f32 %v1758, %v1809
        %v1825 = vadd.f32 %v1761, %v1812
        %v1826 = vadd.f32 %v1763, %v1814
        %v1827 = vadd.f32 %v1766, %v1817
        %v1828 = vadd.f32 %v1768, %v1819
        %v1829 = vxor.u32 %v1821, 2147483648
        %v1830 = vxor.u32 %v1822, 2147483648
        %v1831 = vxor.u32 %v1823, 2147483648
        %v1832 = vxor.u32 %v1824, 2147483648
        %v1833 = vxor.u32 %v1825, 2147483648
        %v1834 = vxor.u32 %v1826, 2147483648
        %v1835 = vxor.u32 %v1827, 2147483648
        %v1836 = vxor.u32 %v1828, 2147483648
        %v1837 = vmul.f32 %v1829, 1.442695
        %v1838 = vpow.pop %v1837
        %v1839 = vmul.f32 %v1830, 1.442695
        %v1840 = vpow.pop %v1839
        %v1841 = vmul.f32 %v1831, 1.442695
        %v1842 = vpow.pop %v1841
        %v1843 = vmul.f32 %v1832, 1.442695
        %v1844 = vpow.pop %v1843
        %v1845 = vmul.f32 %v1833, 1.442695
        %v1846 = vpow.pop %v1845
        %v1847 = vmul.f32 %v1834, 1.442695
        %v1848 = vpow.pop %v1847
        %v1849 = vmul.f32 %v1835, 1.442695
        %v1850 = vpow.pop %v1849
        %v1851 = vmul.f32 %v1836, 1.442695
        %v1852 = vpow.pop %v1851
        %v1853 = vadd.f32 %v1838, 1.0
        %v1854 = vadd.f32 %v1840, 1.0
        %v1855 = vadd.f32 %v1842, 1.0
        %v1856 = vadd.f32 %v1844, 1.0
        %v1857 = vadd.f32 %v1846, 1.0
        %v1858 = vadd.f32 %v1848, 1.0
        %v1859 = vadd.f32 %v1850, 1.0
        %v1860 = vadd.f32 %v1852, 1.0
        %v1861 = vrcp.pop %v1853
        %v1862 = vmul.f32 %v1853, %v1861
        %v1863 = vsub.f32 1.0, %v1862
        %v1864 = vmul.f32 %v1861, %v1863
        %v1865 = vadd.f32 %v1861, %v1864
        %vm1866 = vweird.f32 %v1853
        %vm1867 = vweird.f32 %v1861
        %vm1868 = vmor %vm1866, %vm1867
        %v1869 = vsel %vm1868, %v1861, %v1865
        %v1870 = vand.u32 2147483647, %v1853
        %vm1871 = vcmp.eq.f32.partialorder %v1870, 8.507059e+37
        %v1872 = vand.u32 %v1853, 2147483648
        %v1873 = vor.u32 1.1754944e-38, %v1872
        %v1874 = vsel %vm1871, %v1873, %v1869
        %v1875 = vmul.f32 1.0, %v1874
        %v1876 = vrcp.pop %v1854
        %v1877 = vmul.f32 %v1854, %v1876
        %v1878 = vsub.f32 1.0, %v1877
        %v1879 = vmul.f32 %v1876, %v1878
        %v1880 = vadd.f32 %v1876, %v1879
        %vm1881 = vweird.f32 %v1854
        %vm1882 = vweird.f32 %v1876
        %vm1883 = vmor %vm1881, %vm1882
        %v1884 = vsel %vm1883, %v1876, %v1880
        %v1885 = vand.u32 2147483647, %v1854
        %vm1886 = vcmp.eq.f32.partialorder %v1885, 8.507059e+37
        %v1887 = vand.u32 %v1854, 2147483648
        %v1888 = vor.u32 1.1754944e-38, %v1887
        %v1889 = vsel %vm1886, %v1888, %v1884
        %v1890 = vmul.f32 1.0, %v1889
        %v1891 = vrcp.pop %v1855
        %v1892 = vmul.f32 %v1855, %v1891
        %v1893 = vsub.f32 1.0, %v1892
        %v1894 = vmul.f32 %v1891, %v1893
        %v1895 = vadd.f32 %v1891, %v1894
        %vm1896 = vweird.f32 %v1855
        %vm1897 = vweird.f32 %v1891
        %vm1898 = vmor %vm1896, %vm1897
        %v1899 = vsel %vm1898, %v1891, %v1895
        %v1900 = vand.u32 2147483647, %v1855
        %vm1901 = vcmp.eq.f32.partialorder %v1900, 8.507059e+37
        %v1902 = vand.u32 %v1855, 2147483648
        %v1903 = vor.u32 1.1754944e-38, %v1902
        %v1904 = vsel %vm1901, %v1903, %v1899
        %v1905 = vmul.f32 1.0, %v1904
        %v1906 = vrcp.pop %v1856
        %v1907 = vmul.f32 %v1856, %v1906
        %v1908 = vsub.f32 1.0, %v1907
        %v1909 = vmul.f32 %v1906, %v1908
        %v1910 = vadd.f32 %v1906, %v1909
        %vm1911 = vweird.f32 %v1856
        %vm1912 = vweird.f32 %v1906
        %vm1913 = vmor %vm1911, %vm1912
        %v1914 = vsel %vm1913, %v1906, %v1910
        %v1915 = vand.u32 2147483647, %v1856
        %vm1916 = vcmp.eq.f32.partialorder %v1915, 8.507059e+37
        %v1917 = vand.u32 %v1856, 2147483648
        %v1918 = vor.u32 1.1754944e-38, %v1917
        %v1919 = vsel %vm1916, %v1918, %v1914
        %v1920 = vmul.f32 1.0, %v1919
        %v1921 = vrcp.pop %v1857
        %v1922 = vmul.f32 %v1857, %v1921
        %v1923 = vsub.f32 1.0, %v1922
        %v1924 = vmul.f32 %v1921, %v1923
        %v1925 = vadd.f32 %v1921, %v1924
        %vm1926 = vweird.f32 %v1857
        %vm1927 = vweird.f32 %v1921
        %vm1928 = vmor %vm1926, %vm1927
        %v1929 = vsel %vm1928, %v1921, %v1925
        %v1930 = vand.u32 2147483647, %v1857
        %vm1931 = vcmp.eq.f32.partialorder %v1930, 8.507059e+37
        %v1932 = vand.u32 %v1857, 2147483648
        %v1933 = vor.u32 1.1754944e-38, %v1932
        %v1934 = vsel %vm1931, %v1933, %v1929
        %v1935 = vmul.f32 1.0, %v1934
        %v1936 = vrcp.pop %v1858
        %v1937 = vmul.f32 %v1858, %v1936
        %v1938 = vsub.f32 1.0, %v1937
        %v1939 = vmul.f32 %v1936, %v1938
        %v1940 = vadd.f32 %v1936, %v1939
        %vm1941 = vweird.f32 %v1858
        %vm1942 = vweird.f32 %v1936
        %vm1943 = vmor %vm1941, %vm1942
        %v1944 = vsel %vm1943, %v1936, %v1940
        %v1945 = vand.u32 2147483647, %v1858
        %vm1946 = vcmp.eq.f32.partialorder %v1945, 8.507059e+37
        %v1947 = vand.u32 %v1858, 2147483648
        %v1948 = vor.u32 1.1754944e-38, %v1947
        %v1949 = vsel %vm1946, %v1948, %v1944
        %v1950 = vmul.f32 1.0, %v1949
        %v1951 = vrcp.pop %v1859
        %v1952 = vmul.f32 %v1859, %v1951
        %v1953 = vsub.f32 1.0, %v1952
        %v1954 = vmul.f32 %v1951, %v1953
        %v1955 = vadd.f32 %v1951, %v1954
        %vm1956 = vweird.f32 %v1859
        %vm1957 = vweird.f32 %v1951
        %vm1958 = vmor %vm1956, %vm1957
        %v1959 = vsel %vm1958, %v1951, %v1955
        %v1960 = vand.u32 2147483647, %v1859
        %vm1961 = vcmp.eq.f32.partialorder %v1960, 8.507059e+37
        %v1962 = vand.u32 %v1859, 2147483648
        %v1963 = vor.u32 1.1754944e-38, %v1962
        %v1964 = vsel %vm1961, %v1963, %v1959
        %v1965 = vmul.f32 1.0, %v1964
        %v1966 = vrcp.pop %v1860
        %v1967 = vmul.f32 %v1860, %v1966
        %v1968 = vsub.f32 1.0, %v1967
        %v1969 = vmul.f32 %v1966, %v1968
        %v1970 = vadd.f32 %v1966, %v1969
        %vm1971 = vweird.f32 %v1860
        %vm1972 = vweird.f32 %v1966
        %vm1973 = vmor %vm1971, %vm1972
        %v1974 = vsel %vm1973, %v1966, %v1970
        %v1975 = vand.u32 2147483647, %v1860
        %vm1976 = vcmp.eq.f32.partialorder %v1975, 8.507059e+37
        %v1977 = vand.u32 %v1860, 2147483648
        %v1978 = vor.u32 1.1754944e-38, %v1977
        %v1979 = vsel %vm1976, %v1978, %v1974
        %v1980 = vmul.f32 1.0, %v1979
        %s1981 = scalar_lea.vmem %s5, 64
        %v1982 = vld [vmem:[%s1981] sm:$0xf]
        %v1983 = vld [vmem:[%s1981 + $0x4] sm:$0xf]
        %v1984 = vld [vmem:[%s1981 + $0x8] sm:$0xf]
        %v1985 = vld [vmem:[%s1981 + $0xc] sm:$0xf]
        %s1986 = scalar_lea.vmem %s6, 4
        %v1987 = vld [vmem:[%s1986] sm:$0x1]
        %v1989 = vperm.slane %v1987, 0
        %v1995 = vunpack.c.l.b16 %v1982
        %v1996 = vunpack.c.l.b16 %v1983
        %v1997 = vunpack.c.l.b16 %v1984
        %v1998 = vunpack.c.l.b16 %v1985
        %v1999 = vpack.c.b16 %v1996, %v1995
        %v2000 = vpack.c.b16 %v1998, %v1997
        %2003 = vmatpush.bf16.msra.mxu0 0
        %2004 = vmatpush.bf16.msra.mxu0 0
        %2005 = vmatpush.bf16.msra.mxu0 0
        %2006 = vmatpush.bf16.msra.mxu0 0
        %2007 = vmatpush.bf16.msra.mxu0 0
        %2008 = vmatpush.bf16.msra.mxu0 0
        %2009 = vmatpush.bf16.msra.mxu0 %v2000
        %2010 = vmatpush.bf16.msra.mxu0 %v1999
        %2011 = vmatmul.bf16.gmra.mxu0 %v1730
        %v2012 = vpop.f32.mrf.mxu0
        %v2013 = vadd.f32 %v1989, %v2012
        %v2014 = vpop.f32.mrf.mxu0
        %v2015 = vadd.f32 %v1989, %v2014
        %2016 = vmatmul.bf16.gmra.mxu0 %v1733
        %v2017 = vpop.f32.mrf.mxu0
        %v2018 = vadd.f32 %v1989, %v2017
        %v2019 = vpop.f32.mrf.mxu0
        %v2020 = vadd.f32 %v1989, %v2019
        %2021 = vmatmul.bf16.gmra.mxu0 %v1736
        %v2022 = vpop.f32.mrf.mxu0
        %v2023 = vadd.f32 %v1989, %v2022
        %v2024 = vpop.f32.mrf.mxu0
        %v2025 = vadd.f32 %v1989, %v2024
        %2026 = vmatmul.bf16.gmra.mxu0 %v1739
        %v2027 = vpop.f32.mrf.mxu0
        %v2028 = vadd.f32 %v1989, %v2027
        %v2029 = vpop.f32.mrf.mxu0
        %v2030 = vadd.f32 %v1989, %v2029
        %2031 = vdwg.mxu0
        %s2032 = scalar_lea.vmem %s7, 64
        %v2033 = vld [vmem:[%s2032] sm:$0xf]
        %v2034 = vld [vmem:[%s2032 + $0x4] sm:$0xf]
        %v2035 = vld [vmem:[%s2032 + $0x8] sm:$0xf]
        %v2036 = vld [vmem:[%s2032 + $0xc] sm:$0xf]
        %s2037 = scalar_lea.vmem [#allocation7], 4
        %v2038 = vld [vmem:[%s2037] sm:$0x1]
        %v2040 = vperm.slane %v2038, 0
        %v2046 = vunpack.c.l.b16 %v2033
        %v2047 = vunpack.c.l.b16 %v2034
        %v2048 = vunpack.c.l.b16 %v2035
        %v2049 = vunpack.c.l.b16 %v2036
        %v2050 = vpack.c.b16 %v2047, %v2046
        %v2051 = vpack.c.b16 %v2049, %v2048
        %2054 = vmatpush.bf16.msra.mxu0 0
        %2055 = vmatpush.bf16.msra.mxu0 0
        %2056 = vmatpush.bf16.msra.mxu0 0
        %2057 = vmatpush.bf16.msra.mxu0 0
        %2058 = vmatpush.bf16.msra.mxu0 0
        %2059 = vmatpush.bf16.msra.mxu0 0
        %2060 = vmatpush.bf16.msra.mxu0 %v2051
        %2061 = vmatpush.bf16.msra.mxu0 %v2050
        %2062 = vmatmul.bf16.gmra.mxu0 %v1546
        %v2063 = vpop.f32.mrf.mxu0
        %v2064 = vadd.f32 %v2040, %v2063
        %v2065 = vpop.f32.mrf.mxu0
        %v2066 = vadd.f32 %v2040, %v2065
        %2067 = vmatmul.bf16.gmra.mxu0 %v1549
        %v2068 = vpop.f32.mrf.mxu0
        %v2069 = vadd.f32 %v2040, %v2068
        %v2070 = vpop.f32.mrf.mxu0
        %v2071 = vadd.f32 %v2040, %v2070
        %2072 = vmatmul.bf16.gmra.mxu0 %v1552
        %v2073 = vpop.f32.mrf.mxu0
        %v2074 = vadd.f32 %v2040, %v2073
        %v2075 = vpop.f32.mrf.mxu0
        %v2076 = vadd.f32 %v2040, %v2075
        %2077 = vmatmul.bf16.gmra.mxu0 %v1555
        %v2078 = vpop.f32.mrf.mxu0
        %v2079 = vadd.f32 %v2040, %v2078
        %v2080 = vpop.f32.mrf.mxu0
        %v2081 = vadd.f32 %v2040, %v2080
        %2082 = vdwg.mxu0
        %v2083 = vadd.f32 %v2013, %v2064
        %v2084 = vadd.f32 %v2015, %v2066
        %v2085 = vadd.f32 %v2018, %v2069
        %v2086 = vadd.f32 %v2020, %v2071
        %v2087 = vadd.f32 %v2023, %v2074
        %v2088 = vadd.f32 %v2025, %v2076
        %v2089 = vadd.f32 %v2028, %v2079
        %v2090 = vadd.f32 %v2030, %v2081
        %v2091 = vxor.u32 %v2083, 2147483648
        %v2092 = vxor.u32 %v2084, 2147483648
        %v2093 = vxor.u32 %v2085, 2147483648
        %v2094 = vxor.u32 %v2086, 2147483648
        %v2095 = vxor.u32 %v2087, 2147483648
        %v2096 = vxor.u32 %v2088, 2147483648
        %v2097 = vxor.u32 %v2089, 2147483648
        %v2098 = vxor.u32 %v2090, 2147483648
        %v2099 = vmul.f32 %v2091, 1.442695
        %v2100 = vpow.pop %v2099
        %v2101 = vmul.f32 %v2092, 1.442695
        %v2102 = vpow.pop %v2101
        %v2103 = vmul.f32 %v2093, 1.442695
        %v2104 = vpow.pop %v2103
        %v2105 = vmul.f32 %v2094, 1.442695
        %v2106 = vpow.pop %v2105
        %v2107 = vmul.f32 %v2095, 1.442695
        %v2108 = vpow.pop %v2107
        %v2109 = vmul.f32 %v2096, 1.442695
        %v2110 = vpow.pop %v2109
        %v2111 = vmul.f32 %v2097, 1.442695
        %v2112 = vpow.pop %v2111
        %v2113 = vmul.f32 %v2098, 1.442695
        %v2114 = vpow.pop %v2113
        %v2115 = vadd.f32 %v2100, 1.0
        %v2116 = vadd.f32 %v2102, 1.0
        %v2117 = vadd.f32 %v2104, 1.0
        %v2118 = vadd.f32 %v2106, 1.0
        %v2119 = vadd.f32 %v2108, 1.0
        %v2120 = vadd.f32 %v2110, 1.0
        %v2121 = vadd.f32 %v2112, 1.0
        %v2122 = vadd.f32 %v2114, 1.0
        %v2123 = vrcp.pop %v2115
        %v2124 = vmul.f32 %v2115, %v2123
        %v2125 = vsub.f32 1.0, %v2124
        %v2126 = vmul.f32 %v2123, %v2125
        %v2127 = vadd.f32 %v2123, %v2126
        %vm2128 = vweird.f32 %v2115
        %vm2129 = vweird.f32 %v2123
        %vm2130 = vmor %vm2128, %vm2129
        %v2131 = vsel %vm2130, %v2123, %v2127
        %v2132 = vand.u32 2147483647, %v2115
        %vm2133 = vcmp.eq.f32.partialorder %v2132, 8.507059e+37
        %v2134 = vand.u32 %v2115, 2147483648
        %v2135 = vor.u32 1.1754944e-38, %v2134
        %v2136 = vsel %vm2133, %v2135, %v2131
        %v2137 = vmul.f32 1.0, %v2136
        %v2138 = vrcp.pop %v2116
        %v2139 = vmul.f32 %v2116, %v2138
        %v2140 = vsub.f32 1.0, %v2139
        %v2141 = vmul.f32 %v2138, %v2140
        %v2142 = vadd.f32 %v2138, %v2141
        %vm2143 = vweird.f32 %v2116
        %vm2144 = vweird.f32 %v2138
        %vm2145 = vmor %vm2143, %vm2144
        %v2146 = vsel %vm2145, %v2138, %v2142
        %v2147 = vand.u32 2147483647, %v2116
        %vm2148 = vcmp.eq.f32.partialorder %v2147, 8.507059e+37
        %v2149 = vand.u32 %v2116, 2147483648
        %v2150 = vor.u32 1.1754944e-38, %v2149
        %v2151 = vsel %vm2148, %v2150, %v2146
        %v2152 = vmul.f32 1.0, %v2151
        %v2153 = vrcp.pop %v2117
        %v2154 = vmul.f32 %v2117, %v2153
        %v2155 = vsub.f32 1.0, %v2154
        %v2156 = vmul.f32 %v2153, %v2155
        %v2157 = vadd.f32 %v2153, %v2156
        %vm2158 = vweird.f32 %v2117
        %vm2159 = vweird.f32 %v2153
        %vm2160 = vmor %vm2158, %vm2159
        %v2161 = vsel %vm2160, %v2153, %v2157
        %v2162 = vand.u32 2147483647, %v2117
        %vm2163 = vcmp.eq.f32.partialorder %v2162, 8.507059e+37
        %v2164 = vand.u32 %v2117, 2147483648
        %v2165 = vor.u32 1.1754944e-38, %v2164
        %v2166 = vsel %vm2163, %v2165, %v2161
        %v2167 = vmul.f32 1.0, %v2166
        %v2168 = vrcp.pop %v2118
        %v2169 = vmul.f32 %v2118, %v2168
        %v2170 = vsub.f32 1.0, %v2169
        %v2171 = vmul.f32 %v2168, %v2170
        %v2172 = vadd.f32 %v2168, %v2171
        %vm2173 = vweird.f32 %v2118
        %vm2174 = vweird.f32 %v2168
        %vm2175 = vmor %vm2173, %vm2174
        %v2176 = vsel %vm2175, %v2168, %v2172
        %v2177 = vand.u32 2147483647, %v2118
        %vm2178 = vcmp.eq.f32.partialorder %v2177, 8.507059e+37
        %v2179 = vand.u32 %v2118, 2147483648
        %v2180 = vor.u32 1.1754944e-38, %v2179
        %v2181 = vsel %vm2178, %v2180, %v2176
        %v2182 = vmul.f32 1.0, %v2181
        %v2183 = vrcp.pop %v2119
        %v2184 = vmul.f32 %v2119, %v2183
        %v2185 = vsub.f32 1.0, %v2184
        %v2186 = vmul.f32 %v2183, %v2185
        %v2187 = vadd.f32 %v2183, %v2186
        %vm2188 = vweird.f32 %v2119
        %vm2189 = vweird.f32 %v2183
        %vm2190 = vmor %vm2188, %vm2189
        %v2191 = vsel %vm2190, %v2183, %v2187
        %v2192 = vand.u32 2147483647, %v2119
        %vm2193 = vcmp.eq.f32.partialorder %v2192, 8.507059e+37
        %v2194 = vand.u32 %v2119, 2147483648
        %v2195 = vor.u32 1.1754944e-38, %v2194
        %v2196 = vsel %vm2193, %v2195, %v2191
        %v2197 = vmul.f32 1.0, %v2196
        %v2198 = vrcp.pop %v2120
        %v2199 = vmul.f32 %v2120, %v2198
        %v2200 = vsub.f32 1.0, %v2199
        %v2201 = vmul.f32 %v2198, %v2200
        %v2202 = vadd.f32 %v2198, %v2201
        %vm2203 = vweird.f32 %v2120
        %vm2204 = vweird.f32 %v2198
        %vm2205 = vmor %vm2203, %vm2204
        %v2206 = vsel %vm2205, %v2198, %v2202
        %v2207 = vand.u32 2147483647, %v2120
        %vm2208 = vcmp.eq.f32.partialorder %v2207, 8.507059e+37
        %v2209 = vand.u32 %v2120, 2147483648
        %v2210 = vor.u32 1.1754944e-38, %v2209
        %v2211 = vsel %vm2208, %v2210, %v2206
        %v2212 = vmul.f32 1.0, %v2211
        %v2213 = vrcp.pop %v2121
        %v2214 = vmul.f32 %v2121, %v2213
        %v2215 = vsub.f32 1.0, %v2214
        %v2216 = vmul.f32 %v2213, %v2215
        %v2217 = vadd.f32 %v2213, %v2216
        %vm2218 = vweird.f32 %v2121
        %vm2219 = vweird.f32 %v2213
        %vm2220 = vmor %vm2218, %vm2219
        %v2221 = vsel %vm2220, %v2213, %v2217
        %v2222 = vand.u32 2147483647, %v2121
        %vm2223 = vcmp.eq.f32.partialorder %v2222, 8.507059e+37
        %v2224 = vand.u32 %v2121, 2147483648
        %v2225 = vor.u32 1.1754944e-38, %v2224
        %v2226 = vsel %vm2223, %v2225, %v2221
        %v2227 = vmul.f32 1.0, %v2226
        %v2228 = vrcp.pop %v2122
        %v2229 = vmul.f32 %v2122, %v2228
        %v2230 = vsub.f32 1.0, %v2229
        %v2231 = vmul.f32 %v2228, %v2230
        %v2232 = vadd.f32 %v2228, %v2231
        %vm2233 = vweird.f32 %v2122
        %vm2234 = vweird.f32 %v2228
        %vm2235 = vmor %vm2233, %vm2234
        %v2236 = vsel %vm2235, %v2228, %v2232
        %v2237 = vand.u32 2147483647, %v2122
        %vm2238 = vcmp.eq.f32.partialorder %v2237, 8.507059e+37
        %v2239 = vand.u32 %v2122, 2147483648
        %v2240 = vor.u32 1.1754944e-38, %v2239
        %v2241 = vsel %vm2238, %v2240, %v2236
        %v2242 = vmul.f32 1.0, %v2241
        %s2243 = scalar_lea.vmem %s5, 80
        %v2244 = vld [vmem:[%s2243] sm:$0xf]
        %v2245 = vld [vmem:[%s2243 + $0x4] sm:$0xf]
        %v2246 = vld [vmem:[%s2243 + $0x8] sm:$0xf]
        %v2247 = vld [vmem:[%s2243 + $0xc] sm:$0xf]
        %s2248 = scalar_lea.vmem %s6, 5
        %v2249 = vld [vmem:[%s2248] sm:$0x1]
        %v2251 = vperm.slane %v2249, 0
        %v2257 = vunpack.c.l.b16 %v2244
        %v2258 = vunpack.c.l.b16 %v2245
        %v2259 = vunpack.c.l.b16 %v2246
        %v2260 = vunpack.c.l.b16 %v2247
        %v2261 = vpack.c.b16 %v2258, %v2257
        %v2262 = vpack.c.b16 %v2260, %v2259
        %2265 = vmatpush.bf16.msra.mxu0 0
        %2266 = vmatpush.bf16.msra.mxu0 0
        %2267 = vmatpush.bf16.msra.mxu0 0
        %2268 = vmatpush.bf16.msra.mxu0 0
        %2269 = vmatpush.bf16.msra.mxu0 0
        %2270 = vmatpush.bf16.msra.mxu0 0
        %2271 = vmatpush.bf16.msra.mxu0 %v2262
        %2272 = vmatpush.bf16.msra.mxu0 %v2261
        %2273 = vmatmul.bf16.gmra.mxu0 %v1730
        %v2274 = vpop.f32.mrf.mxu0
        %v2275 = vadd.f32 %v2251, %v2274
        %v2276 = vpop.f32.mrf.mxu0
        %v2277 = vadd.f32 %v2251, %v2276
        %2278 = vmatmul.bf16.gmra.mxu0 %v1733
        %v2279 = vpop.f32.mrf.mxu0
        %v2280 = vadd.f32 %v2251, %v2279
        %v2281 = vpop.f32.mrf.mxu0
        %v2282 = vadd.f32 %v2251, %v2281
        %2283 = vmatmul.bf16.gmra.mxu0 %v1736
        %v2284 = vpop.f32.mrf.mxu0
        %v2285 = vadd.f32 %v2251, %v2284
        %v2286 = vpop.f32.mrf.mxu0
        %v2287 = vadd.f32 %v2251, %v2286
        %2288 = vmatmul.bf16.gmra.mxu0 %v1739
        %v2289 = vpop.f32.mrf.mxu0
        %v2290 = vadd.f32 %v2251, %v2289
        %v2291 = vpop.f32.mrf.mxu0
        %v2292 = vadd.f32 %v2251, %v2291
        %2293 = vdwg.mxu0
        %s2294 = scalar_lea.vmem %s7, 80
        %v2295 = vld [vmem:[%s2294] sm:$0xf]
        %v2296 = vld [vmem:[%s2294 + $0x4] sm:$0xf]
        %v2297 = vld [vmem:[%s2294 + $0x8] sm:$0xf]
        %v2298 = vld [vmem:[%s2294 + $0xc] sm:$0xf]
        %s2299 = scalar_lea.vmem [#allocation7], 5
        %v2300 = vld [vmem:[%s2299] sm:$0x1]
        %v2302 = vperm.slane %v2300, 0
        %v2308 = vunpack.c.l.b16 %v2295
        %v2309 = vunpack.c.l.b16 %v2296
        %v2310 = vunpack.c.l.b16 %v2297
        %v2311 = vunpack.c.l.b16 %v2298
        %v2312 = vpack.c.b16 %v2309, %v2308
        %v2313 = vpack.c.b16 %v2311, %v2310
        %2316 = vmatpush.bf16.msra.mxu0 0
        %2317 = vmatpush.bf16.msra.mxu0 0
        %2318 = vmatpush.bf16.msra.mxu0 0
        %2319 = vmatpush.bf16.msra.mxu0 0
        %2320 = vmatpush.bf16.msra.mxu0 0
        %2321 = vmatpush.bf16.msra.mxu0 0
        %2322 = vmatpush.bf16.msra.mxu0 %v2313
        %2323 = vmatpush.bf16.msra.mxu0 %v2312
        %2324 = vmatmul.bf16.gmra.mxu0 %v1546
        %v2325 = vpop.f32.mrf.mxu0
        %v2326 = vadd.f32 %v2302, %v2325
        %v2327 = vpop.f32.mrf.mxu0
        %v2328 = vadd.f32 %v2302, %v2327
        %2329 = vmatmul.bf16.gmra.mxu0 %v1549
        %v2330 = vpop.f32.mrf.mxu0
        %v2331 = vadd.f32 %v2302, %v2330
        %v2332 = vpop.f32.mrf.mxu0
        %v2333 = vadd.f32 %v2302, %v2332
        %2334 = vmatmul.bf16.gmra.mxu0 %v1552
        %v2335 = vpop.f32.mrf.mxu0
        %v2336 = vadd.f32 %v2302, %v2335
        %v2337 = vpop.f32.mrf.mxu0
        %v2338 = vadd.f32 %v2302, %v2337
        %2339 = vmatmul.bf16.gmra.mxu0 %v1555
        %v2340 = vpop.f32.mrf.mxu0
        %v2341 = vadd.f32 %v2302, %v2340
        %v2342 = vpop.f32.mrf.mxu0
        %v2343 = vadd.f32 %v2302, %v2342
        %2344 = vdwg.mxu0
        %v2345 = vmul.f32 %v1875, %v2326
        %v2346 = vmul.f32 %v1890, %v2328
        %v2347 = vmul.f32 %v1905, %v2331
        %v2348 = vmul.f32 %v1920, %v2333
        %v2349 = vmul.f32 %v1935, %v2336
        %v2350 = vmul.f32 %v1950, %v2338
        %v2351 = vmul.f32 %v1965, %v2341
        %v2352 = vmul.f32 %v1980, %v2343
        %v2353 = vadd.f32 %v2275, %v2345
        %v2354 = vadd.f32 %v2277, %v2346
        %v2355 = vadd.f32 %v2280, %v2347
        %v2356 = vadd.f32 %v2282, %v2348
        %v2357 = vadd.f32 %v2285, %v2349
        %v2358 = vadd.f32 %v2287, %v2350
        %v2359 = vadd.f32 %v2290, %v2351
        %v2360 = vadd.f32 %v2292, %v2352
        %v2361 = vtanh.pop %v2353
        %v2362 = vtanh.pop %v2354
        %v2363 = vtanh.pop %v2355
        %v2364 = vtanh.pop %v2356
        %v2365 = vtanh.pop %v2357
        %v2366 = vtanh.pop %v2358
        %v2367 = vtanh.pop %v2359
        %v2368 = vtanh.pop %v2360
        %v2369 = vsub.f32 1.0, %v2137
        %v2370 = vsub.f32 1.0, %v2152
        %v2371 = vsub.f32 1.0, %v2167
        %v2372 = vsub.f32 1.0, %v2182
        %v2373 = vsub.f32 1.0, %v2197
        %v2374 = vsub.f32 1.0, %v2212
        %v2375 = vsub.f32 1.0, %v2227
        %v2376 = vsub.f32 1.0, %v2242
        %v2377 = vmul.f32 %v2369, %v2361
        %v2378 = vmul.f32 %v2370, %v2362
        %v2379 = vmul.f32 %v2371, %v2363
        %v2380 = vmul.f32 %v2372, %v2364
        %v2381 = vmul.f32 %v2373, %v2365
        %v2382 = vmul.f32 %v2374, %v2366
        %v2383 = vmul.f32 %v2375, %v2367
        %v2384 = vmul.f32 %v2376, %v2368
        %v2385 = vmul.f32 %v2137, %v1511
        %v2386 = vmul.f32 %v2152, %v1512
        %v2387 = vmul.f32 %v2167, %v1513
        %v2388 = vmul.f32 %v2182, %v1514
        %v2389 = vmul.f32 %v2197, %v1515
        %v2390 = vmul.f32 %v2212, %v1516
        %v2391 = vmul.f32 %v2227, %v1517
        %v2392 = vmul.f32 %v2242, %v1518
        %v2393 = vadd.f32 %v2377, %v2385
        %v2394 = vadd.f32 %v2378, %v2386
        %v2395 = vadd.f32 %v2379, %v2387
        %v2396 = vadd.f32 %v2380, %v2388
        %v2397 = vadd.f32 %v2381, %v2389
        %v2398 = vadd.f32 %v2382, %v2390
        %v2399 = vadd.f32 %v2383, %v2391
        %v2400 = vadd.f32 %v2384, %v2392
        %v2401 = vpack.c.bf16 %v2394, %v2393
        %v2402 = vpack.c.bf16 %v2396, %v2395
        %v2403 = vpack.c.bf16 %v2398, %v2397
        %v2404 = vpack.c.bf16 %v2400, %v2399
        %s2405 = scalar_lea.vmem %s3, 64
        %v2406 = vld [vmem:[%s2405] sm:$0xf]
        %v2407 = vld [vmem:[%s2405 + $0x4] sm:$0xf]
        %v2408 = vld [vmem:[%s2405 + $0x8] sm:$0xf]
        %v2409 = vld [vmem:[%s2405 + $0xc] sm:$0xf]
        %s2410 = scalar_lea.vmem [#allocation5], 4
        %v2411 = vld [vmem:[%s2410] sm:$0x1]
        %v2413 = vperm.slane %v2411, 0
        %v2419 = vunpack.c.l.b16 %v2406
        %v2420 = vunpack.c.l.b16 %v2407
        %v2421 = vunpack.c.l.b16 %v2408
        %v2422 = vunpack.c.l.b16 %v2409
        %v2423 = vpack.c.b16 %v2420, %v2419
        %v2424 = vpack.c.b16 %v2422, %v2421
        %v2428 = vsel %vm584, %v2401, 0
        %v2431 = vsel %vm584, %v2402, 0
        %v2434 = vsel %vm584, %v2403, 0
        %v2437 = vsel %vm584, %v2404, 0
        %2439 = vmatpush.bf16.msra.mxu0 0
        %2440 = vmatpush.bf16.msra.mxu0 0
        %2441 = vmatpush.bf16.msra.mxu0 0
        %2442 = vmatpush.bf16.msra.mxu0 0
        %2443 = vmatpush.bf16.msra.mxu0 0
        %2444 = vmatpush.bf16.msra.mxu0 0
        %2445 = vmatpush.bf16.msra.mxu0 %v2424
        %2446 = vmatpush.bf16.msra.mxu0 %v2423
        %2447 = vmatmul.bf16.gmra.mxu0 %v2428
        %v2448 = vpop.f32.mrf.mxu0
        %v2449 = vadd.f32 %v2413, %v2448
        %v2450 = vpop.f32.mrf.mxu0
        %v2451 = vadd.f32 %v2413, %v2450
        %2452 = vmatmul.bf16.gmra.mxu0 %v2431
        %v2453 = vpop.f32.mrf.mxu0
        %v2454 = vadd.f32 %v2413, %v2453
        %v2455 = vpop.f32.mrf.mxu0
        %v2456 = vadd.f32 %v2413, %v2455
        %2457 = vmatmul.bf16.gmra.mxu0 %v2434
        %v2458 = vpop.f32.mrf.mxu0
        %v2459 = vadd.f32 %v2413, %v2458
        %v2460 = vpop.f32.mrf.mxu0
        %v2461 = vadd.f32 %v2413, %v2460
        %2462 = vmatmul.bf16.gmra.mxu0 %v2437
        %v2463 = vpop.f32.mrf.mxu0
        %v2464 = vadd.f32 %v2413, %v2463
        %v2465 = vpop.f32.mrf.mxu0
        %v2466 = vadd.f32 %v2413, %v2465
        %2467 = vdwg.mxu0
        %v2468 = vpack.c.bf16 %v2451, %v2449
        %v2469 = vpack.c.bf16 %v2456, %v2454
        %v2470 = vpack.c.bf16 %v2461, %v2459
        %v2471 = vpack.c.bf16 %v2466, %v2464
        %s2472 = scalar_lea.vmem %s3, 80
        %v2473 = vld [vmem:[%s2472] sm:$0xf]
        %v2474 = vld [vmem:[%s2472 + $0x4] sm:$0xf]
        %v2475 = vld [vmem:[%s2472 + $0x8] sm:$0xf]
        %v2476 = vld [vmem:[%s2472 + $0xc] sm:$0xf]
        %s2477 = scalar_lea.vmem [#allocation5], 5
        %v2478 = vld [vmem:[%s2477] sm:$0x1]
        %v2480 = vperm.slane %v2478, 0
        %v2486 = vunpack.c.l.b16 %v2473
        %v2487 = vunpack.c.l.b16 %v2474
        %v2488 = vunpack.c.l.b16 %v2475
        %v2489 = vunpack.c.l.b16 %v2476
        %v2490 = vpack.c.b16 %v2487, %v2486
        %v2491 = vpack.c.b16 %v2489, %v2488
        %2494 = vmatpush.bf16.msra.mxu0 0
        %2495 = vmatpush.bf16.msra.mxu0 0
        %2496 = vmatpush.bf16.msra.mxu0 0
        %2497 = vmatpush.bf16.msra.mxu0 0
        %2498 = vmatpush.bf16.msra.mxu0 0
        %2499 = vmatpush.bf16.msra.mxu0 0
        %2500 = vmatpush.bf16.msra.mxu0 %v2491
        %2501 = vmatpush.bf16.msra.mxu0 %v2490
        %2502 = vmatmul.bf16.gmra.mxu0 %v2428
        %v2503 = vpop.f32.mrf.mxu0
        %v2504 = vadd.f32 %v2480, %v2503
        %v2505 = vpop.f32.mrf.mxu0
        %v2506 = vadd.f32 %v2480, %v2505
        %2507 = vmatmul.bf16.gmra.mxu0 %v2431
        %v2508 = vpop.f32.mrf.mxu0
        %v2509 = vadd.f32 %v2480, %v2508
        %v2510 = vpop.f32.mrf.mxu0
        %v2511 = vadd.f32 %v2480, %v2510
        %2512 = vmatmul.bf16.gmra.mxu0 %v2434
        %v2513 = vpop.f32.mrf.mxu0
        %v2514 = vadd.f32 %v2480, %v2513
        %v2515 = vpop.f32.mrf.mxu0
        %v2516 = vadd.f32 %v2480, %v2515
        %2517 = vmatmul.bf16.gmra.mxu0 %v2437
        %v2518 = vpop.f32.mrf.mxu0
        %v2519 = vadd.f32 %v2480, %v2518
        %v2520 = vpop.f32.mrf.mxu0
        %v2521 = vadd.f32 %v2480, %v2520
        %2522 = vdwg.mxu0
        %v2523 = vpack.c.bf16 %v2506, %v2504
        %v2524 = vpack.c.bf16 %v2511, %v2509
        %v2525 = vpack.c.bf16 %v2516, %v2514
        %v2526 = vpack.c.bf16 %v2521, %v2519
        %2527 = vmatpush.bf16.msra.mxu0 0
        %2528 = vmatpush.bf16.msra.mxu0 0
        %2529 = vmatpush.bf16.msra.mxu0 0
        %2530 = vmatpush.bf16.msra.mxu0 0
        %2531 = vmatpush.bf16.msra.mxu0 %v2526
        %2532 = vmatpush.bf16.msra.mxu0 %v2525
        %2533 = vmatpush.bf16.msra.mxu0 %v2524
        %2534 = vmatpush.bf16.msra.mxu0 %v2523
        %2535 = vmatmul.bf16.gmra.mxu0 %v724
        %v2536 = vpop.f32.mrf.mxu0
        %v2537 = vadd.f32 0.0, %v2536
        %v2538 = vpop.f32.mrf.mxu0
        %v2539 = vadd.f32 0.0, %v2538
        %2540 = vmatmul.bf16.gmra.mxu0 %v727
        %v2541 = vpop.f32.mrf.mxu0
        %v2542 = vadd.f32 0.0, %v2541
        %v2543 = vpop.f32.mrf.mxu0
        %v2544 = vadd.f32 0.0, %v2543
        %2545 = vmatmul.bf16.gmra.mxu0 %v730
        %v2546 = vpop.f32.mrf.mxu0
        %v2547 = vadd.f32 0.0, %v2546
        %v2548 = vpop.f32.mrf.mxu0
        %v2549 = vadd.f32 0.0, %v2548
        %2550 = vmatmul.bf16.gmra.mxu0 %v733
        %v2551 = vpop.f32.mrf.mxu0
        %v2552 = vadd.f32 0.0, %v2551
        %v2553 = vpop.f32.mrf.mxu0
        %v2554 = vadd.f32 0.0, %v2553
        %2555 = vdwg.mxu0
        %2556 = vmatpush.bf16.msra.mxu0 0
        %2557 = vmatpush.bf16.msra.mxu0 0
        %2558 = vmatpush.bf16.msra.mxu0 0
        %2559 = vmatpush.bf16.msra.mxu0 0
        %2560 = vmatpush.bf16.msra.mxu0 %v2471
        %2561 = vmatpush.bf16.msra.mxu0 %v2470
        %2562 = vmatpush.bf16.msra.mxu0 %v2469
        %2563 = vmatpush.bf16.msra.mxu0 %v2468
        %2564 = vmatmul.bf16.gmra.mxu0 %v785
        %v2565 = vpop.f32.mrf.mxu0
        %v2566 = vadd.f32 %v2537, %v2565
        %v2567 = vpop.f32.mrf.mxu0
        %v2568 = vadd.f32 %v2539, %v2567
        %2569 = vmatmul.bf16.gmra.mxu0 %v788
        %v2570 = vpop.f32.mrf.mxu0
        %v2571 = vadd.f32 %v2542, %v2570
        %v2572 = vpop.f32.mrf.mxu0
        %v2573 = vadd.f32 %v2544, %v2572
        %2574 = vmatmul.bf16.gmra.mxu0 %v791
        %v2575 = vpop.f32.mrf.mxu0
        %v2576 = vadd.f32 %v2547, %v2575
        %v2577 = vpop.f32.mrf.mxu0
        %v2578 = vadd.f32 %v2549, %v2577
        %2579 = vmatmul.bf16.gmra.mxu0 %v794
        %v2580 = vpop.f32.mrf.mxu0
        %v2581 = vadd.f32 %v2552, %v2580
        %v2582 = vpop.f32.mrf.mxu0
        %v2583 = vadd.f32 %v2554, %v2582
        %2584 = vdwg.mxu0
        %v2585 = vpack.c.bf16 %v2568, %v2566
        %v2586 = vpack.c.bf16 %v2573, %v2571
        %v2587 = vpack.c.bf16 %v2578, %v2576
        %v2588 = vpack.c.bf16 %v2583, %v2581
        %s2589 = scalar_lea.vmem %s5, 96
        %v2590 = vld [vmem:[%s2589] sm:$0xf]
        %v2591 = vld [vmem:[%s2589 + $0x4] sm:$0xf]
        %v2592 = vld [vmem:[%s2589 + $0x8] sm:$0xf]
        %v2593 = vld [vmem:[%s2589 + $0xc] sm:$0xf]
        %s2594 = scalar_lea.vmem %s6, 6
        %v2595 = vld [vmem:[%s2594] sm:$0x1]
        %v2597 = vperm.slane %v2595, 0
        %v2603 = vunpack.c.l.b16 %v2590
        %v2604 = vunpack.c.l.b16 %v2591
        %v2605 = vunpack.c.l.b16 %v2592
        %v2606 = vunpack.c.l.b16 %v2593
        %v2607 = vpack.c.b16 %v2604, %v2603
        %v2608 = vpack.c.b16 %v2606, %v2605
        %v2612 = vsel %vm584, %v2585, 0
        %v2615 = vsel %vm584, %v2586, 0
        %v2618 = vsel %vm584, %v2587, 0
        %v2621 = vsel %vm584, %v2588, 0
        %2623 = vmatpush.bf16.msra.mxu0 0
        %2624 = vmatpush.bf16.msra.mxu0 0
        %2625 = vmatpush.bf16.msra.mxu0 0
        %2626 = vmatpush.bf16.msra.mxu0 0
        %2627 = vmatpush.bf16.msra.mxu0 0
        %2628 = vmatpush.bf16.msra.mxu0 0
        %2629 = vmatpush.bf16.msra.mxu0 %v2608
        %2630 = vmatpush.bf16.msra.mxu0 %v2607
        %2631 = vmatmul.bf16.gmra.mxu0 %v2612
        %v2632 = vpop.f32.mrf.mxu0
        %v2633 = vadd.f32 %v2597, %v2632
        %v2634 = vpop.f32.mrf.mxu0
        %v2635 = vadd.f32 %v2597, %v2634
        %2636 = vmatmul.bf16.gmra.mxu0 %v2615
        %v2637 = vpop.f32.mrf.mxu0
        %v2638 = vadd.f32 %v2597, %v2637
        %v2639 = vpop.f32.mrf.mxu0
        %v2640 = vadd.f32 %v2597, %v2639
        %2641 = vmatmul.bf16.gmra.mxu0 %v2618
        %v2642 = vpop.f32.mrf.mxu0
        %v2643 = vadd.f32 %v2597, %v2642
        %v2644 = vpop.f32.mrf.mxu0
        %v2645 = vadd.f32 %v2597, %v2644
        %2646 = vmatmul.bf16.gmra.mxu0 %v2621
        %v2647 = vpop.f32.mrf.mxu0
        %v2648 = vadd.f32 %v2597, %v2647
        %v2649 = vpop.f32.mrf.mxu0
        %v2650 = vadd.f32 %v2597, %v2649
        %2651 = vdwg.mxu0
        %s2652 = scalar_lea.vmem %s7, 96
        %v2653 = vld [vmem:[%s2652] sm:$0xf]
        %v2654 = vld [vmem:[%s2652 + $0x4] sm:$0xf]
        %v2655 = vld [vmem:[%s2652 + $0x8] sm:$0xf]
        %v2656 = vld [vmem:[%s2652 + $0xc] sm:$0xf]
        %s2657 = scalar_lea.vmem [#allocation7], 6
        %v2658 = vld [vmem:[%s2657] sm:$0x1]
        %v2660 = vperm.slane %v2658, 0
        %v2666 = vunpack.c.l.b16 %v2653
        %v2667 = vunpack.c.l.b16 %v2654
        %v2668 = vunpack.c.l.b16 %v2655
        %v2669 = vunpack.c.l.b16 %v2656
        %v2670 = vpack.c.b16 %v2667, %v2666
        %v2671 = vpack.c.b16 %v2669, %v2668
        %2674 = vmatpush.bf16.msra.mxu0 0
        %2675 = vmatpush.bf16.msra.mxu0 0
        %2676 = vmatpush.bf16.msra.mxu0 0
        %2677 = vmatpush.bf16.msra.mxu0 0
        %2678 = vmatpush.bf16.msra.mxu0 0
        %2679 = vmatpush.bf16.msra.mxu0 0
        %2680 = vmatpush.bf16.msra.mxu0 %v2671
        %2681 = vmatpush.bf16.msra.mxu0 %v2670
        %2682 = vmatmul.bf16.gmra.mxu0 %v2428
        %v2683 = vpop.f32.mrf.mxu0
        %v2684 = vadd.f32 %v2660, %v2683
        %v2685 = vpop.f32.mrf.mxu0
        %v2686 = vadd.f32 %v2660, %v2685
        %2687 = vmatmul.bf16.gmra.mxu0 %v2431
        %v2688 = vpop.f32.mrf.mxu0
        %v2689 = vadd.f32 %v2660, %v2688
        %v2690 = vpop.f32.mrf.mxu0
        %v2691 = vadd.f32 %v2660, %v2690
        %2692 = vmatmul.bf16.gmra.mxu0 %v2434
        %v2693 = vpop.f32.mrf.mxu0
        %v2694 = vadd.f32 %v2660, %v2693
        %v2695 = vpop.f32.mrf.mxu0
        %v2696 = vadd.f32 %v2660, %v2695
        %2697 = vmatmul.bf16.gmra.mxu0 %v2437
        %v2698 = vpop.f32.mrf.mxu0
        %v2699 = vadd.f32 %v2660, %v2698
        %v2700 = vpop.f32.mrf.mxu0
        %v2701 = vadd.f32 %v2660, %v2700
        %2702 = vdwg.mxu0
        %v2703 = vadd.f32 %v2633, %v2684
        %v2704 = vadd.f32 %v2635, %v2686
        %v2705 = vadd.f32 %v2638, %v2689
        %v2706 = vadd.f32 %v2640, %v2691
        %v2707 = vadd.f32 %v2643, %v2694
        %v2708 = vadd.f32 %v2645, %v2696
        %v2709 = vadd.f32 %v2648, %v2699
        %v2710 = vadd.f32 %v2650, %v2701
        %v2711 = vxor.u32 %v2703, 2147483648
        %v2712 = vxor.u32 %v2704, 2147483648
        %v2713 = vxor.u32 %v2705, 2147483648
        %v2714 = vxor.u32 %v2706, 2147483648
        %v2715 = vxor.u32 %v2707, 2147483648
        %v2716 = vxor.u32 %v2708, 2147483648
        %v2717 = vxor.u32 %v2709, 2147483648
        %v2718 = vxor.u32 %v2710, 2147483648
        %v2719 = vmul.f32 %v2711, 1.442695
        %v2720 = vpow.pop %v2719
        %v2721 = vmul.f32 %v2712, 1.442695
        %v2722 = vpow.pop %v2721
        %v2723 = vmul.f32 %v2713, 1.442695
        %v2724 = vpow.pop %v2723
        %v2725 = vmul.f32 %v2714, 1.442695
        %v2726 = vpow.pop %v2725
        %v2727 = vmul.f32 %v2715, 1.442695
        %v2728 = vpow.pop %v2727
        %v2729 = vmul.f32 %v2716, 1.442695
        %v2730 = vpow.pop %v2729
        %v2731 = vmul.f32 %v2717, 1.442695
        %v2732 = vpow.pop %v2731
        %v2733 = vmul.f32 %v2718, 1.442695
        %v2734 = vpow.pop %v2733
        %v2735 = vadd.f32 %v2720, 1.0
        %v2736 = vadd.f32 %v2722, 1.0
        %v2737 = vadd.f32 %v2724, 1.0
        %v2738 = vadd.f32 %v2726, 1.0
        %v2739 = vadd.f32 %v2728, 1.0
        %v2740 = vadd.f32 %v2730, 1.0
        %v2741 = vadd.f32 %v2732, 1.0
        %v2742 = vadd.f32 %v2734, 1.0
        %v2743 = vrcp.pop %v2735
        %v2744 = vmul.f32 %v2735, %v2743
        %v2745 = vsub.f32 1.0, %v2744
        %v2746 = vmul.f32 %v2743, %v2745
        %v2747 = vadd.f32 %v2743, %v2746
        %vm2748 = vweird.f32 %v2735
        %vm2749 = vweird.f32 %v2743
        %vm2750 = vmor %vm2748, %vm2749
        %v2751 = vsel %vm2750, %v2743, %v2747
        %v2752 = vand.u32 2147483647, %v2735
        %vm2753 = vcmp.eq.f32.partialorder %v2752, 8.507059e+37
        %v2754 = vand.u32 %v2735, 2147483648
        %v2755 = vor.u32 1.1754944e-38, %v2754
        %v2756 = vsel %vm2753, %v2755, %v2751
        %v2757 = vmul.f32 1.0, %v2756
        %v2758 = vrcp.pop %v2736
        %v2759 = vmul.f32 %v2736, %v2758
        %v2760 = vsub.f32 1.0, %v2759
        %v2761 = vmul.f32 %v2758, %v2760
        %v2762 = vadd.f32 %v2758, %v2761
        %vm2763 = vweird.f32 %v2736
        %vm2764 = vweird.f32 %v2758
        %vm2765 = vmor %vm2763, %vm2764
        %v2766 = vsel %vm2765, %v2758, %v2762
        %v2767 = vand.u32 2147483647, %v2736
        %vm2768 = vcmp.eq.f32.partialorder %v2767, 8.507059e+37
        %v2769 = vand.u32 %v2736, 2147483648
        %v2770 = vor.u32 1.1754944e-38, %v2769
        %v2771 = vsel %vm2768, %v2770, %v2766
        %v2772 = vmul.f32 1.0, %v2771
        %v2773 = vrcp.pop %v2737
        %v2774 = vmul.f32 %v2737, %v2773
        %v2775 = vsub.f32 1.0, %v2774
        %v2776 = vmul.f32 %v2773, %v2775
        %v2777 = vadd.f32 %v2773, %v2776
        %vm2778 = vweird.f32 %v2737
        %vm2779 = vweird.f32 %v2773
        %vm2780 = vmor %vm2778, %vm2779
        %v2781 = vsel %vm2780, %v2773, %v2777
        %v2782 = vand.u32 2147483647, %v2737
        %vm2783 = vcmp.eq.f32.partialorder %v2782, 8.507059e+37
        %v2784 = vand.u32 %v2737, 2147483648
        %v2785 = vor.u32 1.1754944e-38, %v2784
        %v2786 = vsel %vm2783, %v2785, %v2781
        %v2787 = vmul.f32 1.0, %v2786
        %v2788 = vrcp.pop %v2738
        %v2789 = vmul.f32 %v2738, %v2788
        %v2790 = vsub.f32 1.0, %v2789
        %v2791 = vmul.f32 %v2788, %v2790
        %v2792 = vadd.f32 %v2788, %v2791
        %vm2793 = vweird.f32 %v2738
        %vm2794 = vweird.f32 %v2788
        %vm2795 = vmor %vm2793, %vm2794
        %v2796 = vsel %vm2795, %v2788, %v2792
        %v2797 = vand.u32 2147483647, %v2738
        %vm2798 = vcmp.eq.f32.partialorder %v2797, 8.507059e+37
        %v2799 = vand.u32 %v2738, 2147483648
        %v2800 = vor.u32 1.1754944e-38, %v2799
        %v2801 = vsel %vm2798, %v2800, %v2796
        %v2802 = vmul.f32 1.0, %v2801
        %v2803 = vrcp.pop %v2739
        %v2804 = vmul.f32 %v2739, %v2803
        %v2805 = vsub.f32 1.0, %v2804
        %v2806 = vmul.f32 %v2803, %v2805
        %v2807 = vadd.f32 %v2803, %v2806
        %vm2808 = vweird.f32 %v2739
        %vm2809 = vweird.f32 %v2803
        %vm2810 = vmor %vm2808, %vm2809
        %v2811 = vsel %vm2810, %v2803, %v2807
        %v2812 = vand.u32 2147483647, %v2739
        %vm2813 = vcmp.eq.f32.partialorder %v2812, 8.507059e+37
        %v2814 = vand.u32 %v2739, 2147483648
        %v2815 = vor.u32 1.1754944e-38, %v2814
        %v2816 = vsel %vm2813, %v2815, %v2811
        %v2817 = vmul.f32 1.0, %v2816
        %v2818 = vrcp.pop %v2740
        %v2819 = vmul.f32 %v2740, %v2818
        %v2820 = vsub.f32 1.0, %v2819
        %v2821 = vmul.f32 %v2818, %v2820
        %v2822 = vadd.f32 %v2818, %v2821
        %vm2823 = vweird.f32 %v2740
        %vm2824 = vweird.f32 %v2818
        %vm2825 = vmor %vm2823, %vm2824
        %v2826 = vsel %vm2825, %v2818, %v2822
        %v2827 = vand.u32 2147483647, %v2740
        %vm2828 = vcmp.eq.f32.partialorder %v2827, 8.507059e+37
        %v2829 = vand.u32 %v2740, 2147483648
        %v2830 = vor.u32 1.1754944e-38, %v2829
        %v2831 = vsel %vm2828, %v2830, %v2826
        %v2832 = vmul.f32 1.0, %v2831
        %v2833 = vrcp.pop %v2741
        %v2834 = vmul.f32 %v2741, %v2833
        %v2835 = vsub.f32 1.0, %v2834
        %v2836 = vmul.f32 %v2833, %v2835
        %v2837 = vadd.f32 %v2833, %v2836
        %vm2838 = vweird.f32 %v2741
        %vm2839 = vweird.f32 %v2833
        %vm2840 = vmor %vm2838, %vm2839
        %v2841 = vsel %vm2840, %v2833, %v2837
        %v2842 = vand.u32 2147483647, %v2741
        %vm2843 = vcmp.eq.f32.partialorder %v2842, 8.507059e+37
        %v2844 = vand.u32 %v2741, 2147483648
        %v2845 = vor.u32 1.1754944e-38, %v2844
        %v2846 = vsel %vm2843, %v2845, %v2841
        %v2847 = vmul.f32 1.0, %v2846
        %v2848 = vrcp.pop %v2742
        %v2849 = vmul.f32 %v2742, %v2848
        %v2850 = vsub.f32 1.0, %v2849
        %v2851 = vmul.f32 %v2848, %v2850
        %v2852 = vadd.f32 %v2848, %v2851
        %vm2853 = vweird.f32 %v2742
        %vm2854 = vweird.f32 %v2848
        %vm2855 = vmor %vm2853, %vm2854
        %v2856 = vsel %vm2855, %v2848, %v2852
        %v2857 = vand.u32 2147483647, %v2742
        %vm2858 = vcmp.eq.f32.partialorder %v2857, 8.507059e+37
        %v2859 = vand.u32 %v2742, 2147483648
        %v2860 = vor.u32 1.1754944e-38, %v2859
        %v2861 = vsel %vm2858, %v2860, %v2856
        %v2862 = vmul.f32 1.0, %v2861
        %s2863 = scalar_lea.vmem %s5, 112
        %v2864 = vld [vmem:[%s2863] sm:$0xf]
        %v2865 = vld [vmem:[%s2863 + $0x4] sm:$0xf]
        %v2866 = vld [vmem:[%s2863 + $0x8] sm:$0xf]
        %v2867 = vld [vmem:[%s2863 + $0xc] sm:$0xf]
        %s2868 = scalar_lea.vmem %s6, 7
        %v2869 = vld [vmem:[%s2868] sm:$0x1]
        %v2871 = vperm.slane %v2869, 0
        %v2877 = vunpack.c.l.b16 %v2864
        %v2878 = vunpack.c.l.b16 %v2865
        %v2879 = vunpack.c.l.b16 %v2866
        %v2880 = vunpack.c.l.b16 %v2867
        %v2881 = vpack.c.b16 %v2878, %v2877
        %v2882 = vpack.c.b16 %v2880, %v2879
        %2885 = vmatpush.bf16.msra.mxu0 0
        %2886 = vmatpush.bf16.msra.mxu0 0
        %2887 = vmatpush.bf16.msra.mxu0 0
        %2888 = vmatpush.bf16.msra.mxu0 0
        %2889 = vmatpush.bf16.msra.mxu0 0
        %2890 = vmatpush.bf16.msra.mxu0 0
        %2891 = vmatpush.bf16.msra.mxu0 %v2882
        %2892 = vmatpush.bf16.msra.mxu0 %v2881
        %2893 = vmatmul.bf16.gmra.mxu0 %v2612
        %v2894 = vpop.f32.mrf.mxu0
        %v2895 = vadd.f32 %v2871, %v2894
        %v2896 = vpop.f32.mrf.mxu0
        %v2897 = vadd.f32 %v2871, %v2896
        %2898 = vmatmul.bf16.gmra.mxu0 %v2615
        %v2899 = vpop.f32.mrf.mxu0
        %v2900 = vadd.f32 %v2871, %v2899
        %v2901 = vpop.f32.mrf.mxu0
        %v2902 = vadd.f32 %v2871, %v2901
        %2903 = vmatmul.bf16.gmra.mxu0 %v2618
        %v2904 = vpop.f32.mrf.mxu0
        %v2905 = vadd.f32 %v2871, %v2904
        %v2906 = vpop.f32.mrf.mxu0
        %v2907 = vadd.f32 %v2871, %v2906
        %2908 = vmatmul.bf16.gmra.mxu0 %v2621
        %v2909 = vpop.f32.mrf.mxu0
        %v2910 = vadd.f32 %v2871, %v2909
        %v2911 = vpop.f32.mrf.mxu0
        %v2912 = vadd.f32 %v2871, %v2911
        %2913 = vdwg.mxu0
        %s2914 = scalar_lea.vmem %s7, 112
        %v2915 = vld [vmem:[%s2914] sm:$0xf]
        %v2916 = vld [vmem:[%s2914 + $0x4] sm:$0xf]
        %v2917 = vld [vmem:[%s2914 + $0x8] sm:$0xf]
        %v2918 = vld [vmem:[%s2914 + $0xc] sm:$0xf]
        %s2919 = scalar_lea.vmem [#allocation7], 7
        %v2920 = vld [vmem:[%s2919] sm:$0x1]
        %v2922 = vperm.slane %v2920, 0
        %v2928 = vunpack.c.l.b16 %v2915
        %v2929 = vunpack.c.l.b16 %v2916
        %v2930 = vunpack.c.l.b16 %v2917
        %v2931 = vunpack.c.l.b16 %v2918
        %v2932 = vpack.c.b16 %v2929, %v2928
        %v2933 = vpack.c.b16 %v2931, %v2930
        %2936 = vmatpush.bf16.msra.mxu0 0
        %2937 = vmatpush.bf16.msra.mxu0 0
        %2938 = vmatpush.bf16.msra.mxu0 0
        %2939 = vmatpush.bf16.msra.mxu0 0
        %2940 = vmatpush.bf16.msra.mxu0 0
        %2941 = vmatpush.bf16.msra.mxu0 0
        %2942 = vmatpush.bf16.msra.mxu0 %v2933
        %2943 = vmatpush.bf16.msra.mxu0 %v2932
        %2944 = vmatmul.bf16.gmra.mxu0 %v2428
        %v2945 = vpop.f32.mrf.mxu0
        %v2946 = vadd.f32 %v2922, %v2945
        %v2947 = vpop.f32.mrf.mxu0
        %v2948 = vadd.f32 %v2922, %v2947
        %2949 = vmatmul.bf16.gmra.mxu0 %v2431
        %v2950 = vpop.f32.mrf.mxu0
        %v2951 = vadd.f32 %v2922, %v2950
        %v2952 = vpop.f32.mrf.mxu0
        %v2953 = vadd.f32 %v2922, %v2952
        %2954 = vmatmul.bf16.gmra.mxu0 %v2434
        %v2955 = vpop.f32.mrf.mxu0
        %v2956 = vadd.f32 %v2922, %v2955
        %v2957 = vpop.f32.mrf.mxu0
        %v2958 = vadd.f32 %v2922, %v2957
        %2959 = vmatmul.bf16.gmra.mxu0 %v2437
        %v2960 = vpop.f32.mrf.mxu0
        %v2961 = vadd.f32 %v2922, %v2960
        %v2962 = vpop.f32.mrf.mxu0
        %v2963 = vadd.f32 %v2922, %v2962
        %2964 = vdwg.mxu0
        %v2965 = vadd.f32 %v2895, %v2946
        %v2966 = vadd.f32 %v2897, %v2948
        %v2967 = vadd.f32 %v2900, %v2951
        %v2968 = vadd.f32 %v2902, %v2953
        %v2969 = vadd.f32 %v2905, %v2956
        %v2970 = vadd.f32 %v2907, %v2958
        %v2971 = vadd.f32 %v2910, %v2961
        %v2972 = vadd.f32 %v2912, %v2963
        %v2973 = vxor.u32 %v2965, 2147483648
        %v2974 = vxor.u32 %v2966, 2147483648
        %v2975 = vxor.u32 %v2967, 2147483648
        %v2976 = vxor.u32 %v2968, 2147483648
        %v2977 = vxor.u32 %v2969, 2147483648
        %v2978 = vxor.u32 %v2970, 2147483648
        %v2979 = vxor.u32 %v2971, 2147483648
        %v2980 = vxor.u32 %v2972, 2147483648
        %v2981 = vmul.f32 %v2973, 1.442695
        %v2982 = vpow.pop %v2981
        %v2983 = vmul.f32 %v2974, 1.442695
        %v2984 = vpow.pop %v2983
        %v2985 = vmul.f32 %v2975, 1.442695
        %v2986 = vpow.pop %v2985
        %v2987 = vmul.f32 %v2976, 1.442695
        %v2988 = vpow.pop %v2987
        %v2989 = vmul.f32 %v2977, 1.442695
        %v2990 = vpow.pop %v2989
        %v2991 = vmul.f32 %v2978, 1.442695
        %v2992 = vpow.pop %v2991
        %v2993 = vmul.f32 %v2979, 1.442695
        %v2994 = vpow.pop %v2993
        %v2995 = vmul.f32 %v2980, 1.442695
        %v2996 = vpow.pop %v2995
        %v2997 = vadd.f32 %v2982, 1.0
        %v2998 = vadd.f32 %v2984, 1.0
        %v2999 = vadd.f32 %v2986, 1.0
        %v3000 = vadd.f32 %v2988, 1.0
        %v3001 = vadd.f32 %v2990, 1.0
        %v3002 = vadd.f32 %v2992, 1.0
        %v3003 = vadd.f32 %v2994, 1.0
        %v3004 = vadd.f32 %v2996, 1.0
        %v3005 = vrcp.pop %v2997
        %v3006 = vmul.f32 %v2997, %v3005
        %v3007 = vsub.f32 1.0, %v3006
        %v3008 = vmul.f32 %v3005, %v3007
        %v3009 = vadd.f32 %v3005, %v3008
        %vm3010 = vweird.f32 %v2997
        %vm3011 = vweird.f32 %v3005
        %vm3012 = vmor %vm3010, %vm3011
        %v3013 = vsel %vm3012, %v3005, %v3009
        %v3014 = vand.u32 2147483647, %v2997
        %vm3015 = vcmp.eq.f32.partialorder %v3014, 8.507059e+37
        %v3016 = vand.u32 %v2997, 2147483648
        %v3017 = vor.u32 1.1754944e-38, %v3016
        %v3018 = vsel %vm3015, %v3017, %v3013
        %v3019 = vmul.f32 1.0, %v3018
        %v3020 = vrcp.pop %v2998
        %v3021 = vmul.f32 %v2998, %v3020
        %v3022 = vsub.f32 1.0, %v3021
        %v3023 = vmul.f32 %v3020, %v3022
        %v3024 = vadd.f32 %v3020, %v3023
        %vm3025 = vweird.f32 %v2998
        %vm3026 = vweird.f32 %v3020
        %vm3027 = vmor %vm3025, %vm3026
        %v3028 = vsel %vm3027, %v3020, %v3024
        %v3029 = vand.u32 2147483647, %v2998
        %vm3030 = vcmp.eq.f32.partialorder %v3029, 8.507059e+37
        %v3031 = vand.u32 %v2998, 2147483648
        %v3032 = vor.u32 1.1754944e-38, %v3031
        %v3033 = vsel %vm3030, %v3032, %v3028
        %v3034 = vmul.f32 1.0, %v3033
        %v3035 = vrcp.pop %v2999
        %v3036 = vmul.f32 %v2999, %v3035
        %v3037 = vsub.f32 1.0, %v3036
        %v3038 = vmul.f32 %v3035, %v3037
        %v3039 = vadd.f32 %v3035, %v3038
        %vm3040 = vweird.f32 %v2999
        %vm3041 = vweird.f32 %v3035
        %vm3042 = vmor %vm3040, %vm3041
        %v3043 = vsel %vm3042, %v3035, %v3039
        %v3044 = vand.u32 2147483647, %v2999
        %vm3045 = vcmp.eq.f32.partialorder %v3044, 8.507059e+37
        %v3046 = vand.u32 %v2999, 2147483648
        %v3047 = vor.u32 1.1754944e-38, %v3046
        %v3048 = vsel %vm3045, %v3047, %v3043
        %v3049 = vmul.f32 1.0, %v3048
        %v3050 = vrcp.pop %v3000
        %v3051 = vmul.f32 %v3000, %v3050
        %v3052 = vsub.f32 1.0, %v3051
        %v3053 = vmul.f32 %v3050, %v3052
        %v3054 = vadd.f32 %v3050, %v3053
        %vm3055 = vweird.f32 %v3000
        %vm3056 = vweird.f32 %v3050
        %vm3057 = vmor %vm3055, %vm3056
        %v3058 = vsel %vm3057, %v3050, %v3054
        %v3059 = vand.u32 2147483647, %v3000
        %vm3060 = vcmp.eq.f32.partialorder %v3059, 8.507059e+37
        %v3061 = vand.u32 %v3000, 2147483648
        %v3062 = vor.u32 1.1754944e-38, %v3061
        %v3063 = vsel %vm3060, %v3062, %v3058
        %v3064 = vmul.f32 1.0, %v3063
        %v3065 = vrcp.pop %v3001
        %v3066 = vmul.f32 %v3001, %v3065
        %v3067 = vsub.f32 1.0, %v3066
        %v3068 = vmul.f32 %v3065, %v3067
        %v3069 = vadd.f32 %v3065, %v3068
        %vm3070 = vweird.f32 %v3001
        %vm3071 = vweird.f32 %v3065
        %vm3072 = vmor %vm3070, %vm3071
        %v3073 = vsel %vm3072, %v3065, %v3069
        %v3074 = vand.u32 2147483647, %v3001
        %vm3075 = vcmp.eq.f32.partialorder %v3074, 8.507059e+37
        %v3076 = vand.u32 %v3001, 2147483648
        %v3077 = vor.u32 1.1754944e-38, %v3076
        %v3078 = vsel %vm3075, %v3077, %v3073
        %v3079 = vmul.f32 1.0, %v3078
        %v3080 = vrcp.pop %v3002
        %v3081 = vmul.f32 %v3002, %v3080
        %v3082 = vsub.f32 1.0, %v3081
        %v3083 = vmul.f32 %v3080, %v3082
        %v3084 = vadd.f32 %v3080, %v3083
        %vm3085 = vweird.f32 %v3002
        %vm3086 = vweird.f32 %v3080
        %vm3087 = vmor %vm3085, %vm3086
        %v3088 = vsel %vm3087, %v3080, %v3084
        %v3089 = vand.u32 2147483647, %v3002
        %vm3090 = vcmp.eq.f32.partialorder %v3089, 8.507059e+37
        %v3091 = vand.u32 %v3002, 2147483648
        %v3092 = vor.u32 1.1754944e-38, %v3091
        %v3093 = vsel %vm3090, %v3092, %v3088
        %v3094 = vmul.f32 1.0, %v3093
        %v3095 = vrcp.pop %v3003
        %v3096 = vmul.f32 %v3003, %v3095
        %v3097 = vsub.f32 1.0, %v3096
        %v3098 = vmul.f32 %v3095, %v3097
        %v3099 = vadd.f32 %v3095, %v3098
        %vm3100 = vweird.f32 %v3003
        %vm3101 = vweird.f32 %v3095
        %vm3102 = vmor %vm3100, %vm3101
        %v3103 = vsel %vm3102, %v3095, %v3099
        %v3104 = vand.u32 2147483647, %v3003
        %vm3105 = vcmp.eq.f32.partialorder %v3104, 8.507059e+37
        %v3106 = vand.u32 %v3003, 2147483648
        %v3107 = vor.u32 1.1754944e-38, %v3106
        %v3108 = vsel %vm3105, %v3107, %v3103
        %v3109 = vmul.f32 1.0, %v3108
        %v3110 = vrcp.pop %v3004
        %v3111 = vmul.f32 %v3004, %v3110
        %v3112 = vsub.f32 1.0, %v3111
        %v3113 = vmul.f32 %v3110, %v3112
        %v3114 = vadd.f32 %v3110, %v3113
        %vm3115 = vweird.f32 %v3004
        %vm3116 = vweird.f32 %v3110
        %vm3117 = vmor %vm3115, %vm3116
        %v3118 = vsel %vm3117, %v3110, %v3114
        %v3119 = vand.u32 2147483647, %v3004
        %vm3120 = vcmp.eq.f32.partialorder %v3119, 8.507059e+37
        %v3121 = vand.u32 %v3004, 2147483648
        %v3122 = vor.u32 1.1754944e-38, %v3121
        %v3123 = vsel %vm3120, %v3122, %v3118
        %v3124 = vmul.f32 1.0, %v3123
        %s3125 = scalar_lea.vmem %s5, 128
        %v3126 = vld [vmem:[%s3125] sm:$0xf]
        %v3127 = vld [vmem:[%s3125 + $0x4] sm:$0xf]
        %v3128 = vld [vmem:[%s3125 + $0x8] sm:$0xf]
        %v3129 = vld [vmem:[%s3125 + $0xc] sm:$0xf]
        %s3130 = scalar_lea.vmem %s6, 8
        %v3131 = vld [vmem:[%s3130] sm:$0x1]
        %v3133 = vperm.slane %v3131, 0
        %v3139 = vunpack.c.l.b16 %v3126
        %v3140 = vunpack.c.l.b16 %v3127
        %v3141 = vunpack.c.l.b16 %v3128
        %v3142 = vunpack.c.l.b16 %v3129
        %v3143 = vpack.c.b16 %v3140, %v3139
        %v3144 = vpack.c.b16 %v3142, %v3141
        %3147 = vmatpush.bf16.msra.mxu0 0
        %3148 = vmatpush.bf16.msra.mxu0 0
        %3149 = vmatpush.bf16.msra.mxu0 0
        %3150 = vmatpush.bf16.msra.mxu0 0
        %3151 = vmatpush.bf16.msra.mxu0 0
        %3152 = vmatpush.bf16.msra.mxu0 0
        %3153 = vmatpush.bf16.msra.mxu0 %v3144
        %3154 = vmatpush.bf16.msra.mxu0 %v3143
        %3155 = vmatmul.bf16.gmra.mxu0 %v2612
        %v3156 = vpop.f32.mrf.mxu0
        %v3157 = vadd.f32 %v3133, %v3156
        %v3158 = vpop.f32.mrf.mxu0
        %v3159 = vadd.f32 %v3133, %v3158
        %3160 = vmatmul.bf16.gmra.mxu0 %v2615
        %v3161 = vpop.f32.mrf.mxu0
        %v3162 = vadd.f32 %v3133, %v3161
        %v3163 = vpop.f32.mrf.mxu0
        %v3164 = vadd.f32 %v3133, %v3163
        %3165 = vmatmul.bf16.gmra.mxu0 %v2618
        %v3166 = vpop.f32.mrf.mxu0
        %v3167 = vadd.f32 %v3133, %v3166
        %v3168 = vpop.f32.mrf.mxu0
        %v3169 = vadd.f32 %v3133, %v3168
        %3170 = vmatmul.bf16.gmra.mxu0 %v2621
        %v3171 = vpop.f32.mrf.mxu0
        %v3172 = vadd.f32 %v3133, %v3171
        %v3173 = vpop.f32.mrf.mxu0
        %v3174 = vadd.f32 %v3133, %v3173
        %3175 = vdwg.mxu0
        %s3176 = scalar_lea.vmem %s7, 128
        %v3177 = vld [vmem:[%s3176] sm:$0xf]
        %v3178 = vld [vmem:[%s3176 + $0x4] sm:$0xf]
        %v3179 = vld [vmem:[%s3176 + $0x8] sm:$0xf]
        %v3180 = vld [vmem:[%s3176 + $0xc] sm:$0xf]
        %s3181 = scalar_lea.vmem [#allocation7], 8
        %v3182 = vld [vmem:[%s3181] sm:$0x1]
        %v3184 = vperm.slane %v3182, 0
        %v3190 = vunpack.c.l.b16 %v3177
        %v3191 = vunpack.c.l.b16 %v3178
        %v3192 = vunpack.c.l.b16 %v3179
        %v3193 = vunpack.c.l.b16 %v3180
        %v3194 = vpack.c.b16 %v3191, %v3190
        %v3195 = vpack.c.b16 %v3193, %v3192
        %3198 = vmatpush.bf16.msra.mxu0 0
        %3199 = vmatpush.bf16.msra.mxu0 0
        %3200 = vmatpush.bf16.msra.mxu0 0
        %3201 = vmatpush.bf16.msra.mxu0 0
        %3202 = vmatpush.bf16.msra.mxu0 0
        %3203 = vmatpush.bf16.msra.mxu0 0
        %3204 = vmatpush.bf16.msra.mxu0 %v3195
        %3205 = vmatpush.bf16.msra.mxu0 %v3194
        %3206 = vmatmul.bf16.gmra.mxu0 %v2428
        %v3207 = vpop.f32.mrf.mxu0
        %v3208 = vadd.f32 %v3184, %v3207
        %v3209 = vpop.f32.mrf.mxu0
        %v3210 = vadd.f32 %v3184, %v3209
        %3211 = vmatmul.bf16.gmra.mxu0 %v2431
        %v3212 = vpop.f32.mrf.mxu0
        %v3213 = vadd.f32 %v3184, %v3212
        %v3214 = vpop.f32.mrf.mxu0
        %v3215 = vadd.f32 %v3184, %v3214
        %3216 = vmatmul.bf16.gmra.mxu0 %v2434
        %v3217 = vpop.f32.mrf.mxu0
        %v3218 = vadd.f32 %v3184, %v3217
        %v3219 = vpop.f32.mrf.mxu0
        %v3220 = vadd.f32 %v3184, %v3219
        %3221 = vmatmul.bf16.gmra.mxu0 %v2437
        %v3222 = vpop.f32.mrf.mxu0
        %v3223 = vadd.f32 %v3184, %v3222
        %v3224 = vpop.f32.mrf.mxu0
        %v3225 = vadd.f32 %v3184, %v3224
        %3226 = vdwg.mxu0
        %v3227 = vmul.f32 %v2757, %v3208
        %v3228 = vmul.f32 %v2772, %v3210
        %v3229 = vmul.f32 %v2787, %v3213
        %v3230 = vmul.f32 %v2802, %v3215
        %v3231 = vmul.f32 %v2817, %v3218
        %v3232 = vmul.f32 %v2832, %v3220
        %v3233 = vmul.f32 %v2847, %v3223
        %v3234 = vmul.f32 %v2862, %v3225
        %v3235 = vadd.f32 %v3157, %v3227
        %v3236 = vadd.f32 %v3159, %v3228
        %v3237 = vadd.f32 %v3162, %v3229
        %v3238 = vadd.f32 %v3164, %v3230
        %v3239 = vadd.f32 %v3167, %v3231
        %v3240 = vadd.f32 %v3169, %v3232
        %v3241 = vadd.f32 %v3172, %v3233
        %v3242 = vadd.f32 %v3174, %v3234
        %v3243 = vtanh.pop %v3235
        %v3244 = vtanh.pop %v3236
        %v3245 = vtanh.pop %v3237
        %v3246 = vtanh.pop %v3238
        %v3247 = vtanh.pop %v3239
        %v3248 = vtanh.pop %v3240
        %v3249 = vtanh.pop %v3241
        %v3250 = vtanh.pop %v3242
        %v3251 = vsub.f32 1.0, %v3019
        %v3252 = vsub.f32 1.0, %v3034
        %v3253 = vsub.f32 1.0, %v3049
        %v3254 = vsub.f32 1.0, %v3064
        %v3255 = vsub.f32 1.0, %v3079
        %v3256 = vsub.f32 1.0, %v3094
        %v3257 = vsub.f32 1.0, %v3109
        %v3258 = vsub.f32 1.0, %v3124
        %v3259 = vmul.f32 %v3251, %v3243
        %v3260 = vmul.f32 %v3252, %v3244
        %v3261 = vmul.f32 %v3253, %v3245
        %v3262 = vmul.f32 %v3254, %v3246
        %v3263 = vmul.f32 %v3255, %v3247
        %v3264 = vmul.f32 %v3256, %v3248
        %v3265 = vmul.f32 %v3257, %v3249
        %v3266 = vmul.f32 %v3258, %v3250
        %v3267 = vmul.f32 %v3019, %v2393
        %v3268 = vmul.f32 %v3034, %v2394
        %v3269 = vmul.f32 %v3049, %v2395
        %v3270 = vmul.f32 %v3064, %v2396
        %v3271 = vmul.f32 %v3079, %v2397
        %v3272 = vmul.f32 %v3094, %v2398
        %v3273 = vmul.f32 %v3109, %v2399
        %v3274 = vmul.f32 %v3124, %v2400
        %v3275 = vadd.f32 %v3259, %v3267
        %v3276 = vadd.f32 %v3260, %v3268
        %v3277 = vadd.f32 %v3261, %v3269
        %v3278 = vadd.f32 %v3262, %v3270
        %v3279 = vadd.f32 %v3263, %v3271
        %v3280 = vadd.f32 %v3264, %v3272
        %v3281 = vadd.f32 %v3265, %v3273
        %v3282 = vadd.f32 %v3266, %v3274
        %v3283 = vlaneseq
        %v3284 = vand.u32 %v3283, 127
        %v3285 = vlaneseq
        %v3286 = vshrl.u32 %v3285, 7
        %v3287 = vmul.u32 %v3286, 16
        %vm3288 = vcmp.ge.s32.totalorder %v3284, %v3287
        %v3289 = vadd.s32 %v3287, 16
        %vm3290 = vcmp.lt.s32.totalorder %v3284, %v3289
        %vm3291 = vmand %vm3288, %vm3290
        %v3292 = vsel %vm3291, 1, 0
        %v3293 = vcvt.s32.f32 %v3292
        %v3294 = vld [vmem:[%s550] sm:$0xff]
        %v3295 = vld [vmem:[%s550 + $0x8] sm:$0xff]
        %v3296 = vld [vmem:[%s550 + $0x10] sm:$0xff]
        %v3297 = vld [vmem:[%s550 + $0x18] sm:$0xff]
        %v3298 = vld [vmem:[%s550 + $0x20] sm:$0xff]
        %v3299 = vld [vmem:[%s550 + $0x28] sm:$0xff]
        %v3300 = vld [vmem:[%s550 + $0x30] sm:$0xff]
        %v3301 = vld [vmem:[%s550 + $0x38] sm:$0xff]
        %3303 = vset.pattern.permute.xlu0 0
        %3304 = vperm.xlu0 %3303, %v3294
        %v3305 = vpop.permute.xlu0 %3304
        %3308 = vset.pattern.permute.xlu0 0
        %3309 = vperm.xlu0 %3308, %v3295
        %v3310 = vpop.permute.xlu0 %3309
        %3313 = vset.pattern.permute.xlu0 0
        %3314 = vperm.xlu0 %3313, %v3296
        %v3315 = vpop.permute.xlu0 %3314
        %3318 = vset.pattern.permute.xlu0 0
        %3319 = vperm.xlu0 %3318, %v3297
        %v3320 = vpop.permute.xlu0 %3319
        %3323 = vset.pattern.permute.xlu0 0
        %3324 = vperm.xlu0 %3323, %v3298
        %v3325 = vpop.permute.xlu0 %3324
        %3328 = vset.pattern.permute.xlu0 0
        %3329 = vperm.xlu0 %3328, %v3299
        %v3330 = vpop.permute.xlu0 %3329
        %3333 = vset.pattern.permute.xlu0 0
        %3334 = vperm.xlu0 %3333, %v3300
        %v3335 = vpop.permute.xlu0 %3334
        %3338 = vset.pattern.permute.xlu0 0
        %3339 = vperm.xlu0 %3338, %v3301
        %v3340 = vpop.permute.xlu0 %3339
        %v3342 = vmul.f32 %v3275, %v3305
        %v3343 = vmul.f32 %v3276, %v3310
        %v3344 = vmul.f32 %v3277, %v3315
        %v3345 = vmul.f32 %v3278, %v3320
        %v3346 = vmul.f32 %v3279, %v3325
        %v3347 = vmul.f32 %v3280, %v3330
        %v3348 = vmul.f32 %v3281, %v3335
        %v3349 = vmul.f32 %v3282, %v3340
        %v3351 = vsel %vm722, %v3293, 0
        %3353 = vmatpush.msra.mxu0 0.0
        %3354 = vmatpush.msra.mxu0 0.0
        %3355 = vmatpush.msra.mxu0 0.0
        %3356 = vmatpush.msra.mxu0 0.0
        %3357 = vmatpush.msra.mxu0 0.0
        %3358 = vmatpush.msra.mxu0 0.0
        %3359 = vmatpush.msra.mxu0 0.0
        %3360 = vmatpush.msra.mxu0 0.0
        %3361 = vmatpush.msra.mxu0 %v3349
        %3362 = vmatpush.msra.mxu0 %v3348
        %3363 = vmatpush.msra.mxu0 %v3347
        %3364 = vmatpush.msra.mxu0 %v3346
        %3365 = vmatpush.msra.mxu0 %v3345
        %3366 = vmatpush.msra.mxu0 %v3344
        %3367 = vmatpush.msra.mxu0 %v3343
        %3368 = vmatpush.msra.mxu0 %v3342
        %3369 = vmatmul.f32.gmra.mxu0 %v3351
        %v3370 = vpop.f32.mrf.mxu0
        %v3371 = vadd.f32 0.0, %v3370
        %3372 = vdwg.mxu0
        %v3373 = vld [vmem:[#allocation8] sm:$0xff]
        %v3374 = vld [vmem:[#allocation8 + $0x8] sm:$0xff]
        %v3375 = vld [vmem:[#allocation8 + $0x10] sm:$0xff]
        %v3376 = vld [vmem:[#allocation8 + $0x18] sm:$0xff]
        %v3377 = vld [vmem:[%s10] sm:$0x1]
        %v3379 = vperm.slane %v3377, 0
        %v3382 = vsel %vm584, %v3371, 0
        %3384 = vmatpush.msra.mxu0 0.0
        %3385 = vmatpush.msra.mxu0 0.0
        %3386 = vmatpush.msra.mxu0 0.0
        %3387 = vmatpush.msra.mxu0 0.0
        %3388 = vmatpush.msra.mxu0 0.0
        %3389 = vmatpush.msra.mxu0 0.0
        %3390 = vmatpush.msra.mxu0 0.0
        %3391 = vmatpush.msra.mxu0 0.0
        %3392 = vmatpush.msra.mxu0 0.0
        %3393 = vmatpush.msra.mxu0 0.0
        %3394 = vmatpush.msra.mxu0 0.0
        %3395 = vmatpush.msra.mxu0 0.0
        %3396 = vmatpush.msra.mxu0 %v3376
        %3397 = vmatpush.msra.mxu0 %v3375
        %3398 = vmatpush.msra.mxu0 %v3374
        %3399 = vmatpush.msra.mxu0 %v3373
        %3400 = vmatmul.f32.gmra.mxu0 %v3382
        %v3401 = vpop.f32.mrf.mxu0
        %v3402 = vadd.f32 %v3379, %v3401
        %3403 = vdwg.mxu0
        %v3404 = vtanh.pop %v3402
        %v3405 = vld [vmem:[%s11] sm:$0xff]
        %v3406 = vld [vmem:[%s11 + $0x8] sm:$0xff]
        %v3407 = vld [vmem:[%s11 + $0x10] sm:$0xff]
        %v3408 = vld [vmem:[%s11 + $0x18] sm:$0xff]
        %v3409 = vld [vmem:[%s11 + $0x20] sm:$0xff]
        %v3410 = vld [vmem:[%s11 + $0x28] sm:$0xff]
        %v3411 = vld [vmem:[%s11 + $0x30] sm:$0xff]
        %v3412 = vld [vmem:[%s11 + $0x38] sm:$0xff]
        %v3413 = vld [vmem:[%s12] sm:$0x1]
        %v3415 = vperm.slane %v3413, 0
        %v3418 = vsel %vm722, %v3404, 0
        %3420 = vmatpush.msra.mxu0 0.0
        %3421 = vmatpush.msra.mxu0 0.0
        %3422 = vmatpush.msra.mxu0 0.0
        %3423 = vmatpush.msra.mxu0 0.0
        %3424 = vmatpush.msra.mxu0 0.0
        %3425 = vmatpush.msra.mxu0 0.0
        %3426 = vmatpush.msra.mxu0 0.0
        %3427 = vmatpush.msra.mxu0 0.0
        %3428 = vmatpush.msra.mxu0 %v3412
        %3429 = vmatpush.msra.mxu0 %v3411
        %3430 = vmatpush.msra.mxu0 %v3410
        %3431 = vmatpush.msra.mxu0 %v3409
        %3432 = vmatpush.msra.mxu0 %v3408
        %3433 = vmatpush.msra.mxu0 %v3407
        %3434 = vmatpush.msra.mxu0 %v3406
        %3435 = vmatpush.msra.mxu0 %v3405
        %3436 = vmatmul.f32.gmra.mxu0 %v3418
        %v3437 = vpop.f32.mrf.mxu0
        %v3438 = vadd.f32 %v3415, %v3437
        %3439 = vdwg.mxu0
        %vm3440 = vcmask 27648
        %3441 = vst.msk [vmem:[%s540] sm:$0xf] %vm3440, %v3438
        %s3442 = sand.u32 %s328, 1
        %s3443 = scalar_lea.sflag [#allocation4], %s3442
        %s3444 = sand.u32 %s328, 1
        %s3445 = smul.addr %s3444, 4
        %s3446 = scalar_lea.vmem [#allocation10], %s3445
        // Predicated region
        $region89: #{tpu_custom_call.1} parent=71 // pred_check
          %p3447 = pneg %p338
        $region90: #{tpu_custom_call.1} parent=71 // pred_check_branch
          %3449 = sbr.rel (%p3447) target = $region92
        $region91: #{tpu_custom_call.1} parent=71 // pred_region
          %3451 = vsyncadd %s3443, 0
          %s3452 = smul.addr %s32, 4
          %s3453 = scalar_lea.hbm %s13, %s3452
          %s3455 = sshll.u32 %s3446, 4
          %s3456 = int_to_ptr.vmem [resolvable:$true] %s3455
          %s3457 = sshll.u32 %s3453, 4
          %s3458 = int_to_ptr.hbm [resolvable:$true] %s3457
          %3460 = dma.vmem_to_hbm [thread:$0]  %s3456, 64, %s3458, %s3443
        $region92: #{tpu_custom_call.1} parent=71 // pred_fallthru
          _
      $region72: #{tpu_custom_call.1} parent=5 // pred_fallthru
        _
      %p3461 = scmp.le.s32.totalorder 2, %s27
      // Predicated region
      $region93: #{tpu_custom_call.1} parent=5 // pred_check
        %p3462 = pneg %p3461
      $region94: #{tpu_custom_call.1} parent=5 // pred_check_branch
        %3464 = sbr.rel (%p3462) target = $region96
      $region95: #{tpu_custom_call.1} parent=5 // pred_region
        %s3465 = ssub.s32 %s27, 2
        // Predicated region
        $region97: #{tpu_custom_call.1} parent=95 // pred_check
          %p3466 = pneg %p344
        $region98: #{tpu_custom_call.1} parent=95 // pred_check_branch
          %3468 = sbr.rel (%p3466) target = $region100
        $region99: #{tpu_custom_call.1} parent=95 // pred_region
          %s3469 = sand.u32 %s329, 1
          %s3470 = scalar_lea.sflag [#allocation4], %s3469
          %s3471 = sand.u32 %s329, 1
          %s3472 = smul.addr %s3471, 4
          %s3473 = scalar_lea.vmem [#allocation10], %s3472
          %3475 = dma.done %s3470, 64
        $region100: #{tpu_custom_call.1} parent=95 // pred_fallthru
          _
      $region96: #{tpu_custom_call.1} parent=5 // pred_fallthru
        _
    $region6: #{tpu_custom_call.1} parent=1 // loop_footer
      %s31 = sadd.s32 1, %s27
    $region7: #{tpu_custom_call.1} parent=1 // loop_footer_branch
      %26 = sbr.rel target = $region3
    $region8: #{tpu_custom_call.1} parent=1 // loop_exit
      _
    %3476 = vsyncpa [#allocation3], 1
    %s3477 = scalar_lea.sflag [#allocation3], 1
    %3478 = vsyncpa %s3477, 1
    %3479 = vsyncpa [#allocation6], 1
    %3480 = vsyncpa [#allocation9], 1
    %3481 = vsyncpa [#allocation4], 1
    %s3482 = scalar_lea.sflag [#allocation4], 1
    %3483 = vsyncpa %s3482, 1

</llo_original>
